<compile_context>
chip_gen: v7x
topology: tpu7x:2x2x1
jax: 0.10.0
libtpu: 0.0.40
codegen_flags: <defaults>
</compile_context>

<pallas_src>
import functools
import math

import jax
import jax.numpy as jnp
from jax.experimental import pallas as pl
from jax.experimental.pallas import tpu as pltpu


CFG = dict(
    vocab_size=100,
    type_vocab_size=2,
    max_position=64,
    hidden=32,
    heads=4,
    layers=2,
    intermediate=64,
)

LN_EPS = 1e-12


# -----------------------------------------------------------------------------
# In-kernel helpers (all f32 elementwise math; bf16 only as MXU operand dtype)
# -----------------------------------------------------------------------------
def _layernorm(x, g, b, eps):
    mean = jnp.mean(x, axis=-1, keepdims=True)
    var = jnp.mean(jnp.square(x - mean), axis=-1, keepdims=True)
    return (x - mean) * jax.lax.rsqrt(var + eps) * g + b


def _gelu_tanh(x):
    # TODO(synk): HF BERT default is erf-exact gelu; tanh approximation kept for a
    # guaranteed Mosaic lowering (differs from erf at ~1e-3 level).
    return 0.5 * x * (1.0 + jnp.tanh(0.7978845608028654 * (x + 0.044715 * x * x * x)))


def _bf16(x):
    return x.astype(jnp.bfloat16)


# -----------------------------------------------------------------------------
# Fused kernel: one grid step = one batch element; whole encoder stack in VMEM.
# -----------------------------------------------------------------------------
def _bert_fused_kernel(
    emb_ref, emb_ln_ref,
    wqkv_ref, bqkv_ref, wo_ref, bo_ref, ln1_ref,
    w1_ref, b1_ref, w2_ref, b2_ref, ln2_ref,
    pool_w_ref, pool_b_ref,
    seq_ref, pooled_ref,
    *, num_layers, num_heads, eps):
    _, seq_len, hidden = emb_ref.shape
    dh = hidden // num_heads
    scale = 1.0 / math.sqrt(dh)

    # --- embedding LayerNorm -------------------------------------------------
    emb_ln = emb_ln_ref[...].astype(jnp.float32)                    # (2, H)
    x = _layernorm(emb_ref[0].astype(jnp.float32),
                   emb_ln[0:1, :], emb_ln[1:2, :], eps)             # (S, H) f32

    for l in range(num_layers):                                     # static unroll
        # --- fused QKV projection: one (H, 3H) matmul ------------------------
        qkv = jnp.dot(_bf16(x), wqkv_ref[l],
                      preferred_element_type=jnp.float32)           # (S, 3H)
        qkv = qkv + bqkv_ref[l].astype(jnp.float32)

        # --- per-head attention; output projection folded per head ----------
        # NOTE: whole (S, S) scores per head are fine at S=8; at real BERT sizes
        # this would be tiled flash-style (tq/tk blocks) to fit v7x's 64 MiB VMEM.
        acc = jnp.zeros((seq_len, hidden), jnp.float32)
        for h in range(num_heads):                                  # static unroll
            q = qkv[:, h * dh:(h + 1) * dh]                         # (S, dh)
            k = qkv[:, hidden + h * dh:hidden + (h + 1) * dh]
            v = qkv[:, 2 * hidden + h * dh:2 * hidden + (h + 1) * dh]
            s = jax.lax.dot_general(                                # q @ k^T
                _bf16(q), _bf16(k), (((1,), (1,)), ((), ())),
                preferred_element_type=jnp.float32) * scale         # (S, S)
            m = jnp.max(s, axis=-1, keepdims=True)
            p = jnp.exp(s - m)
            p = p * pl.reciprocal(jnp.sum(p, axis=-1, keepdims=True), approx=True)
            ctx = jnp.dot(_bf16(p), _bf16(v),
                          preferred_element_type=jnp.float32)       # (S, dh)
            # attn_out = concat_h(ctx_h) @ Wo  ==  sum_h ctx_h @ Wo[h*dh:(h+1)*dh]
            acc = acc + jnp.dot(_bf16(ctx),
                                wo_ref[l, h * dh:(h + 1) * dh, :],
                                preferred_element_type=jnp.float32)
        attn_out = acc + bo_ref[l].astype(jnp.float32)

        # --- residual + LayerNorm (fused) ------------------------------------
        ln1 = ln1_ref[l].astype(jnp.float32)
        x = _layernorm(attn_out + x, ln1[0:1, :], ln1[1:2, :], eps)

        # --- feed-forward (GELU) + residual + LayerNorm (fused) --------------
        ff = jnp.dot(_bf16(x), w1_ref[l],
                     preferred_element_type=jnp.float32) + b1_ref[l].astype(jnp.float32)
        ff = _gelu_tanh(ff)
        ff = jnp.dot(_bf16(ff), w2_ref[l],
                     preferred_element_type=jnp.float32) + b2_ref[l].astype(jnp.float32)
        ln2 = ln2_ref[l].astype(jnp.float32)
        x = _layernorm(ff + x, ln2[0:1, :], ln2[1:2, :], eps)

    seq_ref[0] = x.astype(seq_ref.dtype)

    # --- BertModel pooler (computed for parity; unused since pooled == False) -
    cls = x[0:1, :]
    pooled = jnp.tanh(
        jnp.dot(_bf16(cls), pool_w_ref[...], preferred_element_type=jnp.float32)
        + pool_b_ref[...].astype(jnp.float32))
    pooled_ref[0] = pooled.astype(pooled_ref.dtype)


# -----------------------------------------------------------------------------
# Parameters (synthetic, deterministic init; bf16 at the HBM/kernel boundary)
# -----------------------------------------------------------------------------
def init_params(key, cfg):
    h, it, nl = cfg["hidden"], cfg["intermediate"], cfg["layers"]
    wdt = jnp.bfloat16

    def nrm(k, shape):
        return 0.02 * jax.random.normal(k, shape, dtype=jnp.float32)

    keys = jax.random.split(key, 10)
    ln_pair = jnp.stack([jnp.ones((h,)), jnp.zeros((h,))])            # (2, H) [gamma; beta]
    return {
        "word_emb": nrm(keys[0], (cfg["vocab_size"], h)).astype(wdt),
        "pos_emb": nrm(keys[1], (cfg["max_position"], h)).astype(wdt),
        "type_emb": nrm(keys[2], (cfg["type_vocab_size"], h)).astype(wdt),
        "emb_ln": ln_pair.astype(wdt),                                 # (2, H)
        # per-layer weights stacked along a leading layer axis; Q/K/V fused.
        "wqkv": nrm(keys[3], (nl, h, 3 * h)).astype(wdt),
        "bqkv": jnp.zeros((nl, 1, 3 * h), wdt),
        "wo": nrm(keys[4], (nl, h, h)).astype(wdt),
        "bo": jnp.zeros((nl, 1, h), wdt),
        "ln1": jnp.tile(ln_pair[None], (nl, 1, 1)).astype(wdt),        # (L, 2, H)
        "w1": nrm(keys[5], (nl, h, it)).astype(wdt),
        "b1": jnp.zeros((nl, 1, it), wdt),
        "w2": nrm(keys[6], (nl, it, h)).astype(wdt),
        "b2": jnp.zeros((nl, 1, h), wdt),
        "ln2": jnp.tile(ln_pair[None], (nl, 1, 1)).astype(wdt),
        "pool_w": nrm(keys[7], (h, h)).astype(wdt),
        "pool_b": jnp.zeros((1, h), wdt),
    }


# -----------------------------------------------------------------------------
# Forward
# -----------------------------------------------------------------------------
def bert_forward(params, input_ids, token_type_ids, cfg):
    b, s = input_ids.shape
    h = cfg["hidden"]

    # Embedding gathers stay in plain JAX glue (token lookup has no dense kernel).
    word = jnp.take(params["word_emb"], input_ids, axis=0).astype(jnp.float32)
    pos = params["pos_emb"][:s][None, :, :].astype(jnp.float32)
    typ = jnp.take(params["type_emb"], token_type_ids, axis=0).astype(jnp.float32)
    emb = (word + pos + typ).astype(jnp.bfloat16)                     # (B, S, H) bf16

    weight_args = (
        params["emb_ln"], params["wqkv"], params["bqkv"], params["wo"], params["bo"],
        params["ln1"], params["w1"], params["b1"], params["w2"], params["b2"],
        params["ln2"], params["pool_w"], params["pool_b"],
    )

    def resident(arr):
        nd = arr.ndim

        def imap(i):
            return (0,) * nd

        return pl.BlockSpec(arr.shape, imap)                          # whole array in VMEM

    kern = functools.partial(_bert_fused_kernel,
                             num_layers=cfg["layers"],
                             num_heads=cfg["heads"],
                             eps=LN_EPS)

    seq_out, pooled_out = pl.pallas_call(
        kern,
        grid=(b,),
        in_specs=[pl.BlockSpec((1, s, h), lambda i: (i, 0, 0))]
                 + [resident(w) for w in weight_args],
        out_specs=[pl.BlockSpec((1, s, h), lambda i: (i, 0, 0)),
                   pl.BlockSpec((1, 1, h), lambda i: (i, 0, 0))],
        out_shape=[jax.ShapeDtypeStruct((b, s, h), jnp.float32),
                   jax.ShapeDtypeStruct((b, 1, h), jnp.float32)],
        compiler_params=pltpu.CompilerParams(
            dimension_semantics=("parallel",)),                       # v7x: shard batch over 2 TCs
    )(emb, *weight_args)

    return seq_out, pooled_out[:, 0, :]


def word_bert_encoder_forward(params, input_ids, token_type_ids, cfg):
    """WordBertEncoder.forward (eval mode: dropout is identity, pooled=False)."""
    sequence_output, _pooled_output = bert_forward(params, input_ids, token_type_ids, cfg)
    return sequence_output[:, 0, :]            # CLS-token representation


# -----------------------------------------------------------------------------
if __name__ == "__main__":
    key = jax.random.PRNGKey(0)
    k_param, k_ids = jax.random.split(key)

    params = init_params(k_param, CFG)

    B, S = 2, 8
    input_ids = jax.random.randint(k_ids, (B, S), 0, CFG["vocab_size"], dtype=jnp.int32)
    token_type_ids = jnp.zeros((B, S), dtype=jnp.int32)

    fwd = jax.jit(functools.partial(word_bert_encoder_forward, cfg=CFG))
    reps = fwd(params, input_ids, token_type_ids)
    jax.block_until_ready(reps)

    assert reps.shape == (B, CFG["hidden"])
    assert bool(jnp.all(jnp.isfinite(reps)))
    print("KERNEL_OK")
</pallas_src>

<mosaic_0001>
module attributes {stable_mosaic.version = 11 : i64} {
  func.func @_bert_fused_kernel(%arg0: i32, %arg1: memref<1x8x32xbf16, #tpu.memory_space<vmem>>, %arg2: memref<2x32xbf16, #tpu.memory_space<vmem>>, %arg3: memref<2x32x96xbf16, #tpu.memory_space<vmem>>, %arg4: memref<2x1x96xbf16, #tpu.memory_space<vmem>>, %arg5: memref<2x32x32xbf16, #tpu.memory_space<vmem>>, %arg6: memref<2x1x32xbf16, #tpu.memory_space<vmem>>, %arg7: memref<2x2x32xbf16, #tpu.memory_space<vmem>>, %arg8: memref<2x32x64xbf16, #tpu.memory_space<vmem>>, %arg9: memref<2x1x64xbf16, #tpu.memory_space<vmem>>, %arg10: memref<2x64x32xbf16, #tpu.memory_space<vmem>>, %arg11: memref<2x1x32xbf16, #tpu.memory_space<vmem>>, %arg12: memref<2x2x32xbf16, #tpu.memory_space<vmem>>, %arg13: memref<32x32xbf16, #tpu.memory_space<vmem>>, %arg14: memref<1x32xbf16, #tpu.memory_space<vmem>>, %arg15: memref<1x8x32xf32, #tpu.memory_space<vmem>>, %arg16: memref<1x1x32xf32, #tpu.memory_space<vmem>>) attributes {dimension_semantics = [#tpu.dimension_semantics<parallel>], iteration_bounds = array<i64: 2>, scalar_prefetch = 0 : i64, scratch_operands = 0 : i64, tpu.core_type = #tpu.core_type<tc>, window_params = [{transform_indices = @transform_0, window_bounds = array<i64: 1, 8, 32>}, {pipeline_mode = #tpu.pipeline_mode<synchronous>, transform_indices = @transform_1, window_bounds = array<i64: 2, 32>}, {pipeline_mode = #tpu.pipeline_mode<synchronous>, transform_indices = @transform_2, window_bounds = array<i64: 2, 32, 96>}, {pipeline_mode = #tpu.pipeline_mode<synchronous>, transform_indices = @transform_3, window_bounds = array<i64: 2, 1, 96>}, {pipeline_mode = #tpu.pipeline_mode<synchronous>, transform_indices = @transform_4, window_bounds = array<i64: 2, 32, 32>}, {pipeline_mode = #tpu.pipeline_mode<synchronous>, transform_indices = @transform_5, window_bounds = array<i64: 2, 1, 32>}, {pipeline_mode = #tpu.pipeline_mode<synchronous>, transform_indices = @transform_6, window_bounds = array<i64: 2, 2, 32>}, {pipeline_mode = #tpu.pipeline_mode<synchronous>, transform_indices = @transform_7, window_bounds = array<i64: 2, 32, 64>}, {pipeline_mode = #tpu.pipeline_mode<synchronous>, transform_indices = @transform_8, window_bounds = array<i64: 2, 1, 64>}, {pipeline_mode = #tpu.pipeline_mode<synchronous>, transform_indices = @transform_9, window_bounds = array<i64: 2, 64, 32>}, {pipeline_mode = #tpu.pipeline_mode<synchronous>, transform_indices = @transform_10, window_bounds = array<i64: 2, 1, 32>}, {pipeline_mode = #tpu.pipeline_mode<synchronous>, transform_indices = @transform_11, window_bounds = array<i64: 2, 2, 32>}, {pipeline_mode = #tpu.pipeline_mode<synchronous>, transform_indices = @transform_12, window_bounds = array<i64: 32, 32>}, {pipeline_mode = #tpu.pipeline_mode<synchronous>, transform_indices = @transform_13, window_bounds = array<i64: 1, 32>}, {transform_indices = @transform_14, window_bounds = array<i64: 1, 8, 32>}, {transform_indices = @transform_15, window_bounds = array<i64: 1, 1, 32>}]} {
    %c0 = arith.constant 0 : index
    %c0_0 = arith.constant 0 : index
    %0 = vector.load %arg2[%c0, %c0_0] : memref<2x32xbf16, #tpu.memory_space<vmem>>, vector<2x32xbf16>
    %1 = arith.extf %0 : vector<2x32xbf16> to vector<2x32xf32>
    %c0_1 = arith.constant 0 : index
    %c0_2 = arith.constant 0 : index
    %c0_3 = arith.constant 0 : index
    %2 = vector.load %arg1[%c0_1, %c0_2, %c0_3] : memref<1x8x32xbf16, #tpu.memory_space<vmem>>, vector<1x8x32xbf16>
    %3 = vector.shape_cast %2 : vector<1x8x32xbf16> to vector<8x32xbf16>
    %4 = arith.extf %3 : vector<8x32xbf16> to vector<8x32xf32>
    %5 = vector.extract_strided_slice %1 {offsets = [0, 0], sizes = [1, 32], strides = [1, 1]} : vector<2x32xf32> to vector<1x32xf32>
    %6 = vector.extract_strided_slice %1 {offsets = [1, 0], sizes = [1, 32], strides = [1, 1]} : vector<2x32xf32> to vector<1x32xf32>
    %cst = arith.constant dense<0.000000e+00> : vector<8xf32>
    %7 = vector.multi_reduction <add>, %4, %cst [1] : vector<8x32xf32> to vector<8xf32>
    %8 = vector.shape_cast %7 : vector<8xf32> to vector<8x1xf32>
    %cst_4 = arith.constant 3.200000e+01 : f32
    %9 = vector.broadcast %cst_4 : f32 to vector<8x1xf32>
    %10 = arith.divf %8, %9 : vector<8x1xf32>
    %11 = vector.broadcast %10 : vector<8x1xf32> to vector<8x32xf32>
    %12 = arith.subf %4, %11 : vector<8x32xf32>
    %13 = arith.mulf %12, %12 : vector<8x32xf32>
    %cst_5 = arith.constant dense<0.000000e+00> : vector<8xf32>
    %14 = vector.multi_reduction <add>, %13, %cst_5 [1] : vector<8x32xf32> to vector<8xf32>
    %15 = vector.shape_cast %14 : vector<8xf32> to vector<8x1xf32>
    %cst_6 = arith.constant 3.200000e+01 : f32
    %16 = vector.broadcast %cst_6 : f32 to vector<8x1xf32>
    %17 = arith.divf %15, %16 : vector<8x1xf32>
    %18 = vector.broadcast %10 : vector<8x1xf32> to vector<8x32xf32>
    %19 = arith.subf %4, %18 : vector<8x32xf32>
    %cst_7 = arith.constant 9.99999996E-13 : f32
    %20 = vector.broadcast %cst_7 : f32 to vector<8x1xf32>
    %21 = arith.addf %17, %20 : vector<8x1xf32>
    %22 = math.rsqrt %21 : vector<8x1xf32>
    %23 = vector.broadcast %22 : vector<8x1xf32> to vector<8x32xf32>
    %24 = arith.mulf %19, %23 : vector<8x32xf32>
    %25 = vector.broadcast %5 : vector<1x32xf32> to vector<8x32xf32>
    %26 = arith.mulf %24, %25 : vector<8x32xf32>
    %27 = vector.broadcast %6 : vector<1x32xf32> to vector<8x32xf32>
    %28 = arith.addf %26, %27 : vector<8x32xf32>
    %29 = arith.truncf %28 : vector<8x32xf32> to vector<8x32xbf16>
    %c0_8 = arith.constant 0 : index
    %c0_9 = arith.constant 0 : index
    %c0_10 = arith.constant 0 : index
    %30 = vector.load %arg3[%c0_8, %c0_9, %c0_10] : memref<2x32x96xbf16, #tpu.memory_space<vmem>>, vector<1x32x96xbf16>
    %31 = vector.shape_cast %30 : vector<1x32x96xbf16> to vector<32x96xbf16>
    %cst_11 = arith.constant dense<0.000000e+00> : vector<8x96xf32>
    %32 = tpu.matmul %29, %31, %cst_11 {dimension_numbers = #tpu.dot_dimension_numbers<[1], [0], [0], [1], [0, 0, 1, 1], [], []>} : vector<8x32xbf16>, vector<32x96xbf16>, vector<8x96xf32> -> vector<8x96xf32>
    %c0_12 = arith.constant 0 : index
    %c0_13 = arith.constant 0 : index
    %c0_14 = arith.constant 0 : index
    %33 = vector.load %arg4[%c0_12, %c0_13, %c0_14] : memref<2x1x96xbf16, #tpu.memory_space<vmem>>, vector<1x1x96xbf16>
    %34 = vector.shape_cast %33 : vector<1x1x96xbf16> to vector<1x96xbf16>
    %35 = arith.extf %34 : vector<1x96xbf16> to vector<1x96xf32>
    %36 = vector.broadcast %35 : vector<1x96xf32> to vector<8x96xf32>
    %37 = arith.addf %32, %36 : vector<8x96xf32>
    %cst_15 = arith.constant 0.000000e+00 : f32
    %38 = vector.broadcast %cst_15 : f32 to vector<8x32xf32>
    %39 = vector.extract_strided_slice %37 {offsets = [0, 0], sizes = [8, 8], strides = [1, 1]} : vector<8x96xf32> to vector<8x8xf32>
    %40 = vector.extract_strided_slice %37 {offsets = [0, 32], sizes = [8, 8], strides = [1, 1]} : vector<8x96xf32> to vector<8x8xf32>
    %41 = vector.extract_strided_slice %37 {offsets = [0, 64], sizes = [8, 8], strides = [1, 1]} : vector<8x96xf32> to vector<8x8xf32>
    %42 = arith.truncf %39 : vector<8x8xf32> to vector<8x8xbf16>
    %43 = arith.truncf %40 : vector<8x8xf32> to vector<8x8xbf16>
    %cst_16 = arith.constant dense<0.000000e+00> : vector<8x8xf32>
    %44 = tpu.matmul %42, %43, %cst_16 {dimension_numbers = #tpu.dot_dimension_numbers<[1], [1], [0], [0], [0, 0, 1, 0], [], []>} : vector<8x8xbf16>, vector<8x8xbf16>, vector<8x8xf32> -> vector<8x8xf32>
    %cst_17 = arith.constant 0.353553385 : f32
    %45 = vector.broadcast %cst_17 : f32 to vector<8x8xf32>
    %46 = arith.mulf %44, %45 : vector<8x8xf32>
    %cst_18 = arith.constant dense<0xFF800000> : vector<8xf32>
    %47 = vector.multi_reduction <maximumf>, %46, %cst_18 [1] : vector<8x8xf32> to vector<8xf32>
    %48 = vector.shape_cast %47 : vector<8xf32> to vector<8x1xf32>
    %49 = vector.broadcast %48 : vector<8x1xf32> to vector<8x8xf32>
    %50 = arith.subf %46, %49 : vector<8x8xf32>
    %51 = math.exp %50 : vector<8x8xf32>
    %cst_19 = arith.constant dense<0.000000e+00> : vector<8xf32>
    %52 = vector.multi_reduction <add>, %51, %cst_19 [1] : vector<8x8xf32> to vector<8xf32>
    %53 = vector.shape_cast %52 : vector<8xf32> to vector<8x1xf32>
    %54 = tpu.reciprocal %53 {approx = true} : vector<8x1xf32> -> vector<8x1xf32>
    %55 = vector.broadcast %54 : vector<8x1xf32> to vector<8x8xf32>
    %56 = arith.mulf %51, %55 : vector<8x8xf32>
    %57 = arith.truncf %56 : vector<8x8xf32> to vector<8x8xbf16>
    %58 = arith.truncf %41 : vector<8x8xf32> to vector<8x8xbf16>
    %cst_20 = arith.constant dense<0.000000e+00> : vector<8x8xf32>
    %59 = tpu.matmul %57, %58, %cst_20 {dimension_numbers = #tpu.dot_dimension_numbers<[1], [0], [0], [1], [0, 0, 1, 1], [], []>} : vector<8x8xbf16>, vector<8x8xbf16>, vector<8x8xf32> -> vector<8x8xf32>
    %60 = arith.truncf %59 : vector<8x8xf32> to vector<8x8xbf16>
    %c0_21 = arith.constant 0 : index
    %c0_22 = arith.constant 0 : index
    %c0_23 = arith.constant 0 : index
    %61 = vector.load %arg5[%c0_21, %c0_22, %c0_23] : memref<2x32x32xbf16, #tpu.memory_space<vmem>>, vector<1x8x32xbf16>
    %62 = vector.shape_cast %61 : vector<1x8x32xbf16> to vector<8x32xbf16>
    %cst_24 = arith.constant dense<0.000000e+00> : vector<8x32xf32>
    %63 = tpu.matmul %60, %62, %cst_24 {dimension_numbers = #tpu.dot_dimension_numbers<[1], [0], [0], [1], [0, 0, 1, 1], [], []>} : vector<8x8xbf16>, vector<8x32xbf16>, vector<8x32xf32> -> vector<8x32xf32>
    %64 = arith.addf %38, %63 : vector<8x32xf32>
    %65 = vector.extract_strided_slice %37 {offsets = [0, 8], sizes = [8, 8], strides = [1, 1]} : vector<8x96xf32> to vector<8x8xf32>
    %66 = vector.extract_strided_slice %37 {offsets = [0, 40], sizes = [8, 8], strides = [1, 1]} : vector<8x96xf32> to vector<8x8xf32>
    %67 = vector.extract_strided_slice %37 {offsets = [0, 72], sizes = [8, 8], strides = [1, 1]} : vector<8x96xf32> to vector<8x8xf32>
    %68 = arith.truncf %65 : vector<8x8xf32> to vector<8x8xbf16>
    %69 = arith.truncf %66 : vector<8x8xf32> to vector<8x8xbf16>
    %cst_25 = arith.constant dense<0.000000e+00> : vector<8x8xf32>
    %70 = tpu.matmul %68, %69, %cst_25 {dimension_numbers = #tpu.dot_dimension_numbers<[1], [1], [0], [0], [0, 0, 1, 0], [], []>} : vector<8x8xbf16>, vector<8x8xbf16>, vector<8x8xf32> -> vector<8x8xf32>
    %cst_26 = arith.constant 0.353553385 : f32
    %71 = vector.broadcast %cst_26 : f32 to vector<8x8xf32>
    %72 = arith.mulf %70, %71 : vector<8x8xf32>
    %cst_27 = arith.constant dense<0xFF800000> : vector<8xf32>
    %73 = vector.multi_reduction <maximumf>, %72, %cst_27 [1] : vector<8x8xf32> to vector<8xf32>
    %74 = vector.shape_cast %73 : vector<8xf32> to vector<8x1xf32>
    %75 = vector.broadcast %74 : vector<8x1xf32> to vector<8x8xf32>
    %76 = arith.subf %72, %75 : vector<8x8xf32>
    %77 = math.exp %76 : vector<8x8xf32>
    %cst_28 = arith.constant dense<0.000000e+00> : vector<8xf32>
    %78 = vector.multi_reduction <add>, %77, %cst_28 [1] : vector<8x8xf32> to vector<8xf32>
    %79 = vector.shape_cast %78 : vector<8xf32> to vector<8x1xf32>
    %80 = tpu.reciprocal %79 {approx = true} : vector<8x1xf32> -> vector<8x1xf32>
    %81 = vector.broadcast %80 : vector<8x1xf32> to vector<8x8xf32>
    %82 = arith.mulf %77, %81 : vector<8x8xf32>
    %83 = arith.truncf %82 : vector<8x8xf32> to vector<8x8xbf16>
    %84 = arith.truncf %67 : vector<8x8xf32> to vector<8x8xbf16>
    %cst_29 = arith.constant dense<0.000000e+00> : vector<8x8xf32>
    %85 = tpu.matmul %83, %84, %cst_29 {dimension_numbers = #tpu.dot_dimension_numbers<[1], [0], [0], [1], [0, 0, 1, 1], [], []>} : vector<8x8xbf16>, vector<8x8xbf16>, vector<8x8xf32> -> vector<8x8xf32>
    %86 = arith.truncf %85 : vector<8x8xf32> to vector<8x8xbf16>
    %c0_30 = arith.constant 0 : index
    %c8 = arith.constant 8 : index
    %c0_31 = arith.constant 0 : index
    %87 = vector.load %arg5[%c0_30, %c8, %c0_31] : memref<2x32x32xbf16, #tpu.memory_space<vmem>>, vector<1x8x32xbf16>
    %88 = vector.shape_cast %87 : vector<1x8x32xbf16> to vector<8x32xbf16>
    %cst_32 = arith.constant dense<0.000000e+00> : vector<8x32xf32>
    %89 = tpu.matmul %86, %88, %cst_32 {dimension_numbers = #tpu.dot_dimension_numbers<[1], [0], [0], [1], [0, 0, 1, 1], [], []>} : vector<8x8xbf16>, vector<8x32xbf16>, vector<8x32xf32> -> vector<8x32xf32>
    %90 = arith.addf %64, %89 : vector<8x32xf32>
    %91 = vector.extract_strided_slice %37 {offsets = [0, 16], sizes = [8, 8], strides = [1, 1]} : vector<8x96xf32> to vector<8x8xf32>
    %92 = vector.extract_strided_slice %37 {offsets = [0, 48], sizes = [8, 8], strides = [1, 1]} : vector<8x96xf32> to vector<8x8xf32>
    %93 = vector.extract_strided_slice %37 {offsets = [0, 80], sizes = [8, 8], strides = [1, 1]} : vector<8x96xf32> to vector<8x8xf32>
    %94 = arith.truncf %91 : vector<8x8xf32> to vector<8x8xbf16>
    %95 = arith.truncf %92 : vector<8x8xf32> to vector<8x8xbf16>
    %cst_33 = arith.constant dense<0.000000e+00> : vector<8x8xf32>
    %96 = tpu.matmul %94, %95, %cst_33 {dimension_numbers = #tpu.dot_dimension_numbers<[1], [1], [0], [0], [0, 0, 1, 0], [], []>} : vector<8x8xbf16>, vector<8x8xbf16>, vector<8x8xf32> -> vector<8x8xf32>
    %cst_34 = arith.constant 0.353553385 : f32
    %97 = vector.broadcast %cst_34 : f32 to vector<8x8xf32>
    %98 = arith.mulf %96, %97 : vector<8x8xf32>
    %cst_35 = arith.constant dense<0xFF800000> : vector<8xf32>
    %99 = vector.multi_reduction <maximumf>, %98, %cst_35 [1] : vector<8x8xf32> to vector<8xf32>
    %100 = vector.shape_cast %99 : vector<8xf32> to vector<8x1xf32>
    %101 = vector.broadcast %100 : vector<8x1xf32> to vector<8x8xf32>
    %102 = arith.subf %98, %101 : vector<8x8xf32>
    %103 = math.exp %102 : vector<8x8xf32>
    %cst_36 = arith.constant dense<0.000000e+00> : vector<8xf32>
    %104 = vector.multi_reduction <add>, %103, %cst_36 [1] : vector<8x8xf32> to vector<8xf32>
    %105 = vector.shape_cast %104 : vector<8xf32> to vector<8x1xf32>
    %106 = tpu.reciprocal %105 {approx = true} : vector<8x1xf32> -> vector<8x1xf32>
    %107 = vector.broadcast %106 : vector<8x1xf32> to vector<8x8xf32>
    %108 = arith.mulf %103, %107 : vector<8x8xf32>
    %109 = arith.truncf %108 : vector<8x8xf32> to vector<8x8xbf16>
    %110 = arith.truncf %93 : vector<8x8xf32> to vector<8x8xbf16>
    %cst_37 = arith.constant dense<0.000000e+00> : vector<8x8xf32>
    %111 = tpu.matmul %109, %110, %cst_37 {dimension_numbers = #tpu.dot_dimension_numbers<[1], [0], [0], [1], [0, 0, 1, 1], [], []>} : vector<8x8xbf16>, vector<8x8xbf16>, vector<8x8xf32> -> vector<8x8xf32>
    %112 = arith.truncf %111 : vector<8x8xf32> to vector<8x8xbf16>
    %c0_38 = arith.constant 0 : index
    %c16 = arith.constant 16 : index
    %c0_39 = arith.constant 0 : index
    %113 = vector.load %arg5[%c0_38, %c16, %c0_39] : memref<2x32x32xbf16, #tpu.memory_space<vmem>>, vector<1x8x32xbf16>
    %114 = vector.shape_cast %113 : vector<1x8x32xbf16> to vector<8x32xbf16>
    %cst_40 = arith.constant dense<0.000000e+00> : vector<8x32xf32>
    %115 = tpu.matmul %112, %114, %cst_40 {dimension_numbers = #tpu.dot_dimension_numbers<[1], [0], [0], [1], [0, 0, 1, 1], [], []>} : vector<8x8xbf16>, vector<8x32xbf16>, vector<8x32xf32> -> vector<8x32xf32>
    %116 = arith.addf %90, %115 : vector<8x32xf32>
    %117 = vector.extract_strided_slice %37 {offsets = [0, 24], sizes = [8, 8], strides = [1, 1]} : vector<8x96xf32> to vector<8x8xf32>
    %118 = vector.extract_strided_slice %37 {offsets = [0, 56], sizes = [8, 8], strides = [1, 1]} : vector<8x96xf32> to vector<8x8xf32>
    %119 = vector.extract_strided_slice %37 {offsets = [0, 88], sizes = [8, 8], strides = [1, 1]} : vector<8x96xf32> to vector<8x8xf32>
    %120 = arith.truncf %117 : vector<8x8xf32> to vector<8x8xbf16>
    %121 = arith.truncf %118 : vector<8x8xf32> to vector<8x8xbf16>
    %cst_41 = arith.constant dense<0.000000e+00> : vector<8x8xf32>
    %122 = tpu.matmul %120, %121, %cst_41 {dimension_numbers = #tpu.dot_dimension_numbers<[1], [1], [0], [0], [0, 0, 1, 0], [], []>} : vector<8x8xbf16>, vector<8x8xbf16>, vector<8x8xf32> -> vector<8x8xf32>
    %cst_42 = arith.constant 0.353553385 : f32
    %123 = vector.broadcast %cst_42 : f32 to vector<8x8xf32>
    %124 = arith.mulf %122, %123 : vector<8x8xf32>
    %cst_43 = arith.constant dense<0xFF800000> : vector<8xf32>
    %125 = vector.multi_reduction <maximumf>, %124, %cst_43 [1] : vector<8x8xf32> to vector<8xf32>
    %126 = vector.shape_cast %125 : vector<8xf32> to vector<8x1xf32>
    %127 = vector.broadcast %126 : vector<8x1xf32> to vector<8x8xf32>
    %128 = arith.subf %124, %127 : vector<8x8xf32>
    %129 = math.exp %128 : vector<8x8xf32>
    %cst_44 = arith.constant dense<0.000000e+00> : vector<8xf32>
    %130 = vector.multi_reduction <add>, %129, %cst_44 [1] : vector<8x8xf32> to vector<8xf32>
    %131 = vector.shape_cast %130 : vector<8xf32> to vector<8x1xf32>
    %132 = tpu.reciprocal %131 {approx = true} : vector<8x1xf32> -> vector<8x1xf32>
    %133 = vector.broadcast %132 : vector<8x1xf32> to vector<8x8xf32>
    %134 = arith.mulf %129, %133 : vector<8x8xf32>
    %135 = arith.truncf %134 : vector<8x8xf32> to vector<8x8xbf16>
    %136 = arith.truncf %119 : vector<8x8xf32> to vector<8x8xbf16>
    %cst_45 = arith.constant dense<0.000000e+00> : vector<8x8xf32>
    %137 = tpu.matmul %135, %136, %cst_45 {dimension_numbers = #tpu.dot_dimension_numbers<[1], [0], [0], [1], [0, 0, 1, 1], [], []>} : vector<8x8xbf16>, vector<8x8xbf16>, vector<8x8xf32> -> vector<8x8xf32>
    %138 = arith.truncf %137 : vector<8x8xf32> to vector<8x8xbf16>
    %c0_46 = arith.constant 0 : index
    %c24 = arith.constant 24 : index
    %c0_47 = arith.constant 0 : index
    %139 = vector.load %arg5[%c0_46, %c24, %c0_47] : memref<2x32x32xbf16, #tpu.memory_space<vmem>>, vector<1x8x32xbf16>
    %140 = vector.shape_cast %139 : vector<1x8x32xbf16> to vector<8x32xbf16>
    %cst_48 = arith.constant dense<0.000000e+00> : vector<8x32xf32>
    %141 = tpu.matmul %138, %140, %cst_48 {dimension_numbers = #tpu.dot_dimension_numbers<[1], [0], [0], [1], [0, 0, 1, 1], [], []>} : vector<8x8xbf16>, vector<8x32xbf16>, vector<8x32xf32> -> vector<8x32xf32>
    %142 = arith.addf %116, %141 : vector<8x32xf32>
    %c0_49 = arith.constant 0 : index
    %c0_50 = arith.constant 0 : index
    %c0_51 = arith.constant 0 : index
    %143 = vector.load %arg6[%c0_49, %c0_50, %c0_51] : memref<2x1x32xbf16, #tpu.memory_space<vmem>>, vector<1x1x32xbf16>
    %144 = vector.shape_cast %143 : vector<1x1x32xbf16> to vector<1x32xbf16>
    %145 = arith.extf %144 : vector<1x32xbf16> to vector<1x32xf32>
    %146 = vector.broadcast %145 : vector<1x32xf32> to vector<8x32xf32>
    %147 = arith.addf %142, %146 : vector<8x32xf32>
    %c0_52 = arith.constant 0 : index
    %c0_53 = arith.constant 0 : index
    %c0_54 = arith.constant 0 : index
    %148 = vector.load %arg7[%c0_52, %c0_53, %c0_54] : memref<2x2x32xbf16, #tpu.memory_space<vmem>>, vector<1x2x32xbf16>
    %149 = vector.shape_cast %148 : vector<1x2x32xbf16> to vector<2x32xbf16>
    %150 = arith.extf %149 : vector<2x32xbf16> to vector<2x32xf32>
    %151 = arith.addf %147, %28 : vector<8x32xf32>
    %152 = vector.extract_strided_slice %150 {offsets = [0, 0], sizes = [1, 32], strides = [1, 1]} : vector<2x32xf32> to vector<1x32xf32>
    %153 = vector.extract_strided_slice %150 {offsets = [1, 0], sizes = [1, 32], strides = [1, 1]} : vector<2x32xf32> to vector<1x32xf32>
    %cst_55 = arith.constant dense<0.000000e+00> : vector<8xf32>
    %154 = vector.multi_reduction <add>, %151, %cst_55 [1] : vector<8x32xf32> to vector<8xf32>
    %155 = vector.shape_cast %154 : vector<8xf32> to vector<8x1xf32>
    %cst_56 = arith.constant 3.200000e+01 : f32
    %156 = vector.broadcast %cst_56 : f32 to vector<8x1xf32>
    %157 = arith.divf %155, %156 : vector<8x1xf32>
    %158 = vector.broadcast %157 : vector<8x1xf32> to vector<8x32xf32>
    %159 = arith.subf %151, %158 : vector<8x32xf32>
    %160 = arith.mulf %159, %159 : vector<8x32xf32>
    %cst_57 = arith.constant dense<0.000000e+00> : vector<8xf32>
    %161 = vector.multi_reduction <add>, %160, %cst_57 [1] : vector<8x32xf32> to vector<8xf32>
    %162 = vector.shape_cast %161 : vector<8xf32> to vector<8x1xf32>
    %cst_58 = arith.constant 3.200000e+01 : f32
    %163 = vector.broadcast %cst_58 : f32 to vector<8x1xf32>
    %164 = arith.divf %162, %163 : vector<8x1xf32>
    %165 = vector.broadcast %157 : vector<8x1xf32> to vector<8x32xf32>
    %166 = arith.subf %151, %165 : vector<8x32xf32>
    %cst_59 = arith.constant 9.99999996E-13 : f32
    %167 = vector.broadcast %cst_59 : f32 to vector<8x1xf32>
    %168 = arith.addf %164, %167 : vector<8x1xf32>
    %169 = math.rsqrt %168 : vector<8x1xf32>
    %170 = vector.broadcast %169 : vector<8x1xf32> to vector<8x32xf32>
    %171 = arith.mulf %166, %170 : vector<8x32xf32>
    %172 = vector.broadcast %152 : vector<1x32xf32> to vector<8x32xf32>
    %173 = arith.mulf %171, %172 : vector<8x32xf32>
    %174 = vector.broadcast %153 : vector<1x32xf32> to vector<8x32xf32>
    %175 = arith.addf %173, %174 : vector<8x32xf32>
    %176 = arith.truncf %175 : vector<8x32xf32> to vector<8x32xbf16>
    %c0_60 = arith.constant 0 : index
    %c0_61 = arith.constant 0 : index
    %c0_62 = arith.constant 0 : index
    %177 = vector.load %arg8[%c0_60, %c0_61, %c0_62] : memref<2x32x64xbf16, #tpu.memory_space<vmem>>, vector<1x32x64xbf16>
    %178 = vector.shape_cast %177 : vector<1x32x64xbf16> to vector<32x64xbf16>
    %cst_63 = arith.constant dense<0.000000e+00> : vector<8x64xf32>
    %179 = tpu.matmul %176, %178, %cst_63 {dimension_numbers = #tpu.dot_dimension_numbers<[1], [0], [0], [1], [0, 0, 1, 1], [], []>} : vector<8x32xbf16>, vector<32x64xbf16>, vector<8x64xf32> -> vector<8x64xf32>
    %c0_64 = arith.constant 0 : index
    %c0_65 = arith.constant 0 : index
    %c0_66 = arith.constant 0 : index
    %180 = vector.load %arg9[%c0_64, %c0_65, %c0_66] : memref<2x1x64xbf16, #tpu.memory_space<vmem>>, vector<1x1x64xbf16>
    %181 = vector.shape_cast %180 : vector<1x1x64xbf16> to vector<1x64xbf16>
    %182 = arith.extf %181 : vector<1x64xbf16> to vector<1x64xf32>
    %183 = vector.broadcast %182 : vector<1x64xf32> to vector<8x64xf32>
    %184 = arith.addf %179, %183 : vector<8x64xf32>
    %cst_67 = arith.constant 5.000000e-01 : f32
    %185 = vector.broadcast %cst_67 : f32 to vector<8x64xf32>
    %186 = arith.mulf %185, %184 : vector<8x64xf32>
    %cst_68 = arith.constant 4.471500e-02 : f32
    %187 = vector.broadcast %cst_68 : f32 to vector<8x64xf32>
    %188 = arith.mulf %187, %184 : vector<8x64xf32>
    %189 = arith.mulf %188, %184 : vector<8x64xf32>
    %190 = arith.mulf %189, %184 : vector<8x64xf32>
    %191 = arith.addf %184, %190 : vector<8x64xf32>
    %cst_69 = arith.constant 0.797884583 : f32
    %192 = vector.broadcast %cst_69 : f32 to vector<8x64xf32>
    %193 = arith.mulf %192, %191 : vector<8x64xf32>
    %194 = math.tanh %193 : vector<8x64xf32>
    %cst_70 = arith.constant 1.000000e+00 : f32
    %195 = vector.broadcast %cst_70 : f32 to vector<8x64xf32>
    %196 = arith.addf %195, %194 : vector<8x64xf32>
    %197 = arith.mulf %186, %196 : vector<8x64xf32>
    %198 = arith.truncf %197 : vector<8x64xf32> to vector<8x64xbf16>
    %c0_71 = arith.constant 0 : index
    %c0_72 = arith.constant 0 : index
    %c0_73 = arith.constant 0 : index
    %199 = vector.load %arg10[%c0_71, %c0_72, %c0_73] : memref<2x64x32xbf16, #tpu.memory_space<vmem>>, vector<1x64x32xbf16>
    %200 = vector.shape_cast %199 : vector<1x64x32xbf16> to vector<64x32xbf16>
    %cst_74 = arith.constant dense<0.000000e+00> : vector<8x32xf32>
    %201 = tpu.matmul %198, %200, %cst_74 {dimension_numbers = #tpu.dot_dimension_numbers<[1], [0], [0], [1], [0, 0, 1, 1], [], []>} : vector<8x64xbf16>, vector<64x32xbf16>, vector<8x32xf32> -> vector<8x32xf32>
    %c0_75 = arith.constant 0 : index
    %c0_76 = arith.constant 0 : index
    %c0_77 = arith.constant 0 : index
    %202 = vector.load %arg11[%c0_75, %c0_76, %c0_77] : memref<2x1x32xbf16, #tpu.memory_space<vmem>>, vector<1x1x32xbf16>
    %203 = vector.shape_cast %202 : vector<1x1x32xbf16> to vector<1x32xbf16>
    %204 = arith.extf %203 : vector<1x32xbf16> to vector<1x32xf32>
    %205 = vector.broadcast %204 : vector<1x32xf32> to vector<8x32xf32>
    %206 = arith.addf %201, %205 : vector<8x32xf32>
    %c0_78 = arith.constant 0 : index
    %c0_79 = arith.constant 0 : index
    %c0_80 = arith.constant 0 : index
    %207 = vector.load %arg12[%c0_78, %c0_79, %c0_80] : memref<2x2x32xbf16, #tpu.memory_space<vmem>>, vector<1x2x32xbf16>
    %208 = vector.shape_cast %207 : vector<1x2x32xbf16> to vector<2x32xbf16>
    %209 = arith.extf %208 : vector<2x32xbf16> to vector<2x32xf32>
    %210 = arith.addf %206, %175 : vector<8x32xf32>
    %211 = vector.extract_strided_slice %209 {offsets = [0, 0], sizes = [1, 32], strides = [1, 1]} : vector<2x32xf32> to vector<1x32xf32>
    %212 = vector.extract_strided_slice %209 {offsets = [1, 0], sizes = [1, 32], strides = [1, 1]} : vector<2x32xf32> to vector<1x32xf32>
    %cst_81 = arith.constant dense<0.000000e+00> : vector<8xf32>
    %213 = vector.multi_reduction <add>, %210, %cst_81 [1] : vector<8x32xf32> to vector<8xf32>
    %214 = vector.shape_cast %213 : vector<8xf32> to vector<8x1xf32>
    %cst_82 = arith.constant 3.200000e+01 : f32
    %215 = vector.broadcast %cst_82 : f32 to vector<8x1xf32>
    %216 = arith.divf %214, %215 : vector<8x1xf32>
    %217 = vector.broadcast %216 : vector<8x1xf32> to vector<8x32xf32>
    %218 = arith.subf %210, %217 : vector<8x32xf32>
    %219 = arith.mulf %218, %218 : vector<8x32xf32>
    %cst_83 = arith.constant dense<0.000000e+00> : vector<8xf32>
    %220 = vector.multi_reduction <add>, %219, %cst_83 [1] : vector<8x32xf32> to vector<8xf32>
    %221 = vector.shape_cast %220 : vector<8xf32> to vector<8x1xf32>
    %cst_84 = arith.constant 3.200000e+01 : f32
    %222 = vector.broadcast %cst_84 : f32 to vector<8x1xf32>
    %223 = arith.divf %221, %222 : vector<8x1xf32>
    %224 = vector.broadcast %216 : vector<8x1xf32> to vector<8x32xf32>
    %225 = arith.subf %210, %224 : vector<8x32xf32>
    %cst_85 = arith.constant 9.99999996E-13 : f32
    %226 = vector.broadcast %cst_85 : f32 to vector<8x1xf32>
    %227 = arith.addf %223, %226 : vector<8x1xf32>
    %228 = math.rsqrt %227 : vector<8x1xf32>
    %229 = vector.broadcast %228 : vector<8x1xf32> to vector<8x32xf32>
    %230 = arith.mulf %225, %229 : vector<8x32xf32>
    %231 = vector.broadcast %211 : vector<1x32xf32> to vector<8x32xf32>
    %232 = arith.mulf %230, %231 : vector<8x32xf32>
    %233 = vector.broadcast %212 : vector<1x32xf32> to vector<8x32xf32>
    %234 = arith.addf %232, %233 : vector<8x32xf32>
    %235 = arith.truncf %234 : vector<8x32xf32> to vector<8x32xbf16>
    %c1 = arith.constant 1 : index
    %c0_86 = arith.constant 0 : index
    %c0_87 = arith.constant 0 : index
    %236 = vector.load %arg3[%c1, %c0_86, %c0_87] : memref<2x32x96xbf16, #tpu.memory_space<vmem>>, vector<1x32x96xbf16>
    %237 = vector.shape_cast %236 : vector<1x32x96xbf16> to vector<32x96xbf16>
    %cst_88 = arith.constant dense<0.000000e+00> : vector<8x96xf32>
    %238 = tpu.matmul %235, %237, %cst_88 {dimension_numbers = #tpu.dot_dimension_numbers<[1], [0], [0], [1], [0, 0, 1, 1], [], []>} : vector<8x32xbf16>, vector<32x96xbf16>, vector<8x96xf32> -> vector<8x96xf32>
    %c1_89 = arith.constant 1 : index
    %c0_90 = arith.constant 0 : index
    %c0_91 = arith.constant 0 : index
    %239 = vector.load %arg4[%c1_89, %c0_90, %c0_91] : memref<2x1x96xbf16, #tpu.memory_space<vmem>>, vector<1x1x96xbf16>
    %240 = vector.shape_cast %239 : vector<1x1x96xbf16> to vector<1x96xbf16>
    %241 = arith.extf %240 : vector<1x96xbf16> to vector<1x96xf32>
    %242 = vector.broadcast %241 : vector<1x96xf32> to vector<8x96xf32>
    %243 = arith.addf %238, %242 : vector<8x96xf32>
    %cst_92 = arith.constant 0.000000e+00 : f32
    %244 = vector.broadcast %cst_92 : f32 to vector<8x32xf32>
    %245 = vector.extract_strided_slice %243 {offsets = [0, 0], sizes = [8, 8], strides = [1, 1]} : vector<8x96xf32> to vector<8x8xf32>
    %246 = vector.extract_strided_slice %243 {offsets = [0, 32], sizes = [8, 8], strides = [1, 1]} : vector<8x96xf32> to vector<8x8xf32>
    %247 = vector.extract_strided_slice %243 {offsets = [0, 64], sizes = [8, 8], strides = [1, 1]} : vector<8x96xf32> to vector<8x8xf32>
    %248 = arith.truncf %245 : vector<8x8xf32> to vector<8x8xbf16>
    %249 = arith.truncf %246 : vector<8x8xf32> to vector<8x8xbf16>
    %cst_93 = arith.constant dense<0.000000e+00> : vector<8x8xf32>
    %250 = tpu.matmul %248, %249, %cst_93 {dimension_numbers = #tpu.dot_dimension_numbers<[1], [1], [0], [0], [0, 0, 1, 0], [], []>} : vector<8x8xbf16>, vector<8x8xbf16>, vector<8x8xf32> -> vector<8x8xf32>
    %cst_94 = arith.constant 0.353553385 : f32
    %251 = vector.broadcast %cst_94 : f32 to vector<8x8xf32>
    %252 = arith.mulf %250, %251 : vector<8x8xf32>
    %cst_95 = arith.constant dense<0xFF800000> : vector<8xf32>
    %253 = vector.multi_reduction <maximumf>, %252, %cst_95 [1] : vector<8x8xf32> to vector<8xf32>
    %254 = vector.shape_cast %253 : vector<8xf32> to vector<8x1xf32>
    %255 = vector.broadcast %254 : vector<8x1xf32> to vector<8x8xf32>
    %256 = arith.subf %252, %255 : vector<8x8xf32>
    %257 = math.exp %256 : vector<8x8xf32>
    %cst_96 = arith.constant dense<0.000000e+00> : vector<8xf32>
    %258 = vector.multi_reduction <add>, %257, %cst_96 [1] : vector<8x8xf32> to vector<8xf32>
    %259 = vector.shape_cast %258 : vector<8xf32> to vector<8x1xf32>
    %260 = tpu.reciprocal %259 {approx = true} : vector<8x1xf32> -> vector<8x1xf32>
    %261 = vector.broadcast %260 : vector<8x1xf32> to vector<8x8xf32>
    %262 = arith.mulf %257, %261 : vector<8x8xf32>
    %263 = arith.truncf %262 : vector<8x8xf32> to vector<8x8xbf16>
    %264 = arith.truncf %247 : vector<8x8xf32> to vector<8x8xbf16>
    %cst_97 = arith.constant dense<0.000000e+00> : vector<8x8xf32>
    %265 = tpu.matmul %263, %264, %cst_97 {dimension_numbers = #tpu.dot_dimension_numbers<[1], [0], [0], [1], [0, 0, 1, 1], [], []>} : vector<8x8xbf16>, vector<8x8xbf16>, vector<8x8xf32> -> vector<8x8xf32>
    %266 = arith.truncf %265 : vector<8x8xf32> to vector<8x8xbf16>
    %c1_98 = arith.constant 1 : index
    %c0_99 = arith.constant 0 : index
    %c0_100 = arith.constant 0 : index
    %267 = vector.load %arg5[%c1_98, %c0_99, %c0_100] : memref<2x32x32xbf16, #tpu.memory_space<vmem>>, vector<1x8x32xbf16>
    %268 = vector.shape_cast %267 : vector<1x8x32xbf16> to vector<8x32xbf16>
    %cst_101 = arith.constant dense<0.000000e+00> : vector<8x32xf32>
    %269 = tpu.matmul %266, %268, %cst_101 {dimension_numbers = #tpu.dot_dimension_numbers<[1], [0], [0], [1], [0, 0, 1, 1], [], []>} : vector<8x8xbf16>, vector<8x32xbf16>, vector<8x32xf32> -> vector<8x32xf32>
    %270 = arith.addf %244, %269 : vector<8x32xf32>
    %271 = vector.extract_strided_slice %243 {offsets = [0, 8], sizes = [8, 8], strides = [1, 1]} : vector<8x96xf32> to vector<8x8xf32>
    %272 = vector.extract_strided_slice %243 {offsets = [0, 40], sizes = [8, 8], strides = [1, 1]} : vector<8x96xf32> to vector<8x8xf32>
    %273 = vector.extract_strided_slice %243 {offsets = [0, 72], sizes = [8, 8], strides = [1, 1]} : vector<8x96xf32> to vector<8x8xf32>
    %274 = arith.truncf %271 : vector<8x8xf32> to vector<8x8xbf16>
    %275 = arith.truncf %272 : vector<8x8xf32> to vector<8x8xbf16>
    %cst_102 = arith.constant dense<0.000000e+00> : vector<8x8xf32>
    %276 = tpu.matmul %274, %275, %cst_102 {dimension_numbers = #tpu.dot_dimension_numbers<[1], [1], [0], [0], [0, 0, 1, 0], [], []>} : vector<8x8xbf16>, vector<8x8xbf16>, vector<8x8xf32> -> vector<8x8xf32>
    %cst_103 = arith.constant 0.353553385 : f32
    %277 = vector.broadcast %cst_103 : f32 to vector<8x8xf32>
    %278 = arith.mulf %276, %277 : vector<8x8xf32>
    %cst_104 = arith.constant dense<0xFF800000> : vector<8xf32>
    %279 = vector.multi_reduction <maximumf>, %278, %cst_104 [1] : vector<8x8xf32> to vector<8xf32>
    %280 = vector.shape_cast %279 : vector<8xf32> to vector<8x1xf32>
    %281 = vector.broadcast %280 : vector<8x1xf32> to vector<8x8xf32>
    %282 = arith.subf %278, %281 : vector<8x8xf32>
    %283 = math.exp %282 : vector<8x8xf32>
    %cst_105 = arith.constant dense<0.000000e+00> : vector<8xf32>
    %284 = vector.multi_reduction <add>, %283, %cst_105 [1] : vector<8x8xf32> to vector<8xf32>
    %285 = vector.shape_cast %284 : vector<8xf32> to vector<8x1xf32>
    %286 = tpu.reciprocal %285 {approx = true} : vector<8x1xf32> -> vector<8x1xf32>
    %287 = vector.broadcast %286 : vector<8x1xf32> to vector<8x8xf32>
    %288 = arith.mulf %283, %287 : vector<8x8xf32>
    %289 = arith.truncf %288 : vector<8x8xf32> to vector<8x8xbf16>
    %290 = arith.truncf %273 : vector<8x8xf32> to vector<8x8xbf16>
    %cst_106 = arith.constant dense<0.000000e+00> : vector<8x8xf32>
    %291 = tpu.matmul %289, %290, %cst_106 {dimension_numbers = #tpu.dot_dimension_numbers<[1], [0], [0], [1], [0, 0, 1, 1], [], []>} : vector<8x8xbf16>, vector<8x8xbf16>, vector<8x8xf32> -> vector<8x8xf32>
    %292 = arith.truncf %291 : vector<8x8xf32> to vector<8x8xbf16>
    %c1_107 = arith.constant 1 : index
    %c8_108 = arith.constant 8 : index
    %c0_109 = arith.constant 0 : index
    %293 = vector.load %arg5[%c1_107, %c8_108, %c0_109] : memref<2x32x32xbf16, #tpu.memory_space<vmem>>, vector<1x8x32xbf16>
    %294 = vector.shape_cast %293 : vector<1x8x32xbf16> to vector<8x32xbf16>
    %cst_110 = arith.constant dense<0.000000e+00> : vector<8x32xf32>
    %295 = tpu.matmul %292, %294, %cst_110 {dimension_numbers = #tpu.dot_dimension_numbers<[1], [0], [0], [1], [0, 0, 1, 1], [], []>} : vector<8x8xbf16>, vector<8x32xbf16>, vector<8x32xf32> -> vector<8x32xf32>
    %296 = arith.addf %270, %295 : vector<8x32xf32>
    %297 = vector.extract_strided_slice %243 {offsets = [0, 16], sizes = [8, 8], strides = [1, 1]} : vector<8x96xf32> to vector<8x8xf32>
    %298 = vector.extract_strided_slice %243 {offsets = [0, 48], sizes = [8, 8], strides = [1, 1]} : vector<8x96xf32> to vector<8x8xf32>
    %299 = vector.extract_strided_slice %243 {offsets = [0, 80], sizes = [8, 8], strides = [1, 1]} : vector<8x96xf32> to vector<8x8xf32>
    %300 = arith.truncf %297 : vector<8x8xf32> to vector<8x8xbf16>
    %301 = arith.truncf %298 : vector<8x8xf32> to vector<8x8xbf16>
    %cst_111 = arith.constant dense<0.000000e+00> : vector<8x8xf32>
    %302 = tpu.matmul %300, %301, %cst_111 {dimension_numbers = #tpu.dot_dimension_numbers<[1], [1], [0], [0], [0, 0, 1, 0], [], []>} : vector<8x8xbf16>, vector<8x8xbf16>, vector<8x8xf32> -> vector<8x8xf32>
    %cst_112 = arith.constant 0.353553385 : f32
    %303 = vector.broadcast %cst_112 : f32 to vector<8x8xf32>
    %304 = arith.mulf %302, %303 : vector<8x8xf32>
    %cst_113 = arith.constant dense<0xFF800000> : vector<8xf32>
    %305 = vector.multi_reduction <maximumf>, %304, %cst_113 [1] : vector<8x8xf32> to vector<8xf32>
    %306 = vector.shape_cast %305 : vector<8xf32> to vector<8x1xf32>
    %307 = vector.broadcast %306 : vector<8x1xf32> to vector<8x8xf32>
    %308 = arith.subf %304, %307 : vector<8x8xf32>
    %309 = math.exp %308 : vector<8x8xf32>
    %cst_114 = arith.constant dense<0.000000e+00> : vector<8xf32>
    %310 = vector.multi_reduction <add>, %309, %cst_114 [1] : vector<8x8xf32> to vector<8xf32>
    %311 = vector.shape_cast %310 : vector<8xf32> to vector<8x1xf32>
    %312 = tpu.reciprocal %311 {approx = true} : vector<8x1xf32> -> vector<8x1xf32>
    %313 = vector.broadcast %312 : vector<8x1xf32> to vector<8x8xf32>
    %314 = arith.mulf %309, %313 : vector<8x8xf32>
    %315 = arith.truncf %314 : vector<8x8xf32> to vector<8x8xbf16>
    %316 = arith.truncf %299 : vector<8x8xf32> to vector<8x8xbf16>
    %cst_115 = arith.constant dense<0.000000e+00> : vector<8x8xf32>
    %317 = tpu.matmul %315, %316, %cst_115 {dimension_numbers = #tpu.dot_dimension_numbers<[1], [0], [0], [1], [0, 0, 1, 1], [], []>} : vector<8x8xbf16>, vector<8x8xbf16>, vector<8x8xf32> -> vector<8x8xf32>
    %318 = arith.truncf %317 : vector<8x8xf32> to vector<8x8xbf16>
    %c1_116 = arith.constant 1 : index
    %c16_117 = arith.constant 16 : index
    %c0_118 = arith.constant 0 : index
    %319 = vector.load %arg5[%c1_116, %c16_117, %c0_118] : memref<2x32x32xbf16, #tpu.memory_space<vmem>>, vector<1x8x32xbf16>
    %320 = vector.shape_cast %319 : vector<1x8x32xbf16> to vector<8x32xbf16>
    %cst_119 = arith.constant dense<0.000000e+00> : vector<8x32xf32>
    %321 = tpu.matmul %318, %320, %cst_119 {dimension_numbers = #tpu.dot_dimension_numbers<[1], [0], [0], [1], [0, 0, 1, 1], [], []>} : vector<8x8xbf16>, vector<8x32xbf16>, vector<8x32xf32> -> vector<8x32xf32>
    %322 = arith.addf %296, %321 : vector<8x32xf32>
    %323 = vector.extract_strided_slice %243 {offsets = [0, 24], sizes = [8, 8], strides = [1, 1]} : vector<8x96xf32> to vector<8x8xf32>
    %324 = vector.extract_strided_slice %243 {offsets = [0, 56], sizes = [8, 8], strides = [1, 1]} : vector<8x96xf32> to vector<8x8xf32>
    %325 = vector.extract_strided_slice %243 {offsets = [0, 88], sizes = [8, 8], strides = [1, 1]} : vector<8x96xf32> to vector<8x8xf32>
    %326 = arith.truncf %323 : vector<8x8xf32> to vector<8x8xbf16>
    %327 = arith.truncf %324 : vector<8x8xf32> to vector<8x8xbf16>
    %cst_120 = arith.constant dense<0.000000e+00> : vector<8x8xf32>
    %328 = tpu.matmul %326, %327, %cst_120 {dimension_numbers = #tpu.dot_dimension_numbers<[1], [1], [0], [0], [0, 0, 1, 0], [], []>} : vector<8x8xbf16>, vector<8x8xbf16>, vector<8x8xf32> -> vector<8x8xf32>
    %cst_121 = arith.constant 0.353553385 : f32
    %329 = vector.broadcast %cst_121 : f32 to vector<8x8xf32>
    %330 = arith.mulf %328, %329 : vector<8x8xf32>
    %cst_122 = arith.constant dense<0xFF800000> : vector<8xf32>
    %331 = vector.multi_reduction <maximumf>, %330, %cst_122 [1] : vector<8x8xf32> to vector<8xf32>
    %332 = vector.shape_cast %331 : vector<8xf32> to vector<8x1xf32>
    %333 = vector.broadcast %332 : vector<8x1xf32> to vector<8x8xf32>
    %334 = arith.subf %330, %333 : vector<8x8xf32>
    %335 = math.exp %334 : vector<8x8xf32>
    %cst_123 = arith.constant dense<0.000000e+00> : vector<8xf32>
    %336 = vector.multi_reduction <add>, %335, %cst_123 [1] : vector<8x8xf32> to vector<8xf32>
    %337 = vector.shape_cast %336 : vector<8xf32> to vector<8x1xf32>
    %338 = tpu.reciprocal %337 {approx = true} : vector<8x1xf32> -> vector<8x1xf32>
    %339 = vector.broadcast %338 : vector<8x1xf32> to vector<8x8xf32>
    %340 = arith.mulf %335, %339 : vector<8x8xf32>
    %341 = arith.truncf %340 : vector<8x8xf32> to vector<8x8xbf16>
    %342 = arith.truncf %325 : vector<8x8xf32> to vector<8x8xbf16>
    %cst_124 = arith.constant dense<0.000000e+00> : vector<8x8xf32>
    %343 = tpu.matmul %341, %342, %cst_124 {dimension_numbers = #tpu.dot_dimension_numbers<[1], [0], [0], [1], [0, 0, 1, 1], [], []>} : vector<8x8xbf16>, vector<8x8xbf16>, vector<8x8xf32> -> vector<8x8xf32>
    %344 = arith.truncf %343 : vector<8x8xf32> to vector<8x8xbf16>
    %c1_125 = arith.constant 1 : index
    %c24_126 = arith.constant 24 : index
    %c0_127 = arith.constant 0 : index
    %345 = vector.load %arg5[%c1_125, %c24_126, %c0_127] : memref<2x32x32xbf16, #tpu.memory_space<vmem>>, vector<1x8x32xbf16>
    %346 = vector.shape_cast %345 : vector<1x8x32xbf16> to vector<8x32xbf16>
    %cst_128 = arith.constant dense<0.000000e+00> : vector<8x32xf32>
    %347 = tpu.matmul %344, %346, %cst_128 {dimension_numbers = #tpu.dot_dimension_numbers<[1], [0], [0], [1], [0, 0, 1, 1], [], []>} : vector<8x8xbf16>, vector<8x32xbf16>, vector<8x32xf32> -> vector<8x32xf32>
    %348 = arith.addf %322, %347 : vector<8x32xf32>
    %c1_129 = arith.constant 1 : index
    %c0_130 = arith.constant 0 : index
    %c0_131 = arith.constant 0 : index
    %349 = vector.load %arg6[%c1_129, %c0_130, %c0_131] : memref<2x1x32xbf16, #tpu.memory_space<vmem>>, vector<1x1x32xbf16>
    %350 = vector.shape_cast %349 : vector<1x1x32xbf16> to vector<1x32xbf16>
    %351 = arith.extf %350 : vector<1x32xbf16> to vector<1x32xf32>
    %352 = vector.broadcast %351 : vector<1x32xf32> to vector<8x32xf32>
    %353 = arith.addf %348, %352 : vector<8x32xf32>
    %c1_132 = arith.constant 1 : index
    %c0_133 = arith.constant 0 : index
    %c0_134 = arith.constant 0 : index
    %354 = vector.load %arg7[%c1_132, %c0_133, %c0_134] : memref<2x2x32xbf16, #tpu.memory_space<vmem>>, vector<1x2x32xbf16>
    %355 = vector.shape_cast %354 : vector<1x2x32xbf16> to vector<2x32xbf16>
    %356 = arith.extf %355 : vector<2x32xbf16> to vector<2x32xf32>
    %357 = arith.addf %353, %234 : vector<8x32xf32>
    %358 = vector.extract_strided_slice %356 {offsets = [0, 0], sizes = [1, 32], strides = [1, 1]} : vector<2x32xf32> to vector<1x32xf32>
    %359 = vector.extract_strided_slice %356 {offsets = [1, 0], sizes = [1, 32], strides = [1, 1]} : vector<2x32xf32> to vector<1x32xf32>
    %cst_135 = arith.constant dense<0.000000e+00> : vector<8xf32>
    %360 = vector.multi_reduction <add>, %357, %cst_135 [1] : vector<8x32xf32> to vector<8xf32>
    %361 = vector.shape_cast %360 : vector<8xf32> to vector<8x1xf32>
    %cst_136 = arith.constant 3.200000e+01 : f32
    %362 = vector.broadcast %cst_136 : f32 to vector<8x1xf32>
    %363 = arith.divf %361, %362 : vector<8x1xf32>
    %364 = vector.broadcast %363 : vector<8x1xf32> to vector<8x32xf32>
    %365 = arith.subf %357, %364 : vector<8x32xf32>
    %366 = arith.mulf %365, %365 : vector<8x32xf32>
    %cst_137 = arith.constant dense<0.000000e+00> : vector<8xf32>
    %367 = vector.multi_reduction <add>, %366, %cst_137 [1] : vector<8x32xf32> to vector<8xf32>
    %368 = vector.shape_cast %367 : vector<8xf32> to vector<8x1xf32>
    %cst_138 = arith.constant 3.200000e+01 : f32
    %369 = vector.broadcast %cst_138 : f32 to vector<8x1xf32>
    %370 = arith.divf %368, %369 : vector<8x1xf32>
    %371 = vector.broadcast %363 : vector<8x1xf32> to vector<8x32xf32>
    %372 = arith.subf %357, %371 : vector<8x32xf32>
    %cst_139 = arith.constant 9.99999996E-13 : f32
    %373 = vector.broadcast %cst_139 : f32 to vector<8x1xf32>
    %374 = arith.addf %370, %373 : vector<8x1xf32>
    %375 = math.rsqrt %374 : vector<8x1xf32>
    %376 = vector.broadcast %375 : vector<8x1xf32> to vector<8x32xf32>
    %377 = arith.mulf %372, %376 : vector<8x32xf32>
    %378 = vector.broadcast %358 : vector<1x32xf32> to vector<8x32xf32>
    %379 = arith.mulf %377, %378 : vector<8x32xf32>
    %380 = vector.broadcast %359 : vector<1x32xf32> to vector<8x32xf32>
    %381 = arith.addf %379, %380 : vector<8x32xf32>
    %382 = arith.truncf %381 : vector<8x32xf32> to vector<8x32xbf16>
    %c1_140 = arith.constant 1 : index
    %c0_141 = arith.constant 0 : index
    %c0_142 = arith.constant 0 : index
    %383 = vector.load %arg8[%c1_140, %c0_141, %c0_142] : memref<2x32x64xbf16, #tpu.memory_space<vmem>>, vector<1x32x64xbf16>
    %384 = vector.shape_cast %383 : vector<1x32x64xbf16> to vector<32x64xbf16>
    %cst_143 = arith.constant dense<0.000000e+00> : vector<8x64xf32>
    %385 = tpu.matmul %382, %384, %cst_143 {dimension_numbers = #tpu.dot_dimension_numbers<[1], [0], [0], [1], [0, 0, 1, 1], [], []>} : vector<8x32xbf16>, vector<32x64xbf16>, vector<8x64xf32> -> vector<8x64xf32>
    %c1_144 = arith.constant 1 : index
    %c0_145 = arith.constant 0 : index
    %c0_146 = arith.constant 0 : index
    %386 = vector.load %arg9[%c1_144, %c0_145, %c0_146] : memref<2x1x64xbf16, #tpu.memory_space<vmem>>, vector<1x1x64xbf16>
    %387 = vector.shape_cast %386 : vector<1x1x64xbf16> to vector<1x64xbf16>
    %388 = arith.extf %387 : vector<1x64xbf16> to vector<1x64xf32>
    %389 = vector.broadcast %388 : vector<1x64xf32> to vector<8x64xf32>
    %390 = arith.addf %385, %389 : vector<8x64xf32>
    %cst_147 = arith.constant 5.000000e-01 : f32
    %391 = vector.broadcast %cst_147 : f32 to vector<8x64xf32>
    %392 = arith.mulf %391, %390 : vector<8x64xf32>
    %cst_148 = arith.constant 4.471500e-02 : f32
    %393 = vector.broadcast %cst_148 : f32 to vector<8x64xf32>
    %394 = arith.mulf %393, %390 : vector<8x64xf32>
    %395 = arith.mulf %394, %390 : vector<8x64xf32>
    %396 = arith.mulf %395, %390 : vector<8x64xf32>
    %397 = arith.addf %390, %396 : vector<8x64xf32>
    %cst_149 = arith.constant 0.797884583 : f32
    %398 = vector.broadcast %cst_149 : f32 to vector<8x64xf32>
    %399 = arith.mulf %398, %397 : vector<8x64xf32>
    %400 = math.tanh %399 : vector<8x64xf32>
    %cst_150 = arith.constant 1.000000e+00 : f32
    %401 = vector.broadcast %cst_150 : f32 to vector<8x64xf32>
    %402 = arith.addf %401, %400 : vector<8x64xf32>
    %403 = arith.mulf %392, %402 : vector<8x64xf32>
    %404 = arith.truncf %403 : vector<8x64xf32> to vector<8x64xbf16>
    %c1_151 = arith.constant 1 : index
    %c0_152 = arith.constant 0 : index
    %c0_153 = arith.constant 0 : index
    %405 = vector.load %arg10[%c1_151, %c0_152, %c0_153] : memref<2x64x32xbf16, #tpu.memory_space<vmem>>, vector<1x64x32xbf16>
    %406 = vector.shape_cast %405 : vector<1x64x32xbf16> to vector<64x32xbf16>
    %cst_154 = arith.constant dense<0.000000e+00> : vector<8x32xf32>
    %407 = tpu.matmul %404, %406, %cst_154 {dimension_numbers = #tpu.dot_dimension_numbers<[1], [0], [0], [1], [0, 0, 1, 1], [], []>} : vector<8x64xbf16>, vector<64x32xbf16>, vector<8x32xf32> -> vector<8x32xf32>
    %c1_155 = arith.constant 1 : index
    %c0_156 = arith.constant 0 : index
    %c0_157 = arith.constant 0 : index
    %408 = vector.load %arg11[%c1_155, %c0_156, %c0_157] : memref<2x1x32xbf16, #tpu.memory_space<vmem>>, vector<1x1x32xbf16>
    %409 = vector.shape_cast %408 : vector<1x1x32xbf16> to vector<1x32xbf16>
    %410 = arith.extf %409 : vector<1x32xbf16> to vector<1x32xf32>
    %411 = vector.broadcast %410 : vector<1x32xf32> to vector<8x32xf32>
    %412 = arith.addf %407, %411 : vector<8x32xf32>
    %c1_158 = arith.constant 1 : index
    %c0_159 = arith.constant 0 : index
    %c0_160 = arith.constant 0 : index
    %413 = vector.load %arg12[%c1_158, %c0_159, %c0_160] : memref<2x2x32xbf16, #tpu.memory_space<vmem>>, vector<1x2x32xbf16>
    %414 = vector.shape_cast %413 : vector<1x2x32xbf16> to vector<2x32xbf16>
    %415 = arith.extf %414 : vector<2x32xbf16> to vector<2x32xf32>
    %416 = arith.addf %412, %381 : vector<8x32xf32>
    %417 = vector.extract_strided_slice %415 {offsets = [0, 0], sizes = [1, 32], strides = [1, 1]} : vector<2x32xf32> to vector<1x32xf32>
    %418 = vector.extract_strided_slice %415 {offsets = [1, 0], sizes = [1, 32], strides = [1, 1]} : vector<2x32xf32> to vector<1x32xf32>
    %cst_161 = arith.constant dense<0.000000e+00> : vector<8xf32>
    %419 = vector.multi_reduction <add>, %416, %cst_161 [1] : vector<8x32xf32> to vector<8xf32>
    %420 = vector.shape_cast %419 : vector<8xf32> to vector<8x1xf32>
    %cst_162 = arith.constant 3.200000e+01 : f32
    %421 = vector.broadcast %cst_162 : f32 to vector<8x1xf32>
    %422 = arith.divf %420, %421 : vector<8x1xf32>
    %423 = vector.broadcast %422 : vector<8x1xf32> to vector<8x32xf32>
    %424 = arith.subf %416, %423 : vector<8x32xf32>
    %425 = arith.mulf %424, %424 : vector<8x32xf32>
    %cst_163 = arith.constant dense<0.000000e+00> : vector<8xf32>
    %426 = vector.multi_reduction <add>, %425, %cst_163 [1] : vector<8x32xf32> to vector<8xf32>
    %427 = vector.shape_cast %426 : vector<8xf32> to vector<8x1xf32>
    %cst_164 = arith.constant 3.200000e+01 : f32
    %428 = vector.broadcast %cst_164 : f32 to vector<8x1xf32>
    %429 = arith.divf %427, %428 : vector<8x1xf32>
    %430 = vector.broadcast %422 : vector<8x1xf32> to vector<8x32xf32>
    %431 = arith.subf %416, %430 : vector<8x32xf32>
    %cst_165 = arith.constant 9.99999996E-13 : f32
    %432 = vector.broadcast %cst_165 : f32 to vector<8x1xf32>
    %433 = arith.addf %429, %432 : vector<8x1xf32>
    %434 = math.rsqrt %433 : vector<8x1xf32>
    %435 = vector.broadcast %434 : vector<8x1xf32> to vector<8x32xf32>
    %436 = arith.mulf %431, %435 : vector<8x32xf32>
    %437 = vector.broadcast %417 : vector<1x32xf32> to vector<8x32xf32>
    %438 = arith.mulf %436, %437 : vector<8x32xf32>
    %439 = vector.broadcast %418 : vector<1x32xf32> to vector<8x32xf32>
    %440 = arith.addf %438, %439 : vector<8x32xf32>
    %c0_166 = arith.constant 0 : index
    %c0_167 = arith.constant 0 : index
    %c0_168 = arith.constant 0 : index
    %441 = vector.load %arg15[%c0_166, %c0_167, %c0_168] : memref<1x8x32xf32, #tpu.memory_space<vmem>>, vector<1x8x32xf32>
    %442 = vector.shape_cast %441 : vector<1x8x32xf32> to vector<8x32xf32>
    %443 = vector.shape_cast %440 : vector<8x32xf32> to vector<1x8x32xf32>
    tpu.vector_store %arg15[%c0_166, %c0_167, %c0_168], %443 {strides = array<i32>} : memref<1x8x32xf32, #tpu.memory_space<vmem>>, vector<1x8x32xf32>,
    %444 = vector.extract_strided_slice %440 {offsets = [0, 0], sizes = [1, 32], strides = [1, 1]} : vector<8x32xf32> to vector<1x32xf32>
    %445 = arith.truncf %444 : vector<1x32xf32> to vector<1x32xbf16>
    %c0_169 = arith.constant 0 : index
    %c0_170 = arith.constant 0 : index
    %446 = vector.load %arg13[%c0_169, %c0_170] : memref<32x32xbf16, #tpu.memory_space<vmem>>, vector<32x32xbf16>
    %cst_171 = arith.constant dense<0.000000e+00> : vector<1x32xf32>
    %447 = tpu.matmul %445, %446, %cst_171 {dimension_numbers = #tpu.dot_dimension_numbers<[1], [0], [0], [1], [0, 0, 1, 1], [], []>} : vector<1x32xbf16>, vector<32x32xbf16>, vector<1x32xf32> -> vector<1x32xf32>
    %c0_172 = arith.constant 0 : index
    %c0_173 = arith.constant 0 : index
    %448 = vector.load %arg14[%c0_172, %c0_173] : memref<1x32xbf16, #tpu.memory_space<vmem>>, vector<1x32xbf16>
    %449 = arith.extf %448 : vector<1x32xbf16> to vector<1x32xf32>
    %450 = arith.addf %447, %449 : vector<1x32xf32>
    %451 = math.tanh %450 : vector<1x32xf32>
    %c0_174 = arith.constant 0 : index
    %c0_175 = arith.constant 0 : index
    %c0_176 = arith.constant 0 : index
    %452 = vector.load %arg16[%c0_174, %c0_175, %c0_176] : memref<1x1x32xf32, #tpu.memory_space<vmem>>, vector<1x1x32xf32>
    %453 = vector.shape_cast %452 : vector<1x1x32xf32> to vector<1x32xf32>
    %454 = vector.shape_cast %451 : vector<1x32xf32> to vector<1x1x32xf32>
    tpu.vector_store %arg16[%c0_174, %c0_175, %c0_176], %454 {strides = array<i32>} : memref<1x1x32xf32, #tpu.memory_space<vmem>>, vector<1x1x32xf32>,
    return
  }
  func.func @transform_0(%arg0: i32) -> (i32, i32, i32) {
    %c0_i32 = arith.constant 0 : i32
    %c0_i32_0 = arith.constant 0 : i32
    %c0_i32_1 = arith.constant 0 : i32
    return %arg0, %c0_i32, %c0_i32_0 : i32, i32, i32
  }
  func.func @transform_1(%arg0: i32) -> (i32, i32) {
    %c0_i32 = arith.constant 0 : i32
    %c0_i32_0 = arith.constant 0 : i32
    %c0_i32_1 = arith.constant 0 : i32
    return %c0_i32, %c0_i32_0 : i32, i32
  }
  func.func @transform_2(%arg0: i32) -> (i32, i32, i32) {
    %c0_i32 = arith.constant 0 : i32
    %c0_i32_0 = arith.constant 0 : i32
    %c0_i32_1 = arith.constant 0 : i32
    %c0_i32_2 = arith.constant 0 : i32
    return %c0_i32, %c0_i32_0, %c0_i32_1 : i32, i32, i32
  }
  func.func @transform_3(%arg0: i32) -> (i32, i32, i32) {
    %c0_i32 = arith.constant 0 : i32
    %c0_i32_0 = arith.constant 0 : i32
    %c0_i32_1 = arith.constant 0 : i32
    %c0_i32_2 = arith.constant 0 : i32
    return %c0_i32, %c0_i32_0, %c0_i32_1 : i32, i32, i32
  }
  func.func @transform_4(%arg0: i32) -> (i32, i32, i32) {
    %c0_i32 = arith.constant 0 : i32
    %c0_i32_0 = arith.constant 0 : i32
    %c0_i32_1 = arith.constant 0 : i32
    %c0_i32_2 = arith.constant 0 : i32
    return %c0_i32, %c0_i32_0, %c0_i32_1 : i32, i32, i32
  }
  func.func @transform_5(%arg0: i32) -> (i32, i32, i32) {
    %c0_i32 = arith.constant 0 : i32
    %c0_i32_0 = arith.constant 0 : i32
    %c0_i32_1 = arith.constant 0 : i32
    %c0_i32_2 = arith.constant 0 : i32
    return %c0_i32, %c0_i32_0, %c0_i32_1 : i32, i32, i32
  }
  func.func @transform_6(%arg0: i32) -> (i32, i32, i32) {
    %c0_i32 = arith.constant 0 : i32
    %c0_i32_0 = arith.constant 0 : i32
    %c0_i32_1 = arith.constant 0 : i32
    %c0_i32_2 = arith.constant 0 : i32
    return %c0_i32, %c0_i32_0, %c0_i32_1 : i32, i32, i32
  }
  func.func @transform_7(%arg0: i32) -> (i32, i32, i32) {
    %c0_i32 = arith.constant 0 : i32
    %c0_i32_0 = arith.constant 0 : i32
    %c0_i32_1 = arith.constant 0 : i32
    %c0_i32_2 = arith.constant 0 : i32
    return %c0_i32, %c0_i32_0, %c0_i32_1 : i32, i32, i32
  }
  func.func @transform_8(%arg0: i32) -> (i32, i32, i32) {
    %c0_i32 = arith.constant 0 : i32
    %c0_i32_0 = arith.constant 0 : i32
    %c0_i32_1 = arith.constant 0 : i32
    %c0_i32_2 = arith.constant 0 : i32
    return %c0_i32, %c0_i32_0, %c0_i32_1 : i32, i32, i32
  }
  func.func @transform_9(%arg0: i32) -> (i32, i32, i32) {
    %c0_i32 = arith.constant 0 : i32
    %c0_i32_0 = arith.constant 0 : i32
    %c0_i32_1 = arith.constant 0 : i32
    %c0_i32_2 = arith.constant 0 : i32
    return %c0_i32, %c0_i32_0, %c0_i32_1 : i32, i32, i32
  }
  func.func @transform_10(%arg0: i32) -> (i32, i32, i32) {
    %c0_i32 = arith.constant 0 : i32
    %c0_i32_0 = arith.constant 0 : i32
    %c0_i32_1 = arith.constant 0 : i32
    %c0_i32_2 = arith.constant 0 : i32
    return %c0_i32, %c0_i32_0, %c0_i32_1 : i32, i32, i32
  }
  func.func @transform_11(%arg0: i32) -> (i32, i32, i32) {
    %c0_i32 = arith.constant 0 : i32
    %c0_i32_0 = arith.constant 0 : i32
    %c0_i32_1 = arith.constant 0 : i32
    %c0_i32_2 = arith.constant 0 : i32
    return %c0_i32, %c0_i32_0, %c0_i32_1 : i32, i32, i32
  }
  func.func @transform_12(%arg0: i32) -> (i32, i32) {
    %c0_i32 = arith.constant 0 : i32
    %c0_i32_0 = arith.constant 0 : i32
    %c0_i32_1 = arith.constant 0 : i32
    return %c0_i32, %c0_i32_0 : i32, i32
  }
  func.func @transform_13(%arg0: i32) -> (i32, i32) {
    %c0_i32 = arith.constant 0 : i32
    %c0_i32_0 = arith.constant 0 : i32
    %c0_i32_1 = arith.constant 0 : i32
    return %c0_i32, %c0_i32_0 : i32, i32
  }
  func.func @transform_14(%arg0: i32) -> (i32, i32, i32) {
    %c0_i32 = arith.constant 0 : i32
    %c0_i32_0 = arith.constant 0 : i32
    %c0_i32_1 = arith.constant 0 : i32
    return %arg0, %c0_i32, %c0_i32_0 : i32, i32, i32
  }
  func.func @transform_15(%arg0: i32) -> (i32, i32, i32) {
    %c0_i32 = arith.constant 0 : i32
    %c0_i32_0 = arith.constant 0 : i32
    %c0_i32_1 = arith.constant 0 : i32
    return %arg0, %c0_i32, %c0_i32_0 : i32, i32, i32
  }
}

</mosaic_0001>

<llo_original>
// kernel: word_bert_encoder_forward.1
$region0: #{word_bert_encoder_forward.1}
  #allocation0 [shape = 'u32[]', space=smem, size = 0x4, offset = 0x4, fixed_abs, tag = 'smem constant byte address 0x4 - core index']
  #allocation1 [shape = 'u32[144,128]{1,0:T(1,128)}', space=vmem, size = 0x12000, scoped, tag = 'internal scratch']
  %s0 = inlined_call_operand.vmem [shape: bf16[2,8,32], index: 0, kind: input, shape index: {}]
  %s1 = inlined_call_operand.vmem [shape: bf16[2,32], index: 1, kind: input, shape index: {}]
  %s2 = inlined_call_operand.vmem [shape: bf16[2,32,96], index: 2, kind: input, shape index: {}]
  %s3 = inlined_call_operand.vmem [shape: bf16[2,1,96], index: 3, kind: input, shape index: {}]
  %s4 = inlined_call_operand.vmem [shape: bf16[2,32,32], index: 4, kind: input, shape index: {}]
  %s5 = inlined_call_operand.vmem [shape: bf16[2,1,32], index: 5, kind: input, shape index: {}]
  %s6 = inlined_call_operand.vmem [shape: bf16[2,2,32], index: 6, kind: input, shape index: {}]
  %s7 = inlined_call_operand.vmem [shape: bf16[2,32,64], index: 7, kind: input, shape index: {}]
  %s8 = inlined_call_operand.vmem [shape: bf16[2,1,64], index: 8, kind: input, shape index: {}]
  %s9 = inlined_call_operand.vmem [shape: bf16[2,64,32], index: 9, kind: input, shape index: {}]
  %s10 = inlined_call_operand.vmem [shape: bf16[2,1,32], index: 10, kind: input, shape index: {}]
  %s11 = inlined_call_operand.vmem [shape: bf16[2,2,32], index: 11, kind: input, shape index: {}]
  %s12 = inlined_call_operand.vmem [shape: bf16[32,32], index: 12, kind: input, shape index: {}]
  %s13 = inlined_call_operand.vmem [shape: bf16[1,32], index: 13, kind: input, shape index: {}]
  %s14 = inlined_call_operand.vmem [shape: f32[2,8,32], index: 14, kind: output, shape index: {0}]
  %s15 = inlined_call_operand.hbm [shape: f32[2,1,32], index: 15, kind: output, shape index: {1}]
  %16 = xla_tuple %s14, %s15
  %s17 = sld [smem:[#allocation0]]
  $region97: #{word_bert_encoder_forward.1} parent=0
    _
  %s19 = ssub.s32 1, %s17
  %s20 = scalar_select 0, %s19, %s17
  $region1: #{word_bert_encoder_forward.1} parent=0
    #allocation2 [shape = 'u8[1024]{0}', space=vmem, size = 0x400, scoped, tag = 'output window, operand 1']
    #allocation3 [shape = 's32[2]{0}', space=sflag, size = 0x8, scoped, tag = 'scoped memory for word_bert_encoder_forward.1']
    %21 = vsyncpa [#allocation3], 0
    %s22 = scalar_lea.sflag [#allocation3], 1
    %23 = vsyncpa %s22, 0
    loop: start=0, step=1, limit=4
    $region2: #{word_bert_encoder_forward.1} parent=1 // loop_pre_header
      _
    $region3: #{word_bert_encoder_forward.1} parent=1 // loop_header
      %s25 = sphi 0, %s29
      %p26 = scmp.ge.s32.totalorder %s25, 4
      %s35 = sphi 0, %s37
      %s38 = sphi 0, %s35
      %s39 = sphi 0, %s38
      %s55 = sphi 0, %s39
      %s59 = sphi 0, %s59
      %s61 = sphi 0, %s59
      %s62 = sphi 0, %s61
      %s76 = sphi 0, %s62
      %s80 = sphi 0, %s80
      %s82 = sphi 0, %s80
      %s83 = sphi 0, %s82
      %s97 = sphi 0, %s83
      %s101 = sphi 0, %s101
      %s103 = sphi 0, %s101
      %s104 = sphi 0, %s103
      %s118 = sphi 0, %s104
      %s122 = sphi 0, %s122
      %s124 = sphi 0, %s122
      %s125 = sphi 0, %s124
      %s139 = sphi 0, %s125
      %s143 = sphi 0, %s143
      %s145 = sphi 0, %s143
      %s146 = sphi 0, %s145
      %s160 = sphi 0, %s146
      %s164 = sphi 0, %s164
      %s166 = sphi 0, %s164
      %s167 = sphi 0, %s166
      %s181 = sphi 0, %s167
      %s185 = sphi 0, %s185
      %s187 = sphi 0, %s185
      %s188 = sphi 0, %s187
      %s202 = sphi 0, %s188
      %s206 = sphi 0, %s206
      %s208 = sphi 0, %s206
      %s209 = sphi 0, %s208
      %s223 = sphi 0, %s209
      %s227 = sphi 0, %s227
      %s229 = sphi 0, %s227
      %s230 = sphi 0, %s229
      %s244 = sphi 0, %s230
      %s248 = sphi 0, %s248
      %s250 = sphi 0, %s248
      %s251 = sphi 0, %s250
      %s265 = sphi 0, %s251
      %s269 = sphi 0, %s269
      %s271 = sphi 0, %s269
      %s272 = sphi 0, %s271
      %s286 = sphi 0, %s272
      %s290 = sphi 0, %s290
      %s292 = sphi 0, %s290
      %s293 = sphi 0, %s292
      %s307 = sphi 0, %s293
      %s311 = sphi 0, %s311
      %s313 = sphi 0, %s311
      %s314 = sphi 0, %s313
      %s328 = sphi 0, %s314
      %s334 = sphi 0, %s336
      %s337 = sphi 0, %s334
      %s338 = sphi 0, %s337
      %s354 = sphi 0, %s338
      %s360 = sphi 0, %s362
      %s363 = sphi 0, %s360
      %s364 = sphi 0, %s363
      %s380 = sphi 0, %s364
    $region4: #{word_bert_encoder_forward.1} parent=1 // loop_header_branch
      %28 = sbr.rel (%p26) target = $region8
    $region5: #{word_bert_encoder_forward.1} parent=1 // loop_body
      %s30 = ssub.s32 %s25, 1
      %s31 = ssub.s32 %s25, 2
      %s32 = sadd.s32 %s25, 1
      %s33 = ssub.s32 %s25, %s32
      %p34 = scmp.eq.s32.totalorder %s33, 0
      %s36 = sadd.s32 %s35, 1
      %s37 = scalar_select %p34, %s35, %s36
      %p40 = pneg %p34
      %p41 = scmp.eq.s32.totalorder %s25, 1
      %p42 = por %p40, %p41
      %p43 = scmp.ne.s32.totalorder %s35, %s38
      %p44 = scmp.eq.s32.totalorder %s25, 0
      %p45 = por %p43, %p44
      %p46 = scmp.ne.s32.totalorder %s35, %s38
      %p47 = scmp.eq.s32.totalorder %s30, 1
      %p48 = por %p46, %p47
      %p49 = scmp.ne.s32.totalorder %s38, %s39
      %p50 = scmp.eq.s32.totalorder %s30, 0
      %p51 = por %p49, %p50
      %p52 = scmp.ne.s32.totalorder %s38, %s39
      %p53 = scmp.eq.s32.totalorder %s31, 1
      %p54 = por %p52, %p53
      %p56 = scmp.ne.s32.totalorder %s39, %s55
      %p57 = scmp.eq.s32.totalorder %s31, 0
      %p58 = por %p56, %p57
      %s60 = sadd.s32 %s59, 1
      %p63 = scmp.eq.s32.totalorder %s25, 1
      %p64 = scmp.ne.s32.totalorder %s59, %s61
      %p65 = scmp.eq.s32.totalorder %s25, 0
      %p66 = por %p64, %p65
      %p67 = scmp.ne.s32.totalorder %s59, %s61
      %p68 = scmp.eq.s32.totalorder %s30, 1
      %p69 = por %p67, %p68
      %p70 = scmp.ne.s32.totalorder %s61, %s62
      %p71 = scmp.eq.s32.totalorder %s30, 0
      %p72 = por %p70, %p71
      %p73 = scmp.ne.s32.totalorder %s61, %s62
      %p74 = scmp.eq.s32.totalorder %s31, 1
      %p75 = por %p73, %p74
      %p77 = scmp.ne.s32.totalorder %s62, %s76
      %p78 = scmp.eq.s32.totalorder %s31, 0
      %p79 = por %p77, %p78
      %s81 = sadd.s32 %s80, 1
      %p84 = scmp.eq.s32.totalorder %s25, 1
      %p85 = scmp.ne.s32.totalorder %s80, %s82
      %p86 = scmp.eq.s32.totalorder %s25, 0
      %p87 = por %p85, %p86
      %p88 = scmp.ne.s32.totalorder %s80, %s82
      %p89 = scmp.eq.s32.totalorder %s30, 1
      %p90 = por %p88, %p89
      %p91 = scmp.ne.s32.totalorder %s82, %s83
      %p92 = scmp.eq.s32.totalorder %s30, 0
      %p93 = por %p91, %p92
      %p94 = scmp.ne.s32.totalorder %s82, %s83
      %p95 = scmp.eq.s32.totalorder %s31, 1
      %p96 = por %p94, %p95
      %p98 = scmp.ne.s32.totalorder %s83, %s97
      %p99 = scmp.eq.s32.totalorder %s31, 0
      %p100 = por %p98, %p99
      %s102 = sadd.s32 %s101, 1
      %p105 = scmp.eq.s32.totalorder %s25, 1
      %p106 = scmp.ne.s32.totalorder %s101, %s103
      %p107 = scmp.eq.s32.totalorder %s25, 0
      %p108 = por %p106, %p107
      %p109 = scmp.ne.s32.totalorder %s101, %s103
      %p110 = scmp.eq.s32.totalorder %s30, 1
      %p111 = por %p109, %p110
      %p112 = scmp.ne.s32.totalorder %s103, %s104
      %p113 = scmp.eq.s32.totalorder %s30, 0
      %p114 = por %p112, %p113
      %p115 = scmp.ne.s32.totalorder %s103, %s104
      %p116 = scmp.eq.s32.totalorder %s31, 1
      %p117 = por %p115, %p116
      %p119 = scmp.ne.s32.totalorder %s104, %s118
      %p120 = scmp.eq.s32.totalorder %s31, 0
      %p121 = por %p119, %p120
      %s123 = sadd.s32 %s122, 1
      %p126 = scmp.eq.s32.totalorder %s25, 1
      %p127 = scmp.ne.s32.totalorder %s122, %s124
      %p128 = scmp.eq.s32.totalorder %s25, 0
      %p129 = por %p127, %p128
      %p130 = scmp.ne.s32.totalorder %s122, %s124
      %p131 = scmp.eq.s32.totalorder %s30, 1
      %p132 = por %p130, %p131
      %p133 = scmp.ne.s32.totalorder %s124, %s125
      %p134 = scmp.eq.s32.totalorder %s30, 0
      %p135 = por %p133, %p134
      %p136 = scmp.ne.s32.totalorder %s124, %s125
      %p137 = scmp.eq.s32.totalorder %s31, 1
      %p138 = por %p136, %p137
      %p140 = scmp.ne.s32.totalorder %s125, %s139
      %p141 = scmp.eq.s32.totalorder %s31, 0
      %p142 = por %p140, %p141
      %s144 = sadd.s32 %s143, 1
      %p147 = scmp.eq.s32.totalorder %s25, 1
      %p148 = scmp.ne.s32.totalorder %s143, %s145
      %p149 = scmp.eq.s32.totalorder %s25, 0
      %p150 = por %p148, %p149
      %p151 = scmp.ne.s32.totalorder %s143, %s145
      %p152 = scmp.eq.s32.totalorder %s30, 1
      %p153 = por %p151, %p152
      %p154 = scmp.ne.s32.totalorder %s145, %s146
      %p155 = scmp.eq.s32.totalorder %s30, 0
      %p156 = por %p154, %p155
      %p157 = scmp.ne.s32.totalorder %s145, %s146
      %p158 = scmp.eq.s32.totalorder %s31, 1
      %p159 = por %p157, %p158
      %p161 = scmp.ne.s32.totalorder %s146, %s160
      %p162 = scmp.eq.s32.totalorder %s31, 0
      %p163 = por %p161, %p162
      %s165 = sadd.s32 %s164, 1
      %p168 = scmp.eq.s32.totalorder %s25, 1
      %p169 = scmp.ne.s32.totalorder %s164, %s166
      %p170 = scmp.eq.s32.totalorder %s25, 0
      %p171 = por %p169, %p170
      %p172 = scmp.ne.s32.totalorder %s164, %s166
      %p173 = scmp.eq.s32.totalorder %s30, 1
      %p174 = por %p172, %p173
      %p175 = scmp.ne.s32.totalorder %s166, %s167
      %p176 = scmp.eq.s32.totalorder %s30, 0
      %p177 = por %p175, %p176
      %p178 = scmp.ne.s32.totalorder %s166, %s167
      %p179 = scmp.eq.s32.totalorder %s31, 1
      %p180 = por %p178, %p179
      %p182 = scmp.ne.s32.totalorder %s167, %s181
      %p183 = scmp.eq.s32.totalorder %s31, 0
      %p184 = por %p182, %p183
      %s186 = sadd.s32 %s185, 1
      %p189 = scmp.eq.s32.totalorder %s25, 1
      %p190 = scmp.ne.s32.totalorder %s185, %s187
      %p191 = scmp.eq.s32.totalorder %s25, 0
      %p192 = por %p190, %p191
      %p193 = scmp.ne.s32.totalorder %s185, %s187
      %p194 = scmp.eq.s32.totalorder %s30, 1
      %p195 = por %p193, %p194
      %p196 = scmp.ne.s32.totalorder %s187, %s188
      %p197 = scmp.eq.s32.totalorder %s30, 0
      %p198 = por %p196, %p197
      %p199 = scmp.ne.s32.totalorder %s187, %s188
      %p200 = scmp.eq.s32.totalorder %s31, 1
      %p201 = por %p199, %p200
      %p203 = scmp.ne.s32.totalorder %s188, %s202
      %p204 = scmp.eq.s32.totalorder %s31, 0
      %p205 = por %p203, %p204
      %s207 = sadd.s32 %s206, 1
      %p210 = scmp.eq.s32.totalorder %s25, 1
      %p211 = scmp.ne.s32.totalorder %s206, %s208
      %p212 = scmp.eq.s32.totalorder %s25, 0
      %p213 = por %p211, %p212
      %p214 = scmp.ne.s32.totalorder %s206, %s208
      %p215 = scmp.eq.s32.totalorder %s30, 1
      %p216 = por %p214, %p215
      %p217 = scmp.ne.s32.totalorder %s208, %s209
      %p218 = scmp.eq.s32.totalorder %s30, 0
      %p219 = por %p217, %p218
      %p220 = scmp.ne.s32.totalorder %s208, %s209
      %p221 = scmp.eq.s32.totalorder %s31, 1
      %p222 = por %p220, %p221
      %p224 = scmp.ne.s32.totalorder %s209, %s223
      %p225 = scmp.eq.s32.totalorder %s31, 0
      %p226 = por %p224, %p225
      %s228 = sadd.s32 %s227, 1
      %p231 = scmp.eq.s32.totalorder %s25, 1
      %p232 = scmp.ne.s32.totalorder %s227, %s229
      %p233 = scmp.eq.s32.totalorder %s25, 0
      %p234 = por %p232, %p233
      %p235 = scmp.ne.s32.totalorder %s227, %s229
      %p236 = scmp.eq.s32.totalorder %s30, 1
      %p237 = por %p235, %p236
      %p238 = scmp.ne.s32.totalorder %s229, %s230
      %p239 = scmp.eq.s32.totalorder %s30, 0
      %p240 = por %p238, %p239
      %p241 = scmp.ne.s32.totalorder %s229, %s230
      %p242 = scmp.eq.s32.totalorder %s31, 1
      %p243 = por %p241, %p242
      %p245 = scmp.ne.s32.totalorder %s230, %s244
      %p246 = scmp.eq.s32.totalorder %s31, 0
      %p247 = por %p245, %p246
      %s249 = sadd.s32 %s248, 1
      %p252 = scmp.eq.s32.totalorder %s25, 1
      %p253 = scmp.ne.s32.totalorder %s248, %s250
      %p254 = scmp.eq.s32.totalorder %s25, 0
      %p255 = por %p253, %p254
      %p256 = scmp.ne.s32.totalorder %s248, %s250
      %p257 = scmp.eq.s32.totalorder %s30, 1
      %p258 = por %p256, %p257
      %p259 = scmp.ne.s32.totalorder %s250, %s251
      %p260 = scmp.eq.s32.totalorder %s30, 0
      %p261 = por %p259, %p260
      %p262 = scmp.ne.s32.totalorder %s250, %s251
      %p263 = scmp.eq.s32.totalorder %s31, 1
      %p264 = por %p262, %p263
      %p266 = scmp.ne.s32.totalorder %s251, %s265
      %p267 = scmp.eq.s32.totalorder %s31, 0
      %p268 = por %p266, %p267
      %s270 = sadd.s32 %s269, 1
      %p273 = scmp.eq.s32.totalorder %s25, 1
      %p274 = scmp.ne.s32.totalorder %s269, %s271
      %p275 = scmp.eq.s32.totalorder %s25, 0
      %p276 = por %p274, %p275
      %p277 = scmp.ne.s32.totalorder %s269, %s271
      %p278 = scmp.eq.s32.totalorder %s30, 1
      %p279 = por %p277, %p278
      %p280 = scmp.ne.s32.totalorder %s271, %s272
      %p281 = scmp.eq.s32.totalorder %s30, 0
      %p282 = por %p280, %p281
      %p283 = scmp.ne.s32.totalorder %s271, %s272
      %p284 = scmp.eq.s32.totalorder %s31, 1
      %p285 = por %p283, %p284
      %p287 = scmp.ne.s32.totalorder %s272, %s286
      %p288 = scmp.eq.s32.totalorder %s31, 0
      %p289 = por %p287, %p288
      %s291 = sadd.s32 %s290, 1
      %p294 = scmp.eq.s32.totalorder %s25, 1
      %p295 = scmp.ne.s32.totalorder %s290, %s292
      %p296 = scmp.eq.s32.totalorder %s25, 0
      %p297 = por %p295, %p296
      %p298 = scmp.ne.s32.totalorder %s290, %s292
      %p299 = scmp.eq.s32.totalorder %s30, 1
      %p300 = por %p298, %p299
      %p301 = scmp.ne.s32.totalorder %s292, %s293
      %p302 = scmp.eq.s32.totalorder %s30, 0
      %p303 = por %p301, %p302
      %p304 = scmp.ne.s32.totalorder %s292, %s293
      %p305 = scmp.eq.s32.totalorder %s31, 1
      %p306 = por %p304, %p305
      %p308 = scmp.ne.s32.totalorder %s293, %s307
      %p309 = scmp.eq.s32.totalorder %s31, 0
      %p310 = por %p308, %p309
      %s312 = sadd.s32 %s311, 1
      %p315 = scmp.eq.s32.totalorder %s25, 1
      %p316 = scmp.ne.s32.totalorder %s311, %s313
      %p317 = scmp.eq.s32.totalorder %s25, 0
      %p318 = por %p316, %p317
      %p319 = scmp.ne.s32.totalorder %s311, %s313
      %p320 = scmp.eq.s32.totalorder %s30, 1
      %p321 = por %p319, %p320
      %p322 = scmp.ne.s32.totalorder %s313, %s314
      %p323 = scmp.eq.s32.totalorder %s30, 0
      %p324 = por %p322, %p323
      %p325 = scmp.ne.s32.totalorder %s313, %s314
      %p326 = scmp.eq.s32.totalorder %s31, 1
      %p327 = por %p325, %p326
      %p329 = scmp.ne.s32.totalorder %s314, %s328
      %p330 = scmp.eq.s32.totalorder %s31, 0
      %p331 = por %p329, %p330
      %s332 = ssub.s32 %s25, %s32
      %p333 = scmp.eq.s32.totalorder %s332, 0
      %s335 = sadd.s32 %s334, 1
      %s336 = scalar_select %p333, %s334, %s335
      %p339 = pneg %p333
      %p340 = scmp.eq.s32.totalorder %s25, 1
      %p341 = por %p339, %p340
      %p342 = scmp.ne.s32.totalorder %s334, %s337
      %p343 = scmp.eq.s32.totalorder %s25, 0
      %p344 = por %p342, %p343
      %p345 = scmp.ne.s32.totalorder %s334, %s337
      %p346 = scmp.eq.s32.totalorder %s30, 1
      %p347 = por %p345, %p346
      %p348 = scmp.ne.s32.totalorder %s337, %s338
      %p349 = scmp.eq.s32.totalorder %s30, 0
      %p350 = por %p348, %p349
      %p351 = scmp.ne.s32.totalorder %s337, %s338
      %p352 = scmp.eq.s32.totalorder %s31, 1
      %p353 = por %p351, %p352
      %p355 = scmp.ne.s32.totalorder %s338, %s354
      %p356 = scmp.eq.s32.totalorder %s31, 0
      %p357 = por %p355, %p356
      %s358 = ssub.s32 %s25, %s32
      %p359 = scmp.eq.s32.totalorder %s358, 0
      %s361 = sadd.s32 %s360, 1
      %s362 = scalar_select %p359, %s360, %s361
      %p365 = pneg %p359
      %p366 = scmp.eq.s32.totalorder %s25, 1
      %p367 = por %p365, %p366
      %p368 = scmp.ne.s32.totalorder %s360, %s363
      %p369 = scmp.eq.s32.totalorder %s25, 0
      %p370 = por %p368, %p369
      %p371 = scmp.ne.s32.totalorder %s360, %s363
      %p372 = scmp.eq.s32.totalorder %s30, 1
      %p373 = por %p371, %p372
      %p374 = scmp.ne.s32.totalorder %s363, %s364
      %p375 = scmp.eq.s32.totalorder %s30, 0
      %p376 = por %p374, %p375
      %p377 = scmp.ne.s32.totalorder %s363, %s364
      %p378 = scmp.eq.s32.totalorder %s31, 1
      %p379 = por %p377, %p378
      %p381 = scmp.ne.s32.totalorder %s364, %s380
      %p382 = scmp.eq.s32.totalorder %s31, 0
      %p383 = por %p381, %p382
      %p384 = scmp.le.s32.totalorder 1, %s25
      %p385 = scmp.lt.s32.totalorder %s25, 3
      %p386 = pnand %p384, %p385
      %p387 = pneg %p386
      // Predicated region
      $region9: #{word_bert_encoder_forward.1} parent=5 // pred_check
        _
      $region10: #{word_bert_encoder_forward.1} parent=5 // pred_check_branch
        %389 = sbr.rel (%p386) target = $region12
      $region11: #{word_bert_encoder_forward.1} parent=5 // pred_region
        %s390 = ssub.s32 %s25, 1
        // Predicated region
        $region13: #{word_bert_encoder_forward.1} parent=11 // pred_check
          %p391 = pneg %p72
        $region14: #{word_bert_encoder_forward.1} parent=11 // pred_check_branch
          %393 = sbr.rel (%p391) target = $region16
        $region15: #{word_bert_encoder_forward.1} parent=11 // pred_region
          _
        $region16: #{word_bert_encoder_forward.1} parent=11 // pred_fallthru
          _
        // Predicated region
        $region17: #{word_bert_encoder_forward.1} parent=11 // pred_check
          %p394 = pneg %p93
        $region18: #{word_bert_encoder_forward.1} parent=11 // pred_check_branch
          %396 = sbr.rel (%p394) target = $region20
        $region19: #{word_bert_encoder_forward.1} parent=11 // pred_region
          _
        $region20: #{word_bert_encoder_forward.1} parent=11 // pred_fallthru
          _
        // Predicated region
        $region21: #{word_bert_encoder_forward.1} parent=11 // pred_check
          %p397 = pneg %p114
        $region22: #{word_bert_encoder_forward.1} parent=11 // pred_check_branch
          %399 = sbr.rel (%p397) target = $region24
        $region23: #{word_bert_encoder_forward.1} parent=11 // pred_region
          _
        $region24: #{word_bert_encoder_forward.1} parent=11 // pred_fallthru
          _
        // Predicated region
        $region25: #{word_bert_encoder_forward.1} parent=11 // pred_check
          %p400 = pneg %p135
        $region26: #{word_bert_encoder_forward.1} parent=11 // pred_check_branch
          %402 = sbr.rel (%p400) target = $region28
        $region27: #{word_bert_encoder_forward.1} parent=11 // pred_region
          _
        $region28: #{word_bert_encoder_forward.1} parent=11 // pred_fallthru
          _
        // Predicated region
        $region29: #{word_bert_encoder_forward.1} parent=11 // pred_check
          %p403 = pneg %p156
        $region30: #{word_bert_encoder_forward.1} parent=11 // pred_check_branch
          %405 = sbr.rel (%p403) target = $region32
        $region31: #{word_bert_encoder_forward.1} parent=11 // pred_region
          _
        $region32: #{word_bert_encoder_forward.1} parent=11 // pred_fallthru
          _
        // Predicated region
        $region33: #{word_bert_encoder_forward.1} parent=11 // pred_check
          %p406 = pneg %p177
        $region34: #{word_bert_encoder_forward.1} parent=11 // pred_check_branch
          %408 = sbr.rel (%p406) target = $region36
        $region35: #{word_bert_encoder_forward.1} parent=11 // pred_region
          _
        $region36: #{word_bert_encoder_forward.1} parent=11 // pred_fallthru
          _
        // Predicated region
        $region37: #{word_bert_encoder_forward.1} parent=11 // pred_check
          %p409 = pneg %p198
        $region38: #{word_bert_encoder_forward.1} parent=11 // pred_check_branch
          %411 = sbr.rel (%p409) target = $region40
        $region39: #{word_bert_encoder_forward.1} parent=11 // pred_region
          _
        $region40: #{word_bert_encoder_forward.1} parent=11 // pred_fallthru
          _
        // Predicated region
        $region41: #{word_bert_encoder_forward.1} parent=11 // pred_check
          %p412 = pneg %p219
        $region42: #{word_bert_encoder_forward.1} parent=11 // pred_check_branch
          %414 = sbr.rel (%p412) target = $region44
        $region43: #{word_bert_encoder_forward.1} parent=11 // pred_region
          _
        $region44: #{word_bert_encoder_forward.1} parent=11 // pred_fallthru
          _
        // Predicated region
        $region45: #{word_bert_encoder_forward.1} parent=11 // pred_check
          %p415 = pneg %p240
        $region46: #{word_bert_encoder_forward.1} parent=11 // pred_check_branch
          %417 = sbr.rel (%p415) target = $region48
        $region47: #{word_bert_encoder_forward.1} parent=11 // pred_region
          _
        $region48: #{word_bert_encoder_forward.1} parent=11 // pred_fallthru
          _
        // Predicated region
        $region49: #{word_bert_encoder_forward.1} parent=11 // pred_check
          %p418 = pneg %p261
        $region50: #{word_bert_encoder_forward.1} parent=11 // pred_check_branch
          %420 = sbr.rel (%p418) target = $region52
        $region51: #{word_bert_encoder_forward.1} parent=11 // pred_region
          _
        $region52: #{word_bert_encoder_forward.1} parent=11 // pred_fallthru
          _
        // Predicated region
        $region53: #{word_bert_encoder_forward.1} parent=11 // pred_check
          %p421 = pneg %p282
        $region54: #{word_bert_encoder_forward.1} parent=11 // pred_check_branch
          %423 = sbr.rel (%p421) target = $region56
        $region55: #{word_bert_encoder_forward.1} parent=11 // pred_region
          _
        $region56: #{word_bert_encoder_forward.1} parent=11 // pred_fallthru
          _
        // Predicated region
        $region57: #{word_bert_encoder_forward.1} parent=11 // pred_check
          %p424 = pneg %p303
        $region58: #{word_bert_encoder_forward.1} parent=11 // pred_check_branch
          %426 = sbr.rel (%p424) target = $region60
        $region59: #{word_bert_encoder_forward.1} parent=11 // pred_region
          _
        $region60: #{word_bert_encoder_forward.1} parent=11 // pred_fallthru
          _
        // Predicated region
        $region61: #{word_bert_encoder_forward.1} parent=11 // pred_check
          %p427 = pneg %p324
        $region62: #{word_bert_encoder_forward.1} parent=11 // pred_check_branch
          %429 = sbr.rel (%p427) target = $region64
        $region63: #{word_bert_encoder_forward.1} parent=11 // pred_region
          _
        $region64: #{word_bert_encoder_forward.1} parent=11 // pred_fallthru
          _
      $region12: #{word_bert_encoder_forward.1} parent=5 // pred_fallthru
        _
      %p430 = scmp.lt.s32.totalorder %s25, 2
      // Predicated region
      $region65: #{word_bert_encoder_forward.1} parent=5 // pred_check
        %p431 = pneg %p430
      $region66: #{word_bert_encoder_forward.1} parent=5 // pred_check_branch
        %433 = sbr.rel (%p431) target = $region68
      $region67: #{word_bert_encoder_forward.1} parent=5 // pred_region
        // Predicated region
        $region69: #{word_bert_encoder_forward.1} parent=67 // pred_check
          %p434 = pneg %p45
        $region70: #{word_bert_encoder_forward.1} parent=67 // pred_check_branch
          %436 = sbr.rel (%p434) target = $region72
        $region71: #{word_bert_encoder_forward.1} parent=67 // pred_region
          %p437 = scmp.lt.s32.totalorder %s25, 1
          %s438 = scalar_select %p437, %s25, 1
          %s439 = smul.addr %s438, 4
          %s440 = scalar_lea.vmem %s0, %s439
        $region72: #{word_bert_encoder_forward.1} parent=67 // pred_fallthru
          _
      $region68: #{word_bert_encoder_forward.1} parent=5 // pred_fallthru
        _
      %p441 = scmp.le.s32.totalorder 1, %s25
      %p442 = scmp.lt.s32.totalorder %s25, 3
      %p443 = pnand %p441, %p442
      %p444 = pneg %p443
      // Predicated region
      $region73: #{word_bert_encoder_forward.1} parent=5 // pred_check
        _
      $region74: #{word_bert_encoder_forward.1} parent=5 // pred_check_branch
        %446 = sbr.rel (%p443) target = $region76
      $region75: #{word_bert_encoder_forward.1} parent=5 // pred_region
        %s447 = ssub.s32 %s25, 1
        %p448 = scmp.lt.s32.totalorder %s30, 1
        %s449 = scalar_select %p448, %s30, 1
        %s450 = smul.addr %s449, 4
        %s451 = scalar_lea.vmem %s0, %s450
        %p452 = pneg %p51
        %p453 = pneg %p48
        %p454 = pneg %p72
        %p455 = pneg %p69
        %p456 = pneg %p93
        %p457 = pneg %p90
        %p458 = pneg %p114
        %p459 = pneg %p111
        %p460 = pneg %p135
        %p461 = pneg %p132
        %p462 = pneg %p156
        %p463 = pneg %p153
        %p464 = pneg %p177
        %p465 = pneg %p174
        %p466 = pneg %p198
        %p467 = pneg %p195
        %p468 = pneg %p219
        %p469 = pneg %p216
        %p470 = pneg %p240
        %p471 = pneg %p237
        %p472 = pneg %p261
        %p473 = pneg %p258
        %p474 = pneg %p282
        %p475 = pneg %p279
        %p476 = pneg %p303
        %p477 = pneg %p300
        %p478 = pneg %p324
        %p479 = pneg %p321
        %p480 = pneg %p350
        %p481 = pneg %p347
        %p482 = scmp.lt.s32.totalorder %s30, 1
        %s483 = scalar_select %p482, %s30, 1
        %s484 = smul.addr %s483, 8
        %s485 = scalar_lea.vmem %s14, %s484
        %p486 = pneg %p376
        %p487 = pneg %p373
        %s488 = sand.u32 %s363, 1
        %s489 = scalar_lea.sflag [#allocation3], %s488
        %s490 = sand.u32 %s363, 1
        %s491 = scalar_lea.vmem [#allocation2], %s490
        %p492 = scmp.lt.s32.totalorder %s30, 1
        %s493 = scalar_select %p492, %s30, 1
        %s494 = smul.addr %s493, 4
        %s495 = scalar_lea.vmem %s0, %s494
        %p496 = scmp.lt.s32.totalorder %s30, 1
        %s497 = scalar_select %p496, %s30, 1
        %s498 = smul.addr %s497, 8
        %s499 = scalar_lea.vmem %s14, %s498
        %v501 = vld [vmem:[%s1] sm:$0x1]
        %v502 = vunpack.c.l.bf16 %v501
        %v503 = vld [vmem:[%s495] sm:$0xf]
        %v504 = vunpack.c.l.bf16 %v503
        %vm505 = vcmask 261120
        %v506 = vsel %vm505, %v504, 0.0
        %507 = vadd.xlane.f32.xlu0 %v506
        %v508 = vpop.xlane.xlu0 %507
        %v509 = vrcp.pop 32.0
        %v510 = vmul.f32 %v508, %v509
        %v511 = vsub.f32 %v504, %v510
        %v512 = vmul.f32 %v511, %v511
        %v513 = vsel %vm505, %v512, 0.0
        %514 = vadd.xlane.f32.xlu0 %v513
        %v515 = vpop.xlane.xlu0 %514
        %v516 = vmul.f32 %v515, %v509
        %v517 = vadd.f32 %v516, 1e-12
        %v518 = vrsqrt.pop %v517
        %v519 = vmul.f32 %v511, %v518
        %v520 = vlaneseq
        %v521 = vshrl.u32 %v520, 7
        %v522 = vsub.s32 0, %v521
        %v523 = vrot.slane %v502, %v522
        %v524 = vmul.f32 %v519, %v523
        %v525 = vlaneseq
        %v526 = vshrl.u32 %v525, 7
        %v527 = vsub.s32 1, %v526
        %v528 = vrot.slane %v502, %v527
        %v529 = vadd.f32 %v524, %v528
        %v530 = vpack.c.bf16 %v529, %v529
        %v531 = vld [vmem:[%s2] sm:$0xf]
        %v532 = vld [vmem:[%s2 + $0x4] sm:$0xf]
        %v533 = vld [vmem:[%s2 + $0x8] sm:$0xf]
        %v534 = vld [vmem:[%s2 + $0xc] sm:$0xf]
        %v535 = vld [vmem:[%s3] sm:$0x1]
        %v536 = vunpack.c.l.bf16 %v535
        %v537 = vlaneseq
        %v538 = vshrl.u32 %v537, 7
        %v539 = vsub.s32 0, %v538
        %v540 = vrot.slane %v536, %v539
        %v545 = vunpack.c.l.b16 %v531
        %v546 = vunpack.c.l.b16 %v532
        %v547 = vunpack.c.l.b16 %v533
        %v548 = vunpack.c.l.b16 %v534
        %v549 = vpack.c.b16 %v546, %v545
        %v550 = vpack.c.b16 %v548, %v547
        %v554 = vsel %vm505, %v530, 0
        %556 = vmatprep.subr.bf16.mxu0 0
        %557 = vmatpush1.bf16.msra.mxu0 %v549
        %558 = vmatprep.subr.bf16.mxu0 0
        %559 = vmatpush1.bf16.msra.mxu0 %v550
        %560 = vmatprep.subr.bf16.mxu0 0
        %561 = vmatpush1.bf16.msra.mxu0 0
        %562 = vmatprep.subr.bf16.mxu0 0
        %563 = vmatpush1.bf16.msra.mxu0 0
        %564 = vmatprep.subr.bf16.mxu0 0
        %565 = vmatpush1.bf16.msra.mxu0 0
        %566 = vmatprep.subr.bf16.mxu0 0
        %567 = vmatpush1.bf16.msra.mxu0 0
        %568 = vmatprep.subr.bf16.mxu0 0
        %569 = vmatpush1.bf16.msra.mxu0 0
        %570 = vmatprep.subr.bf16.mxu0 0
        %571 = vmatpush1.bf16.msra.mxu0 0
        %572 = vmatprep.subr.bf16.mxu0 0
        %573 = vmatpush1.bf16.msra.mxu0 0
        %574 = vmatprep.subr.bf16.mxu0 0
        %575 = vmatpush1.bf16.msra.mxu0 0
        %576 = vmatprep.subr.bf16.mxu0 0
        %577 = vmatpush1.bf16.msra.mxu0 0
        %578 = vmatprep.subr.bf16.mxu0 0
        %579 = vmatpush1.bf16.msra.mxu0 0
        %580 = vmatprep.subr.bf16.mxu0 0
        %581 = vmatpush1.bf16.msra.mxu0 0
        %582 = vmatprep.subr.bf16.mxu0 0
        %583 = vmatpush1.bf16.msra.mxu0 0
        %584 = vmatprep.subr.bf16.mxu0 0
        %585 = vmatpush1.bf16.msra.mxu0 0
        %586 = vmatprep.subr.bf16.mxu0 0
        %587 = vmatpush1.bf16.msra.mxu0 0
        %588 = vmatprep.mubr.bf16.mxu0 0
        %589 = vmatmul.mubr.bf16.gmra.mrb[0].mxu0 %v554
        %v590 = vpop.f32.mrb[0].mxu0
        %v591 = vadd.f32 %v540, %v590
        %v592 = vpop.f32.mrb[0].mxu0
        %v593 = vpop.f32.mrb[0].mxu0
        %v594 = vpop.f32.mrb[0].mxu0
        %595 = vdwg.mxu0
        %v596 = vpack.c.bf16 %v591, %v591
        %598 = vrot.lane.b32.xlu0 %v596, 96
        %v599 = vpop.permute.xlu0 %598
        %vm600 = vcmask 64512
        %v602 = vsel %vm600, %v596, 0
        %v605 = vsel %vm600, %v599, 0
        %607 = vmatprep.subr.bf16.mxu0 0
        %608 = vmatpush1.bf16.xpose.msra.mxu0 %v605
        %609 = vmatprep.subr.bf16.mxu0 0
        %610 = vmatpush1.bf16.xpose.msra.mxu0 0
        %611 = vmatprep.subr.bf16.mxu0 0
        %612 = vmatpush1.bf16.xpose.msra.mxu0 0
        %613 = vmatprep.subr.bf16.mxu0 0
        %614 = vmatpush1.bf16.xpose.msra.mxu0 0
        %615 = vmatprep.subr.bf16.mxu0 0
        %616 = vmatpush1.bf16.xpose.msra.mxu0 0
        %617 = vmatprep.subr.bf16.mxu0 0
        %618 = vmatpush1.bf16.xpose.msra.mxu0 0
        %619 = vmatprep.subr.bf16.mxu0 0
        %620 = vmatpush1.bf16.xpose.msra.mxu0 0
        %621 = vmatprep.subr.bf16.mxu0 0
        %622 = vmatpush1.bf16.xpose.msra.mxu0 0
        %623 = vmatprep.subr.bf16.mxu0 0
        %624 = vmatpush1.bf16.xpose.msra.mxu0 0
        %625 = vmatprep.subr.bf16.mxu0 0
        %626 = vmatpush1.bf16.xpose.msra.mxu0 0
        %627 = vmatprep.subr.bf16.mxu0 0
        %628 = vmatpush1.bf16.xpose.msra.mxu0 0
        %629 = vmatprep.subr.bf16.mxu0 0
        %630 = vmatpush1.bf16.xpose.msra.mxu0 0
        %631 = vmatprep.subr.bf16.mxu0 0
        %632 = vmatpush1.bf16.xpose.msra.mxu0 0
        %633 = vmatprep.subr.bf16.mxu0 0
        %634 = vmatpush1.bf16.xpose.msra.mxu0 0
        %635 = vmatprep.subr.bf16.mxu0 0
        %636 = vmatpush1.bf16.xpose.msra.mxu0 0
        %637 = vmatprep.subr.bf16.mxu0 0
        %638 = vmatpush1.bf16.xpose.msra.mxu0 0
        %639 = vmatprep.mubr.bf16.mxu0 0
        %640 = vmatmul.mubr.bf16.gmra.mrb[0].mxu0 %v602
        %v641 = vpop.f32.mrb[0].mxu0
        %v642 = vadd.f32 0.0, %v641
        %v643 = vpop.f32.mrb[0].mxu0
        %v644 = vpop.f32.mrb[0].mxu0
        %v645 = vpop.f32.mrb[0].mxu0
        %646 = vdwg.mxu0
        %v647 = vmul.f32 %v642, 0.35355338
        %v648 = vsel %vm600, %v647, -inf
        %649 = vmax.xlane.f32.xlu0 %v648
        %v650 = vpop.xlane.xlu0 %649
        %v651 = vsub.f32 %v647, %v650
        %v652 = vmul.f32 %v651, 1.442695
        %v653 = vpow.pop %v652
        %v654 = vsel %vm600, %v653, 0.0
        %655 = vadd.xlane.f32.xlu0 %v654
        %v656 = vpop.xlane.xlu0 %655
        %v657 = vrcp.pop %v656
        %v658 = vmul.f32 %v653, %v657
        %v659 = vpack.c.bf16 %v658, %v658
        %660 = vrot.lane.b32.xlu0 %v596, 64
        %v661 = vpop.permute.xlu0 %660
        %v663 = vsel %vm600, %v659, 0
        %vm665 = vcmask 1043456
        %v667 = vsel %vm665, %v661, 0
        %669 = vmatprep.subr.bf16.mxu0 0
        %670 = vmatpush1.bf16.msra.mxu0 %v667
        %671 = vmatprep.subr.bf16.mxu0 0
        %672 = vmatpush1.bf16.msra.mxu0 0
        %673 = vmatprep.subr.bf16.mxu0 0
        %674 = vmatpush1.bf16.msra.mxu0 0
        %675 = vmatprep.subr.bf16.mxu0 0
        %676 = vmatpush1.bf16.msra.mxu0 0
        %677 = vmatprep.subr.bf16.mxu0 0
        %678 = vmatpush1.bf16.msra.mxu0 0
        %679 = vmatprep.subr.bf16.mxu0 0
        %680 = vmatpush1.bf16.msra.mxu0 0
        %681 = vmatprep.subr.bf16.mxu0 0
        %682 = vmatpush1.bf16.msra.mxu0 0
        %683 = vmatprep.subr.bf16.mxu0 0
        %684 = vmatpush1.bf16.msra.mxu0 0
        %685 = vmatprep.subr.bf16.mxu0 0
        %686 = vmatpush1.bf16.msra.mxu0 0
        %687 = vmatprep.subr.bf16.mxu0 0
        %688 = vmatpush1.bf16.msra.mxu0 0
        %689 = vmatprep.subr.bf16.mxu0 0
        %690 = vmatpush1.bf16.msra.mxu0 0
        %691 = vmatprep.subr.bf16.mxu0 0
        %692 = vmatpush1.bf16.msra.mxu0 0
        %693 = vmatprep.subr.bf16.mxu0 0
        %694 = vmatpush1.bf16.msra.mxu0 0
        %695 = vmatprep.subr.bf16.mxu0 0
        %696 = vmatpush1.bf16.msra.mxu0 0
        %697 = vmatprep.subr.bf16.mxu0 0
        %698 = vmatpush1.bf16.msra.mxu0 0
        %699 = vmatprep.subr.bf16.mxu0 0
        %700 = vmatpush1.bf16.msra.mxu0 0
        %701 = vmatprep.mubr.bf16.mxu0 0
        %702 = vmatmul.mubr.bf16.gmra.mrb[0].mxu0 %v663
        %v703 = vpop.f32.mrb[0].mxu0
        %v704 = vadd.f32 0.0, %v703
        %v705 = vpop.f32.mrb[0].mxu0
        %v706 = vpop.f32.mrb[0].mxu0
        %v707 = vpop.f32.mrb[0].mxu0
        %708 = vdwg.mxu0
        %v709 = vpack.c.bf16 %v704, %v704
        %v710 = vld [vmem:[%s4] sm:$0xf]
        %711 = vrot.lane.b32.xlu0 %v596, 120
        %v712 = vpop.permute.xlu0 %711
        %713 = vrot.lane.b32.xlu0 %v596, 88
        %v714 = vpop.permute.xlu0 %713
        %v716 = vsel %vm600, %v712, 0
        %v719 = vsel %vm600, %v714, 0
        %721 = vmatprep.subr.bf16.mxu0 0
        %722 = vmatpush1.bf16.xpose.msra.mxu0 %v719
        %723 = vmatprep.subr.bf16.mxu0 0
        %724 = vmatpush1.bf16.xpose.msra.mxu0 0
        %725 = vmatprep.subr.bf16.mxu0 0
        %726 = vmatpush1.bf16.xpose.msra.mxu0 0
        %727 = vmatprep.subr.bf16.mxu0 0
        %728 = vmatpush1.bf16.xpose.msra.mxu0 0
        %729 = vmatprep.subr.bf16.mxu0 0
        %730 = vmatpush1.bf16.xpose.msra.mxu0 0
        %731 = vmatprep.subr.bf16.mxu0 0
        %732 = vmatpush1.bf16.xpose.msra.mxu0 0
        %733 = vmatprep.subr.bf16.mxu0 0
        %734 = vmatpush1.bf16.xpose.msra.mxu0 0
        %735 = vmatprep.subr.bf16.mxu0 0
        %736 = vmatpush1.bf16.xpose.msra.mxu0 0
        %737 = vmatprep.subr.bf16.mxu0 0
        %738 = vmatpush1.bf16.xpose.msra.mxu0 0
        %739 = vmatprep.subr.bf16.mxu0 0
        %740 = vmatpush1.bf16.xpose.msra.mxu0 0
        %741 = vmatprep.subr.bf16.mxu0 0
        %742 = vmatpush1.bf16.xpose.msra.mxu0 0
        %743 = vmatprep.subr.bf16.mxu0 0
        %744 = vmatpush1.bf16.xpose.msra.mxu0 0
        %745 = vmatprep.subr.bf16.mxu0 0
        %746 = vmatpush1.bf16.xpose.msra.mxu0 0
        %747 = vmatprep.subr.bf16.mxu0 0
        %748 = vmatpush1.bf16.xpose.msra.mxu0 0
        %749 = vmatprep.subr.bf16.mxu0 0
        %750 = vmatpush1.bf16.xpose.msra.mxu0 0
        %751 = vmatprep.subr.bf16.mxu0 0
        %752 = vmatpush1.bf16.xpose.msra.mxu0 0
        %753 = vmatprep.mubr.bf16.mxu0 0
        %754 = vmatmul.mubr.bf16.gmra.mrb[0].mxu0 %v716
        %v755 = vpop.f32.mrb[0].mxu0
        %v756 = vadd.f32 0.0, %v755
        %v757 = vpop.f32.mrb[0].mxu0
        %v758 = vpop.f32.mrb[0].mxu0
        %v759 = vpop.f32.mrb[0].mxu0
        %760 = vdwg.mxu0
        %v761 = vmul.f32 %v756, 0.35355338
        %v762 = vsel %vm600, %v761, -inf
        %763 = vmax.xlane.f32.xlu0 %v762
        %v764 = vpop.xlane.xlu0 %763
        %v765 = vsub.f32 %v761, %v764
        %v766 = vmul.f32 %v765, 1.442695
        %v767 = vpow.pop %v766
        %v768 = vsel %vm600, %v767, 0.0
        %769 = vadd.xlane.f32.xlu0 %v768
        %v770 = vpop.xlane.xlu0 %769
        %v771 = vrcp.pop %v770
        %v772 = vmul.f32 %v767, %v771
        %v773 = vpack.c.bf16 %v772, %v772
        %774 = vrot.lane.b32.xlu0 %v596, 56
        %v775 = vpop.permute.xlu0 %774
        %v777 = vsel %vm600, %v773, 0
        %v780 = vsel %vm665, %v775, 0
        %782 = vmatprep.subr.bf16.mxu0 0
        %783 = vmatpush1.bf16.msra.mxu0 %v780
        %784 = vmatprep.subr.bf16.mxu0 0
        %785 = vmatpush1.bf16.msra.mxu0 0
        %786 = vmatprep.subr.bf16.mxu0 0
        %787 = vmatpush1.bf16.msra.mxu0 0
        %788 = vmatprep.subr.bf16.mxu0 0
        %789 = vmatpush1.bf16.msra.mxu0 0
        %790 = vmatprep.subr.bf16.mxu0 0
        %791 = vmatpush1.bf16.msra.mxu0 0
        %792 = vmatprep.subr.bf16.mxu0 0
        %793 = vmatpush1.bf16.msra.mxu0 0
        %794 = vmatprep.subr.bf16.mxu0 0
        %795 = vmatpush1.bf16.msra.mxu0 0
        %796 = vmatprep.subr.bf16.mxu0 0
        %797 = vmatpush1.bf16.msra.mxu0 0
        %798 = vmatprep.subr.bf16.mxu0 0
        %799 = vmatpush1.bf16.msra.mxu0 0
        %800 = vmatprep.subr.bf16.mxu0 0
        %801 = vmatpush1.bf16.msra.mxu0 0
        %802 = vmatprep.subr.bf16.mxu0 0
        %803 = vmatpush1.bf16.msra.mxu0 0
        %804 = vmatprep.subr.bf16.mxu0 0
        %805 = vmatpush1.bf16.msra.mxu0 0
        %806 = vmatprep.subr.bf16.mxu0 0
        %807 = vmatpush1.bf16.msra.mxu0 0
        %808 = vmatprep.subr.bf16.mxu0 0
        %809 = vmatpush1.bf16.msra.mxu0 0
        %810 = vmatprep.subr.bf16.mxu0 0
        %811 = vmatpush1.bf16.msra.mxu0 0
        %812 = vmatprep.subr.bf16.mxu0 0
        %813 = vmatpush1.bf16.msra.mxu0 0
        %814 = vmatprep.mubr.bf16.mxu0 0
        %815 = vmatmul.mubr.bf16.gmra.mrb[0].mxu0 %v777
        %v816 = vpop.f32.mrb[0].mxu0
        %v817 = vadd.f32 0.0, %v816
        %v818 = vpop.f32.mrb[0].mxu0
        %v819 = vpop.f32.mrb[0].mxu0
        %v820 = vpop.f32.mrb[0].mxu0
        %821 = vdwg.mxu0
        %v822 = vpack.c.bf16 %v817, %v817
        %v823 = vld [vmem:[%s4 + $0x4] sm:$0xf]
        %v825 = vsel %vm600, %v822, 0
        %v828 = vsel %vm665, %v823, 0
        %830 = vmatprep.subr.bf16.mxu0 0
        %831 = vmatpush1.bf16.msra.mxu0 %v828
        %832 = vmatprep.subr.bf16.mxu0 0
        %833 = vmatpush1.bf16.msra.mxu0 0
        %834 = vmatprep.subr.bf16.mxu0 0
        %835 = vmatpush1.bf16.msra.mxu0 0
        %836 = vmatprep.subr.bf16.mxu0 0
        %837 = vmatpush1.bf16.msra.mxu0 0
        %838 = vmatprep.subr.bf16.mxu0 0
        %839 = vmatpush1.bf16.msra.mxu0 0
        %840 = vmatprep.subr.bf16.mxu0 0
        %841 = vmatpush1.bf16.msra.mxu0 0
        %842 = vmatprep.subr.bf16.mxu0 0
        %843 = vmatpush1.bf16.msra.mxu0 0
        %844 = vmatprep.subr.bf16.mxu0 0
        %845 = vmatpush1.bf16.msra.mxu0 0
        %846 = vmatprep.subr.bf16.mxu0 0
        %847 = vmatpush1.bf16.msra.mxu0 0
        %848 = vmatprep.subr.bf16.mxu0 0
        %849 = vmatpush1.bf16.msra.mxu0 0
        %850 = vmatprep.subr.bf16.mxu0 0
        %851 = vmatpush1.bf16.msra.mxu0 0
        %852 = vmatprep.subr.bf16.mxu0 0
        %853 = vmatpush1.bf16.msra.mxu0 0
        %854 = vmatprep.subr.bf16.mxu0 0
        %855 = vmatpush1.bf16.msra.mxu0 0
        %856 = vmatprep.subr.bf16.mxu0 0
        %857 = vmatpush1.bf16.msra.mxu0 0
        %858 = vmatprep.subr.bf16.mxu0 0
        %859 = vmatpush1.bf16.msra.mxu0 0
        %860 = vmatprep.subr.bf16.mxu0 0
        %861 = vmatpush1.bf16.msra.mxu0 0
        %862 = vmatprep.mubr.bf16.mxu0 0
        %863 = vmatmul.mubr.bf16.gmra.mrb[0].mxu0 %v825
        %v864 = vpop.f32.mrb[0].mxu0
        %v865 = vadd.f32 0.0, %v864
        %v866 = vpop.f32.mrb[0].mxu0
        %v867 = vpop.f32.mrb[0].mxu0
        %v868 = vpop.f32.mrb[0].mxu0
        %869 = vdwg.mxu0
        %v871 = vsel %vm600, %v709, 0
        %v874 = vsel %vm665, %v710, 0
        %876 = vmatprep.subr.bf16.mxu0 0
        %877 = vmatpush1.bf16.msra.mxu0 %v874
        %878 = vmatprep.subr.bf16.mxu0 0
        %879 = vmatpush1.bf16.msra.mxu0 0
        %880 = vmatprep.subr.bf16.mxu0 0
        %881 = vmatpush1.bf16.msra.mxu0 0
        %882 = vmatprep.subr.bf16.mxu0 0
        %883 = vmatpush1.bf16.msra.mxu0 0
        %884 = vmatprep.subr.bf16.mxu0 0
        %885 = vmatpush1.bf16.msra.mxu0 0
        %886 = vmatprep.subr.bf16.mxu0 0
        %887 = vmatpush1.bf16.msra.mxu0 0
        %888 = vmatprep.subr.bf16.mxu0 0
        %889 = vmatpush1.bf16.msra.mxu0 0
        %890 = vmatprep.subr.bf16.mxu0 0
        %891 = vmatpush1.bf16.msra.mxu0 0
        %892 = vmatprep.subr.bf16.mxu0 0
        %893 = vmatpush1.bf16.msra.mxu0 0
        %894 = vmatprep.subr.bf16.mxu0 0
        %895 = vmatpush1.bf16.msra.mxu0 0
        %896 = vmatprep.subr.bf16.mxu0 0
        %897 = vmatpush1.bf16.msra.mxu0 0
        %898 = vmatprep.subr.bf16.mxu0 0
        %899 = vmatpush1.bf16.msra.mxu0 0
        %900 = vmatprep.subr.bf16.mxu0 0
        %901 = vmatpush1.bf16.msra.mxu0 0
        %902 = vmatprep.subr.bf16.mxu0 0
        %903 = vmatpush1.bf16.msra.mxu0 0
        %904 = vmatprep.subr.bf16.mxu0 0
        %905 = vmatpush1.bf16.msra.mxu0 0
        %906 = vmatprep.subr.bf16.mxu0 0
        %907 = vmatpush1.bf16.msra.mxu0 0
        %908 = vmatprep.mubr.bf16.mxu0 0
        %909 = vmatmul.mubr.bf16.gmra.mrb[0].mxu0 %v871
        %v910 = vpop.f32.mrb[0].mxu0
        %v911 = vadd.f32 %v865, %v910
        %v912 = vpop.f32.mrb[0].mxu0
        %v913 = vpop.f32.mrb[0].mxu0
        %v914 = vpop.f32.mrb[0].mxu0
        %915 = vdwg.mxu0
        %916 = vrot.lane.b32.xlu0 %v596, 112
        %v917 = vpop.permute.xlu0 %916
        %918 = vrot.lane.b32.xlu0 %v596, 80
        %v919 = vpop.permute.xlu0 %918
        %v921 = vsel %vm600, %v917, 0
        %v924 = vsel %vm600, %v919, 0
        %926 = vmatprep.subr.bf16.mxu0 0
        %927 = vmatpush1.bf16.xpose.msra.mxu0 %v924
        %928 = vmatprep.subr.bf16.mxu0 0
        %929 = vmatpush1.bf16.xpose.msra.mxu0 0
        %930 = vmatprep.subr.bf16.mxu0 0
        %931 = vmatpush1.bf16.xpose.msra.mxu0 0
        %932 = vmatprep.subr.bf16.mxu0 0
        %933 = vmatpush1.bf16.xpose.msra.mxu0 0
        %934 = vmatprep.subr.bf16.mxu0 0
        %935 = vmatpush1.bf16.xpose.msra.mxu0 0
        %936 = vmatprep.subr.bf16.mxu0 0
        %937 = vmatpush1.bf16.xpose.msra.mxu0 0
        %938 = vmatprep.subr.bf16.mxu0 0
        %939 = vmatpush1.bf16.xpose.msra.mxu0 0
        %940 = vmatprep.subr.bf16.mxu0 0
        %941 = vmatpush1.bf16.xpose.msra.mxu0 0
        %942 = vmatprep.subr.bf16.mxu0 0
        %943 = vmatpush1.bf16.xpose.msra.mxu0 0
        %944 = vmatprep.subr.bf16.mxu0 0
        %945 = vmatpush1.bf16.xpose.msra.mxu0 0
        %946 = vmatprep.subr.bf16.mxu0 0
        %947 = vmatpush1.bf16.xpose.msra.mxu0 0
        %948 = vmatprep.subr.bf16.mxu0 0
        %949 = vmatpush1.bf16.xpose.msra.mxu0 0
        %950 = vmatprep.subr.bf16.mxu0 0
        %951 = vmatpush1.bf16.xpose.msra.mxu0 0
        %952 = vmatprep.subr.bf16.mxu0 0
        %953 = vmatpush1.bf16.xpose.msra.mxu0 0
        %954 = vmatprep.subr.bf16.mxu0 0
        %955 = vmatpush1.bf16.xpose.msra.mxu0 0
        %956 = vmatprep.subr.bf16.mxu0 0
        %957 = vmatpush1.bf16.xpose.msra.mxu0 0
        %958 = vmatprep.mubr.bf16.mxu0 0
        %959 = vmatmul.mubr.bf16.gmra.mrb[0].mxu0 %v921
        %v960 = vpop.f32.mrb[0].mxu0
        %v961 = vadd.f32 0.0, %v960
        %v962 = vpop.f32.mrb[0].mxu0
        %v963 = vpop.f32.mrb[0].mxu0
        %v964 = vpop.f32.mrb[0].mxu0
        %965 = vdwg.mxu0
        %v966 = vmul.f32 %v961, 0.35355338
        %v967 = vsel %vm600, %v966, -inf
        %968 = vmax.xlane.f32.xlu0 %v967
        %v969 = vpop.xlane.xlu0 %968
        %v970 = vsub.f32 %v966, %v969
        %v971 = vmul.f32 %v970, 1.442695
        %v972 = vpow.pop %v971
        %v973 = vsel %vm600, %v972, 0.0
        %974 = vadd.xlane.f32.xlu0 %v973
        %v975 = vpop.xlane.xlu0 %974
        %v976 = vrcp.pop %v975
        %v977 = vmul.f32 %v972, %v976
        %v978 = vpack.c.bf16 %v977, %v977
        %979 = vrot.lane.b32.xlu0 %v596, 48
        %v980 = vpop.permute.xlu0 %979
        %v982 = vsel %vm600, %v978, 0
        %v985 = vsel %vm665, %v980, 0
        %987 = vmatprep.subr.bf16.mxu0 0
        %988 = vmatpush1.bf16.msra.mxu0 %v985
        %989 = vmatprep.subr.bf16.mxu0 0
        %990 = vmatpush1.bf16.msra.mxu0 0
        %991 = vmatprep.subr.bf16.mxu0 0
        %992 = vmatpush1.bf16.msra.mxu0 0
        %993 = vmatprep.subr.bf16.mxu0 0
        %994 = vmatpush1.bf16.msra.mxu0 0
        %995 = vmatprep.subr.bf16.mxu0 0
        %996 = vmatpush1.bf16.msra.mxu0 0
        %997 = vmatprep.subr.bf16.mxu0 0
        %998 = vmatpush1.bf16.msra.mxu0 0
        %999 = vmatprep.subr.bf16.mxu0 0
        %1000 = vmatpush1.bf16.msra.mxu0 0
        %1001 = vmatprep.subr.bf16.mxu0 0
        %1002 = vmatpush1.bf16.msra.mxu0 0
        %1003 = vmatprep.subr.bf16.mxu0 0
        %1004 = vmatpush1.bf16.msra.mxu0 0
        %1005 = vmatprep.subr.bf16.mxu0 0
        %1006 = vmatpush1.bf16.msra.mxu0 0
        %1007 = vmatprep.subr.bf16.mxu0 0
        %1008 = vmatpush1.bf16.msra.mxu0 0
        %1009 = vmatprep.subr.bf16.mxu0 0
        %1010 = vmatpush1.bf16.msra.mxu0 0
        %1011 = vmatprep.subr.bf16.mxu0 0
        %1012 = vmatpush1.bf16.msra.mxu0 0
        %1013 = vmatprep.subr.bf16.mxu0 0
        %1014 = vmatpush1.bf16.msra.mxu0 0
        %1015 = vmatprep.subr.bf16.mxu0 0
        %1016 = vmatpush1.bf16.msra.mxu0 0
        %1017 = vmatprep.subr.bf16.mxu0 0
        %1018 = vmatpush1.bf16.msra.mxu0 0
        %1019 = vmatprep.mubr.bf16.mxu0 0
        %1020 = vmatmul.mubr.bf16.gmra.mrb[0].mxu0 %v982
        %v1021 = vpop.f32.mrb[0].mxu0
        %v1022 = vadd.f32 0.0, %v1021
        %v1023 = vpop.f32.mrb[0].mxu0
        %v1024 = vpop.f32.mrb[0].mxu0
        %v1025 = vpop.f32.mrb[0].mxu0
        %1026 = vdwg.mxu0
        %v1027 = vpack.c.bf16 %v1022, %v1022
        %v1028 = vld [vmem:[%s4 + $0x8] sm:$0xf]
        %v1030 = vsel %vm600, %v1027, 0
        %v1033 = vsel %vm665, %v1028, 0
        %1035 = vmatprep.subr.bf16.mxu0 0
        %1036 = vmatpush1.bf16.msra.mxu0 %v1033
        %1037 = vmatprep.subr.bf16.mxu0 0
        %1038 = vmatpush1.bf16.msra.mxu0 0
        %1039 = vmatprep.subr.bf16.mxu0 0
        %1040 = vmatpush1.bf16.msra.mxu0 0
        %1041 = vmatprep.subr.bf16.mxu0 0
        %1042 = vmatpush1.bf16.msra.mxu0 0
        %1043 = vmatprep.subr.bf16.mxu0 0
        %1044 = vmatpush1.bf16.msra.mxu0 0
        %1045 = vmatprep.subr.bf16.mxu0 0
        %1046 = vmatpush1.bf16.msra.mxu0 0
        %1047 = vmatprep.subr.bf16.mxu0 0
        %1048 = vmatpush1.bf16.msra.mxu0 0
        %1049 = vmatprep.subr.bf16.mxu0 0
        %1050 = vmatpush1.bf16.msra.mxu0 0
        %1051 = vmatprep.subr.bf16.mxu0 0
        %1052 = vmatpush1.bf16.msra.mxu0 0
        %1053 = vmatprep.subr.bf16.mxu0 0
        %1054 = vmatpush1.bf16.msra.mxu0 0
        %1055 = vmatprep.subr.bf16.mxu0 0
        %1056 = vmatpush1.bf16.msra.mxu0 0
        %1057 = vmatprep.subr.bf16.mxu0 0
        %1058 = vmatpush1.bf16.msra.mxu0 0
        %1059 = vmatprep.subr.bf16.mxu0 0
        %1060 = vmatpush1.bf16.msra.mxu0 0
        %1061 = vmatprep.subr.bf16.mxu0 0
        %1062 = vmatpush1.bf16.msra.mxu0 0
        %1063 = vmatprep.subr.bf16.mxu0 0
        %1064 = vmatpush1.bf16.msra.mxu0 0
        %1065 = vmatprep.subr.bf16.mxu0 0
        %1066 = vmatpush1.bf16.msra.mxu0 0
        %1067 = vmatprep.mubr.bf16.mxu0 0
        %1068 = vmatmul.mubr.bf16.gmra.mrb[0].mxu0 %v1030
        %v1069 = vpop.f32.mrb[0].mxu0
        %v1070 = vadd.f32 0.0, %v1069
        %v1071 = vpop.f32.mrb[0].mxu0
        %v1072 = vpop.f32.mrb[0].mxu0
        %v1073 = vpop.f32.mrb[0].mxu0
        %1074 = vdwg.mxu0
        %v1075 = vadd.f32 %v911, %v1070
        %1076 = vrot.lane.b32.xlu0 %v596, 104
        %v1077 = vpop.permute.xlu0 %1076
        %1078 = vrot.lane.b32.xlu0 %v596, 72
        %v1079 = vpop.permute.xlu0 %1078
        %v1081 = vsel %vm600, %v1077, 0
        %v1084 = vsel %vm600, %v1079, 0
        %1086 = vmatprep.subr.bf16.mxu0 0
        %1087 = vmatpush1.bf16.xpose.msra.mxu0 %v1084
        %1088 = vmatprep.subr.bf16.mxu0 0
        %1089 = vmatpush1.bf16.xpose.msra.mxu0 0
        %1090 = vmatprep.subr.bf16.mxu0 0
        %1091 = vmatpush1.bf16.xpose.msra.mxu0 0
        %1092 = vmatprep.subr.bf16.mxu0 0
        %1093 = vmatpush1.bf16.xpose.msra.mxu0 0
        %1094 = vmatprep.subr.bf16.mxu0 0
        %1095 = vmatpush1.bf16.xpose.msra.mxu0 0
        %1096 = vmatprep.subr.bf16.mxu0 0
        %1097 = vmatpush1.bf16.xpose.msra.mxu0 0
        %1098 = vmatprep.subr.bf16.mxu0 0
        %1099 = vmatpush1.bf16.xpose.msra.mxu0 0
        %1100 = vmatprep.subr.bf16.mxu0 0
        %1101 = vmatpush1.bf16.xpose.msra.mxu0 0
        %1102 = vmatprep.subr.bf16.mxu0 0
        %1103 = vmatpush1.bf16.xpose.msra.mxu0 0
        %1104 = vmatprep.subr.bf16.mxu0 0
        %1105 = vmatpush1.bf16.xpose.msra.mxu0 0
        %1106 = vmatprep.subr.bf16.mxu0 0
        %1107 = vmatpush1.bf16.xpose.msra.mxu0 0
        %1108 = vmatprep.subr.bf16.mxu0 0
        %1109 = vmatpush1.bf16.xpose.msra.mxu0 0
        %1110 = vmatprep.subr.bf16.mxu0 0
        %1111 = vmatpush1.bf16.xpose.msra.mxu0 0
        %1112 = vmatprep.subr.bf16.mxu0 0
        %1113 = vmatpush1.bf16.xpose.msra.mxu0 0
        %1114 = vmatprep.subr.bf16.mxu0 0
        %1115 = vmatpush1.bf16.xpose.msra.mxu0 0
        %1116 = vmatprep.subr.bf16.mxu0 0
        %1117 = vmatpush1.bf16.xpose.msra.mxu0 0
        %1118 = vmatprep.mubr.bf16.mxu0 0
        %1119 = vmatmul.mubr.bf16.gmra.mrb[0].mxu0 %v1081
        %v1120 = vpop.f32.mrb[0].mxu0
        %v1121 = vadd.f32 0.0, %v1120
        %v1122 = vpop.f32.mrb[0].mxu0
        %v1123 = vpop.f32.mrb[0].mxu0
        %v1124 = vpop.f32.mrb[0].mxu0
        %1125 = vdwg.mxu0
        %v1126 = vmul.f32 %v1121, 0.35355338
        %v1127 = vsel %vm600, %v1126, -inf
        %1128 = vmax.xlane.f32.xlu0 %v1127
        %v1129 = vpop.xlane.xlu0 %1128
        %v1130 = vsub.f32 %v1126, %v1129
        %v1131 = vmul.f32 %v1130, 1.442695
        %v1132 = vpow.pop %v1131
        %v1133 = vsel %vm600, %v1132, 0.0
        %1134 = vadd.xlane.f32.xlu0 %v1133
        %v1135 = vpop.xlane.xlu0 %1134
        %v1136 = vrcp.pop %v1135
        %v1137 = vmul.f32 %v1132, %v1136
        %v1138 = vpack.c.bf16 %v1137, %v1137
        %1139 = vrot.lane.b32.xlu0 %v596, 40
        %v1140 = vpop.permute.xlu0 %1139
        %v1142 = vsel %vm600, %v1138, 0
        %v1145 = vsel %vm665, %v1140, 0
        %1147 = vmatprep.subr.bf16.mxu0 0
        %1148 = vmatpush1.bf16.msra.mxu0 %v1145
        %1149 = vmatprep.subr.bf16.mxu0 0
        %1150 = vmatpush1.bf16.msra.mxu0 0
        %1151 = vmatprep.subr.bf16.mxu0 0
        %1152 = vmatpush1.bf16.msra.mxu0 0
        %1153 = vmatprep.subr.bf16.mxu0 0
        %1154 = vmatpush1.bf16.msra.mxu0 0
        %1155 = vmatprep.subr.bf16.mxu0 0
        %1156 = vmatpush1.bf16.msra.mxu0 0
        %1157 = vmatprep.subr.bf16.mxu0 0
        %1158 = vmatpush1.bf16.msra.mxu0 0
        %1159 = vmatprep.subr.bf16.mxu0 0
        %1160 = vmatpush1.bf16.msra.mxu0 0
        %1161 = vmatprep.subr.bf16.mxu0 0
        %1162 = vmatpush1.bf16.msra.mxu0 0
        %1163 = vmatprep.subr.bf16.mxu0 0
        %1164 = vmatpush1.bf16.msra.mxu0 0
        %1165 = vmatprep.subr.bf16.mxu0 0
        %1166 = vmatpush1.bf16.msra.mxu0 0
        %1167 = vmatprep.subr.bf16.mxu0 0
        %1168 = vmatpush1.bf16.msra.mxu0 0
        %1169 = vmatprep.subr.bf16.mxu0 0
        %1170 = vmatpush1.bf16.msra.mxu0 0
        %1171 = vmatprep.subr.bf16.mxu0 0
        %1172 = vmatpush1.bf16.msra.mxu0 0
        %1173 = vmatprep.subr.bf16.mxu0 0
        %1174 = vmatpush1.bf16.msra.mxu0 0
        %1175 = vmatprep.subr.bf16.mxu0 0
        %1176 = vmatpush1.bf16.msra.mxu0 0
        %1177 = vmatprep.subr.bf16.mxu0 0
        %1178 = vmatpush1.bf16.msra.mxu0 0
        %1179 = vmatprep.mubr.bf16.mxu0 0
        %1180 = vmatmul.mubr.bf16.gmra.mrb[0].mxu0 %v1142
        %v1181 = vpop.f32.mrb[0].mxu0
        %v1182 = vadd.f32 0.0, %v1181
        %v1183 = vpop.f32.mrb[0].mxu0
        %v1184 = vpop.f32.mrb[0].mxu0
        %v1185 = vpop.f32.mrb[0].mxu0
        %1186 = vdwg.mxu0
        %v1187 = vpack.c.bf16 %v1182, %v1182
        %v1188 = vld [vmem:[%s4 + $0xc] sm:$0xf]
        %v1190 = vsel %vm600, %v1187, 0
        %v1193 = vsel %vm665, %v1188, 0
        %1195 = vmatprep.subr.bf16.mxu0 0
        %1196 = vmatpush1.bf16.msra.mxu0 %v1193
        %1197 = vmatprep.subr.bf16.mxu0 0
        %1198 = vmatpush1.bf16.msra.mxu0 0
        %1199 = vmatprep.subr.bf16.mxu0 0
        %1200 = vmatpush1.bf16.msra.mxu0 0
        %1201 = vmatprep.subr.bf16.mxu0 0
        %1202 = vmatpush1.bf16.msra.mxu0 0
        %1203 = vmatprep.subr.bf16.mxu0 0
        %1204 = vmatpush1.bf16.msra.mxu0 0
        %1205 = vmatprep.subr.bf16.mxu0 0
        %1206 = vmatpush1.bf16.msra.mxu0 0
        %1207 = vmatprep.subr.bf16.mxu0 0
        %1208 = vmatpush1.bf16.msra.mxu0 0
        %1209 = vmatprep.subr.bf16.mxu0 0
        %1210 = vmatpush1.bf16.msra.mxu0 0
        %1211 = vmatprep.subr.bf16.mxu0 0
        %1212 = vmatpush1.bf16.msra.mxu0 0
        %1213 = vmatprep.subr.bf16.mxu0 0
        %1214 = vmatpush1.bf16.msra.mxu0 0
        %1215 = vmatprep.subr.bf16.mxu0 0
        %1216 = vmatpush1.bf16.msra.mxu0 0
        %1217 = vmatprep.subr.bf16.mxu0 0
        %1218 = vmatpush1.bf16.msra.mxu0 0
        %1219 = vmatprep.subr.bf16.mxu0 0
        %1220 = vmatpush1.bf16.msra.mxu0 0
        %1221 = vmatprep.subr.bf16.mxu0 0
        %1222 = vmatpush1.bf16.msra.mxu0 0
        %1223 = vmatprep.subr.bf16.mxu0 0
        %1224 = vmatpush1.bf16.msra.mxu0 0
        %1225 = vmatprep.subr.bf16.mxu0 0
        %1226 = vmatpush1.bf16.msra.mxu0 0
        %1227 = vmatprep.mubr.bf16.mxu0 0
        %1228 = vmatmul.mubr.bf16.gmra.mrb[0].mxu0 %v1190
        %v1229 = vpop.f32.mrb[0].mxu0
        %v1230 = vadd.f32 0.0, %v1229
        %v1231 = vpop.f32.mrb[0].mxu0
        %v1232 = vpop.f32.mrb[0].mxu0
        %v1233 = vpop.f32.mrb[0].mxu0
        %1234 = vdwg.mxu0
        %v1235 = vadd.f32 %v1075, %v1230
        %v1236 = vld [vmem:[%s5] sm:$0x1]
        %v1237 = vunpack.c.l.bf16 %v1236
        %v1238 = vlaneseq
        %v1239 = vshrl.u32 %v1238, 7
        %v1240 = vsub.s32 0, %v1239
        %v1241 = vrot.slane %v1237, %v1240
        %v1242 = vadd.f32 %v1235, %v1241
        %v1243 = vld [vmem:[%s6] sm:$0x1]
        %v1244 = vunpack.c.l.bf16 %v1243
        %v1245 = vadd.f32 %v1242, %v529
        %v1246 = vsel %vm505, %v1245, 0.0
        %1247 = vadd.xlane.f32.xlu0 %v1246
        %v1248 = vpop.xlane.xlu0 %1247
        %v1249 = vmul.f32 %v1248, %v509
        %v1250 = vsub.f32 %v1245, %v1249
        %v1251 = vmul.f32 %v1250, %v1250
        %v1252 = vsel %vm505, %v1251, 0.0
        %1253 = vadd.xlane.f32.xlu0 %v1252
        %v1254 = vpop.xlane.xlu0 %1253
        %v1255 = vmul.f32 %v1254, %v509
        %v1256 = vadd.f32 %v1255, 1e-12
        %v1257 = vrsqrt.pop %v1256
        %v1258 = vmul.f32 %v1250, %v1257
        %v1259 = vlaneseq
        %v1260 = vshrl.u32 %v1259, 7
        %v1261 = vsub.s32 0, %v1260
        %v1262 = vrot.slane %v1244, %v1261
        %v1263 = vmul.f32 %v1258, %v1262
        %v1264 = vlaneseq
        %v1265 = vshrl.u32 %v1264, 7
        %v1266 = vsub.s32 1, %v1265
        %v1267 = vrot.slane %v1244, %v1266
        %v1268 = vadd.f32 %v1263, %v1267
        %v1269 = vpack.c.bf16 %v1268, %v1268
        %v1270 = vld [vmem:[%s7] sm:$0xf]
        %v1271 = vld [vmem:[%s7 + $0x4] sm:$0xf]
        %v1272 = vld [vmem:[%s7 + $0x8] sm:$0xf]
        %v1273 = vld [vmem:[%s7 + $0xc] sm:$0xf]
        %v1274 = vld [vmem:[%s8] sm:$0x1]
        %v1275 = vunpack.c.l.bf16 %v1274
        %v1276 = vlaneseq
        %v1277 = vshrl.u32 %v1276, 7
        %v1278 = vsub.s32 0, %v1277
        %v1279 = vrot.slane %v1275, %v1278
        %v1284 = vunpack.c.l.b16 %v1270
        %v1285 = vunpack.c.l.b16 %v1271
        %v1286 = vunpack.c.l.b16 %v1272
        %v1287 = vunpack.c.l.b16 %v1273
        %v1288 = vpack.c.b16 %v1285, %v1284
        %v1289 = vpack.c.b16 %v1287, %v1286
        %v1293 = vsel %vm505, %v1269, 0
        %1295 = vmatprep.subr.bf16.mxu0 0
        %1296 = vmatpush1.bf16.msra.mxu0 %v1288
        %1297 = vmatprep.subr.bf16.mxu0 0
        %1298 = vmatpush1.bf16.msra.mxu0 %v1289
        %1299 = vmatprep.subr.bf16.mxu0 0
        %1300 = vmatpush1.bf16.msra.mxu0 0
        %1301 = vmatprep.subr.bf16.mxu0 0
        %1302 = vmatpush1.bf16.msra.mxu0 0
        %1303 = vmatprep.subr.bf16.mxu0 0
        %1304 = vmatpush1.bf16.msra.mxu0 0
        %1305 = vmatprep.subr.bf16.mxu0 0
        %1306 = vmatpush1.bf16.msra.mxu0 0
        %1307 = vmatprep.subr.bf16.mxu0 0
        %1308 = vmatpush1.bf16.msra.mxu0 0
        %1309 = vmatprep.subr.bf16.mxu0 0
        %1310 = vmatpush1.bf16.msra.mxu0 0
        %1311 = vmatprep.subr.bf16.mxu0 0
        %1312 = vmatpush1.bf16.msra.mxu0 0
        %1313 = vmatprep.subr.bf16.mxu0 0
        %1314 = vmatpush1.bf16.msra.mxu0 0
        %1315 = vmatprep.subr.bf16.mxu0 0
        %1316 = vmatpush1.bf16.msra.mxu0 0
        %1317 = vmatprep.subr.bf16.mxu0 0
        %1318 = vmatpush1.bf16.msra.mxu0 0
        %1319 = vmatprep.subr.bf16.mxu0 0
        %1320 = vmatpush1.bf16.msra.mxu0 0
        %1321 = vmatprep.subr.bf16.mxu0 0
        %1322 = vmatpush1.bf16.msra.mxu0 0
        %1323 = vmatprep.subr.bf16.mxu0 0
        %1324 = vmatpush1.bf16.msra.mxu0 0
        %1325 = vmatprep.subr.bf16.mxu0 0
        %1326 = vmatpush1.bf16.msra.mxu0 0
        %1327 = vmatprep.mubr.bf16.mxu0 0
        %1328 = vmatmul.mubr.bf16.gmra.mrb[0].mxu0 %v1293
        %v1329 = vpop.f32.mrb[0].mxu0
        %v1330 = vadd.f32 %v1279, %v1329
        %v1331 = vpop.f32.mrb[0].mxu0
        %v1332 = vpop.f32.mrb[0].mxu0
        %v1333 = vpop.f32.mrb[0].mxu0
        %1334 = vdwg.mxu0
        %v1335 = vmul.f32 %v1330, 0.5
        %v1336 = vmul.f32 %v1330, 0.044715
        %v1337 = vmul.f32 %v1336, %v1330
        %v1338 = vmul.f32 %v1337, %v1330
        %v1339 = vadd.f32 %v1330, %v1338
        %v1340 = vmul.f32 %v1339, 0.7978846
        %v1341 = vtanh.pop %v1340
        %v1342 = vadd.f32 %v1341, 1.0
        %v1343 = vmul.f32 %v1335, %v1342
        %v1344 = vpack.c.bf16 %v1343, %v1343
        %v1345 = vld [vmem:[%s9] sm:$0xf]
        %v1346 = vld [vmem:[%s9 + $0x4] sm:$0xf]
        %v1347 = vld [vmem:[%s9 + $0x8] sm:$0xf]
        %v1348 = vld [vmem:[%s9 + $0xc] sm:$0xf]
        %v1349 = vld [vmem:[%s9 + $0x10] sm:$0xf]
        %v1350 = vld [vmem:[%s9 + $0x14] sm:$0xf]
        %v1351 = vld [vmem:[%s9 + $0x18] sm:$0xf]
        %v1352 = vld [vmem:[%s9 + $0x1c] sm:$0xf]
        %v1353 = vld [vmem:[%s10] sm:$0x1]
        %v1354 = vunpack.c.l.bf16 %v1353
        %v1355 = vlaneseq
        %v1356 = vshrl.u32 %v1355, 7
        %v1357 = vsub.s32 0, %v1356
        %v1358 = vrot.slane %v1354, %v1357
        %v1367 = vunpack.c.l.b16 %v1345
        %v1368 = vunpack.c.l.b16 %v1346
        %v1369 = vunpack.c.l.b16 %v1347
        %v1370 = vunpack.c.l.b16 %v1348
        %v1371 = vunpack.c.l.b16 %v1349
        %v1372 = vunpack.c.l.b16 %v1350
        %v1373 = vunpack.c.l.b16 %v1351
        %v1374 = vunpack.c.l.b16 %v1352
        %v1375 = vpack.c.b16 %v1368, %v1367
        %v1376 = vpack.c.b16 %v1370, %v1369
        %v1377 = vpack.c.b16 %v1372, %v1371
        %v1378 = vpack.c.b16 %v1374, %v1373
        %vm1383 = vcmask 523264
        %v1385 = vsel %vm1383, %v1344, 0
        %1387 = vmatprep.subr.bf16.mxu0 0
        %1388 = vmatpush1.bf16.msra.mxu0 %v1375
        %1389 = vmatprep.subr.bf16.mxu0 0
        %1390 = vmatpush1.bf16.msra.mxu0 %v1376
        %1391 = vmatprep.subr.bf16.mxu0 0
        %1392 = vmatpush1.bf16.msra.mxu0 %v1377
        %1393 = vmatprep.subr.bf16.mxu0 0
        %1394 = vmatpush1.bf16.msra.mxu0 %v1378
        %1395 = vmatprep.subr.bf16.mxu0 0
        %1396 = vmatpush1.bf16.msra.mxu0 0
        %1397 = vmatprep.subr.bf16.mxu0 0
        %1398 = vmatpush1.bf16.msra.mxu0 0
        %1399 = vmatprep.subr.bf16.mxu0 0
        %1400 = vmatpush1.bf16.msra.mxu0 0
        %1401 = vmatprep.subr.bf16.mxu0 0
        %1402 = vmatpush1.bf16.msra.mxu0 0
        %1403 = vmatprep.subr.bf16.mxu0 0
        %1404 = vmatpush1.bf16.msra.mxu0 0
        %1405 = vmatprep.subr.bf16.mxu0 0
        %1406 = vmatpush1.bf16.msra.mxu0 0
        %1407 = vmatprep.subr.bf16.mxu0 0
        %1408 = vmatpush1.bf16.msra.mxu0 0
        %1409 = vmatprep.subr.bf16.mxu0 0
        %1410 = vmatpush1.bf16.msra.mxu0 0
        %1411 = vmatprep.subr.bf16.mxu0 0
        %1412 = vmatpush1.bf16.msra.mxu0 0
        %1413 = vmatprep.subr.bf16.mxu0 0
        %1414 = vmatpush1.bf16.msra.mxu0 0
        %1415 = vmatprep.subr.bf16.mxu0 0
        %1416 = vmatpush1.bf16.msra.mxu0 0
        %1417 = vmatprep.subr.bf16.mxu0 0
        %1418 = vmatpush1.bf16.msra.mxu0 0
        %1419 = vmatprep.mubr.bf16.mxu0 0
        %1420 = vmatmul.mubr.bf16.gmra.mrb[0].mxu0 %v1385
        %v1421 = vpop.f32.mrb[0].mxu0
        %v1422 = vadd.f32 %v1358, %v1421
        %v1423 = vpop.f32.mrb[0].mxu0
        %v1424 = vpop.f32.mrb[0].mxu0
        %v1425 = vpop.f32.mrb[0].mxu0
        %1426 = vdwg.mxu0
        %v1427 = vld [vmem:[%s11] sm:$0x1]
        %v1428 = vunpack.c.l.bf16 %v1427
        %v1429 = vadd.f32 %v1422, %v1268
        %v1430 = vsel %vm505, %v1429, 0.0
        %1431 = vadd.xlane.f32.xlu0 %v1430
        %v1432 = vpop.xlane.xlu0 %1431
        %v1433 = vmul.f32 %v1432, %v509
        %v1434 = vsub.f32 %v1429, %v1433
        %v1435 = vmul.f32 %v1434, %v1434
        %v1436 = vsel %vm505, %v1435, 0.0
        %1437 = vadd.xlane.f32.xlu0 %v1436
        %v1438 = vpop.xlane.xlu0 %1437
        %v1439 = vmul.f32 %v1438, %v509
        %v1440 = vadd.f32 %v1439, 1e-12
        %v1441 = vrsqrt.pop %v1440
        %v1442 = vmul.f32 %v1434, %v1441
        %v1443 = vlaneseq
        %v1444 = vshrl.u32 %v1443, 7
        %v1445 = vsub.s32 0, %v1444
        %v1446 = vrot.slane %v1428, %v1445
        %v1447 = vmul.f32 %v1442, %v1446
        %v1448 = vlaneseq
        %v1449 = vshrl.u32 %v1448, 7
        %v1450 = vsub.s32 1, %v1449
        %v1451 = vrot.slane %v1428, %v1450
        %v1452 = vadd.f32 %v1447, %v1451
        %v1453 = vpack.c.bf16 %v1452, %v1452
        %s1454 = scalar_lea.vmem %s2, 16
        %v1455 = vld [vmem:[%s1454] sm:$0xf]
        %v1456 = vld [vmem:[%s1454 + $0x4] sm:$0xf]
        %v1457 = vld [vmem:[%s1454 + $0x8] sm:$0xf]
        %v1458 = vld [vmem:[%s1454 + $0xc] sm:$0xf]
        %s1459 = scalar_lea.vmem %s3, 1
        %v1460 = vld [vmem:[%s1459] sm:$0x1]
        %v1461 = vunpack.c.l.bf16 %v1460
        %v1462 = vlaneseq
        %v1463 = vshrl.u32 %v1462, 7
        %v1464 = vsub.s32 0, %v1463
        %v1465 = vrot.slane %v1461, %v1464
        %v1470 = vunpack.c.l.b16 %v1455
        %v1471 = vunpack.c.l.b16 %v1456
        %v1472 = vunpack.c.l.b16 %v1457
        %v1473 = vunpack.c.l.b16 %v1458
        %v1474 = vpack.c.b16 %v1471, %v1470
        %v1475 = vpack.c.b16 %v1473, %v1472
        %v1479 = vsel %vm505, %v1453, 0
        %1481 = vmatprep.subr.bf16.mxu0 0
        %1482 = vmatpush1.bf16.msra.mxu0 %v1474
        %1483 = vmatprep.subr.bf16.mxu0 0
        %1484 = vmatpush1.bf16.msra.mxu0 %v1475
        %1485 = vmatprep.subr.bf16.mxu0 0
        %1486 = vmatpush1.bf16.msra.mxu0 0
        %1487 = vmatprep.subr.bf16.mxu0 0
        %1488 = vmatpush1.bf16.msra.mxu0 0
        %1489 = vmatprep.subr.bf16.mxu0 0
        %1490 = vmatpush1.bf16.msra.mxu0 0
        %1491 = vmatprep.subr.bf16.mxu0 0
        %1492 = vmatpush1.bf16.msra.mxu0 0
        %1493 = vmatprep.subr.bf16.mxu0 0
        %1494 = vmatpush1.bf16.msra.mxu0 0
        %1495 = vmatprep.subr.bf16.mxu0 0
        %1496 = vmatpush1.bf16.msra.mxu0 0
        %1497 = vmatprep.subr.bf16.mxu0 0
        %1498 = vmatpush1.bf16.msra.mxu0 0
        %1499 = vmatprep.subr.bf16.mxu0 0
        %1500 = vmatpush1.bf16.msra.mxu0 0
        %1501 = vmatprep.subr.bf16.mxu0 0
        %1502 = vmatpush1.bf16.msra.mxu0 0
        %1503 = vmatprep.subr.bf16.mxu0 0
        %1504 = vmatpush1.bf16.msra.mxu0 0
        %1505 = vmatprep.subr.bf16.mxu0 0
        %1506 = vmatpush1.bf16.msra.mxu0 0
        %1507 = vmatprep.subr.bf16.mxu0 0
        %1508 = vmatpush1.bf16.msra.mxu0 0
        %1509 = vmatprep.subr.bf16.mxu0 0
        %1510 = vmatpush1.bf16.msra.mxu0 0
        %1511 = vmatprep.subr.bf16.mxu0 0
        %1512 = vmatpush1.bf16.msra.mxu0 0
        %1513 = vmatprep.mubr.bf16.mxu0 0
        %1514 = vmatmul.mubr.bf16.gmra.mrb[0].mxu0 %v1479
        %v1515 = vpop.f32.mrb[0].mxu0
        %v1516 = vadd.f32 %v1465, %v1515
        %v1517 = vpop.f32.mrb[0].mxu0
        %v1518 = vpop.f32.mrb[0].mxu0
        %v1519 = vpop.f32.mrb[0].mxu0
        %1520 = vdwg.mxu0
        %v1521 = vpack.c.bf16 %v1516, %v1516
        %1523 = vrot.lane.b32.xlu0 %v1521, 96
        %v1524 = vpop.permute.xlu0 %1523
        %v1526 = vsel %vm600, %v1521, 0
        %v1529 = vsel %vm600, %v1524, 0
        %1531 = vmatprep.subr.bf16.mxu0 0
        %1532 = vmatpush1.bf16.xpose.msra.mxu0 %v1529
        %1533 = vmatprep.subr.bf16.mxu0 0
        %1534 = vmatpush1.bf16.xpose.msra.mxu0 0
        %1535 = vmatprep.subr.bf16.mxu0 0
        %1536 = vmatpush1.bf16.xpose.msra.mxu0 0
        %1537 = vmatprep.subr.bf16.mxu0 0
        %1538 = vmatpush1.bf16.xpose.msra.mxu0 0
        %1539 = vmatprep.subr.bf16.mxu0 0
        %1540 = vmatpush1.bf16.xpose.msra.mxu0 0
        %1541 = vmatprep.subr.bf16.mxu0 0
        %1542 = vmatpush1.bf16.xpose.msra.mxu0 0
        %1543 = vmatprep.subr.bf16.mxu0 0
        %1544 = vmatpush1.bf16.xpose.msra.mxu0 0
        %1545 = vmatprep.subr.bf16.mxu0 0
        %1546 = vmatpush1.bf16.xpose.msra.mxu0 0
        %1547 = vmatprep.subr.bf16.mxu0 0
        %1548 = vmatpush1.bf16.xpose.msra.mxu0 0
        %1549 = vmatprep.subr.bf16.mxu0 0
        %1550 = vmatpush1.bf16.xpose.msra.mxu0 0
        %1551 = vmatprep.subr.bf16.mxu0 0
        %1552 = vmatpush1.bf16.xpose.msra.mxu0 0
        %1553 = vmatprep.subr.bf16.mxu0 0
        %1554 = vmatpush1.bf16.xpose.msra.mxu0 0
        %1555 = vmatprep.subr.bf16.mxu0 0
        %1556 = vmatpush1.bf16.xpose.msra.mxu0 0
        %1557 = vmatprep.subr.bf16.mxu0 0
        %1558 = vmatpush1.bf16.xpose.msra.mxu0 0
        %1559 = vmatprep.subr.bf16.mxu0 0
        %1560 = vmatpush1.bf16.xpose.msra.mxu0 0
        %1561 = vmatprep.subr.bf16.mxu0 0
        %1562 = vmatpush1.bf16.xpose.msra.mxu0 0
        %1563 = vmatprep.mubr.bf16.mxu0 0
        %1564 = vmatmul.mubr.bf16.gmra.mrb[0].mxu0 %v1526
        %v1565 = vpop.f32.mrb[0].mxu0
        %v1566 = vadd.f32 0.0, %v1565
        %v1567 = vpop.f32.mrb[0].mxu0
        %v1568 = vpop.f32.mrb[0].mxu0
        %v1569 = vpop.f32.mrb[0].mxu0
        %1570 = vdwg.mxu0
        %v1571 = vmul.f32 %v1566, 0.35355338
        %v1572 = vsel %vm600, %v1571, -inf
        %1573 = vmax.xlane.f32.xlu0 %v1572
        %v1574 = vpop.xlane.xlu0 %1573
        %v1575 = vsub.f32 %v1571, %v1574
        %v1576 = vmul.f32 %v1575, 1.442695
        %v1577 = vpow.pop %v1576
        %v1578 = vsel %vm600, %v1577, 0.0
        %1579 = vadd.xlane.f32.xlu0 %v1578
        %v1580 = vpop.xlane.xlu0 %1579
        %v1581 = vrcp.pop %v1580
        %v1582 = vmul.f32 %v1577, %v1581
        %v1583 = vpack.c.bf16 %v1582, %v1582
        %1584 = vrot.lane.b32.xlu0 %v1521, 64
        %v1585 = vpop.permute.xlu0 %1584
        %v1587 = vsel %vm600, %v1583, 0
        %v1590 = vsel %vm665, %v1585, 0
        %1592 = vmatprep.subr.bf16.mxu0 0
        %1593 = vmatpush1.bf16.msra.mxu0 %v1590
        %1594 = vmatprep.subr.bf16.mxu0 0
        %1595 = vmatpush1.bf16.msra.mxu0 0
        %1596 = vmatprep.subr.bf16.mxu0 0
        %1597 = vmatpush1.bf16.msra.mxu0 0
        %1598 = vmatprep.subr.bf16.mxu0 0
        %1599 = vmatpush1.bf16.msra.mxu0 0
        %1600 = vmatprep.subr.bf16.mxu0 0
        %1601 = vmatpush1.bf16.msra.mxu0 0
        %1602 = vmatprep.subr.bf16.mxu0 0
        %1603 = vmatpush1.bf16.msra.mxu0 0
        %1604 = vmatprep.subr.bf16.mxu0 0
        %1605 = vmatpush1.bf16.msra.mxu0 0
        %1606 = vmatprep.subr.bf16.mxu0 0
        %1607 = vmatpush1.bf16.msra.mxu0 0
        %1608 = vmatprep.subr.bf16.mxu0 0
        %1609 = vmatpush1.bf16.msra.mxu0 0
        %1610 = vmatprep.subr.bf16.mxu0 0
        %1611 = vmatpush1.bf16.msra.mxu0 0
        %1612 = vmatprep.subr.bf16.mxu0 0
        %1613 = vmatpush1.bf16.msra.mxu0 0
        %1614 = vmatprep.subr.bf16.mxu0 0
        %1615 = vmatpush1.bf16.msra.mxu0 0
        %1616 = vmatprep.subr.bf16.mxu0 0
        %1617 = vmatpush1.bf16.msra.mxu0 0
        %1618 = vmatprep.subr.bf16.mxu0 0
        %1619 = vmatpush1.bf16.msra.mxu0 0
        %1620 = vmatprep.subr.bf16.mxu0 0
        %1621 = vmatpush1.bf16.msra.mxu0 0
        %1622 = vmatprep.subr.bf16.mxu0 0
        %1623 = vmatpush1.bf16.msra.mxu0 0
        %1624 = vmatprep.mubr.bf16.mxu0 0
        %1625 = vmatmul.mubr.bf16.gmra.mrb[0].mxu0 %v1587
        %v1626 = vpop.f32.mrb[0].mxu0
        %v1627 = vadd.f32 0.0, %v1626
        %v1628 = vpop.f32.mrb[0].mxu0
        %v1629 = vpop.f32.mrb[0].mxu0
        %v1630 = vpop.f32.mrb[0].mxu0
        %1631 = vdwg.mxu0
        %v1632 = vpack.c.bf16 %v1627, %v1627
        %s1633 = scalar_lea.vmem %s4, 16
        %v1634 = vld [vmem:[%s1633] sm:$0xf]
        %1635 = vrot.lane.b32.xlu0 %v1521, 120
        %v1636 = vpop.permute.xlu0 %1635
        %1637 = vrot.lane.b32.xlu0 %v1521, 88
        %v1638 = vpop.permute.xlu0 %1637
        %v1640 = vsel %vm600, %v1636, 0
        %v1643 = vsel %vm600, %v1638, 0
        %1645 = vmatprep.subr.bf16.mxu0 0
        %1646 = vmatpush1.bf16.xpose.msra.mxu0 %v1643
        %1647 = vmatprep.subr.bf16.mxu0 0
        %1648 = vmatpush1.bf16.xpose.msra.mxu0 0
        %1649 = vmatprep.subr.bf16.mxu0 0
        %1650 = vmatpush1.bf16.xpose.msra.mxu0 0
        %1651 = vmatprep.subr.bf16.mxu0 0
        %1652 = vmatpush1.bf16.xpose.msra.mxu0 0
        %1653 = vmatprep.subr.bf16.mxu0 0
        %1654 = vmatpush1.bf16.xpose.msra.mxu0 0
        %1655 = vmatprep.subr.bf16.mxu0 0
        %1656 = vmatpush1.bf16.xpose.msra.mxu0 0
        %1657 = vmatprep.subr.bf16.mxu0 0
        %1658 = vmatpush1.bf16.xpose.msra.mxu0 0
        %1659 = vmatprep.subr.bf16.mxu0 0
        %1660 = vmatpush1.bf16.xpose.msra.mxu0 0
        %1661 = vmatprep.subr.bf16.mxu0 0
        %1662 = vmatpush1.bf16.xpose.msra.mxu0 0
        %1663 = vmatprep.subr.bf16.mxu0 0
        %1664 = vmatpush1.bf16.xpose.msra.mxu0 0
        %1665 = vmatprep.subr.bf16.mxu0 0
        %1666 = vmatpush1.bf16.xpose.msra.mxu0 0
        %1667 = vmatprep.subr.bf16.mxu0 0
        %1668 = vmatpush1.bf16.xpose.msra.mxu0 0
        %1669 = vmatprep.subr.bf16.mxu0 0
        %1670 = vmatpush1.bf16.xpose.msra.mxu0 0
        %1671 = vmatprep.subr.bf16.mxu0 0
        %1672 = vmatpush1.bf16.xpose.msra.mxu0 0
        %1673 = vmatprep.subr.bf16.mxu0 0
        %1674 = vmatpush1.bf16.xpose.msra.mxu0 0
        %1675 = vmatprep.subr.bf16.mxu0 0
        %1676 = vmatpush1.bf16.xpose.msra.mxu0 0
        %1677 = vmatprep.mubr.bf16.mxu0 0
        %1678 = vmatmul.mubr.bf16.gmra.mrb[0].mxu0 %v1640
        %v1679 = vpop.f32.mrb[0].mxu0
        %v1680 = vadd.f32 0.0, %v1679
        %v1681 = vpop.f32.mrb[0].mxu0
        %v1682 = vpop.f32.mrb[0].mxu0
        %v1683 = vpop.f32.mrb[0].mxu0
        %1684 = vdwg.mxu0
        %v1685 = vmul.f32 %v1680, 0.35355338
        %v1686 = vsel %vm600, %v1685, -inf
        %1687 = vmax.xlane.f32.xlu0 %v1686
        %v1688 = vpop.xlane.xlu0 %1687
        %v1689 = vsub.f32 %v1685, %v1688
        %v1690 = vmul.f32 %v1689, 1.442695
        %v1691 = vpow.pop %v1690
        %v1692 = vsel %vm600, %v1691, 0.0
        %1693 = vadd.xlane.f32.xlu0 %v1692
        %v1694 = vpop.xlane.xlu0 %1693
        %v1695 = vrcp.pop %v1694
        %v1696 = vmul.f32 %v1691, %v1695
        %v1697 = vpack.c.bf16 %v1696, %v1696
        %1698 = vrot.lane.b32.xlu0 %v1521, 56
        %v1699 = vpop.permute.xlu0 %1698
        %v1701 = vsel %vm600, %v1697, 0
        %v1704 = vsel %vm665, %v1699, 0
        %1706 = vmatprep.subr.bf16.mxu0 0
        %1707 = vmatpush1.bf16.msra.mxu0 %v1704
        %1708 = vmatprep.subr.bf16.mxu0 0
        %1709 = vmatpush1.bf16.msra.mxu0 0
        %1710 = vmatprep.subr.bf16.mxu0 0
        %1711 = vmatpush1.bf16.msra.mxu0 0
        %1712 = vmatprep.subr.bf16.mxu0 0
        %1713 = vmatpush1.bf16.msra.mxu0 0
        %1714 = vmatprep.subr.bf16.mxu0 0
        %1715 = vmatpush1.bf16.msra.mxu0 0
        %1716 = vmatprep.subr.bf16.mxu0 0
        %1717 = vmatpush1.bf16.msra.mxu0 0
        %1718 = vmatprep.subr.bf16.mxu0 0
        %1719 = vmatpush1.bf16.msra.mxu0 0
        %1720 = vmatprep.subr.bf16.mxu0 0
        %1721 = vmatpush1.bf16.msra.mxu0 0
        %1722 = vmatprep.subr.bf16.mxu0 0
        %1723 = vmatpush1.bf16.msra.mxu0 0
        %1724 = vmatprep.subr.bf16.mxu0 0
        %1725 = vmatpush1.bf16.msra.mxu0 0
        %1726 = vmatprep.subr.bf16.mxu0 0
        %1727 = vmatpush1.bf16.msra.mxu0 0
        %1728 = vmatprep.subr.bf16.mxu0 0
        %1729 = vmatpush1.bf16.msra.mxu0 0
        %1730 = vmatprep.subr.bf16.mxu0 0
        %1731 = vmatpush1.bf16.msra.mxu0 0
        %1732 = vmatprep.subr.bf16.mxu0 0
        %1733 = vmatpush1.bf16.msra.mxu0 0
        %1734 = vmatprep.subr.bf16.mxu0 0
        %1735 = vmatpush1.bf16.msra.mxu0 0
        %1736 = vmatprep.subr.bf16.mxu0 0
        %1737 = vmatpush1.bf16.msra.mxu0 0
        %1738 = vmatprep.mubr.bf16.mxu0 0
        %1739 = vmatmul.mubr.bf16.gmra.mrb[0].mxu0 %v1701
        %v1740 = vpop.f32.mrb[0].mxu0
        %v1741 = vadd.f32 0.0, %v1740
        %v1742 = vpop.f32.mrb[0].mxu0
        %v1743 = vpop.f32.mrb[0].mxu0
        %v1744 = vpop.f32.mrb[0].mxu0
        %1745 = vdwg.mxu0
        %v1746 = vpack.c.bf16 %v1741, %v1741
        %v1747 = vld [vmem:[%s1633 + $0x4] sm:$0xf]
        %v1749 = vsel %vm600, %v1746, 0
        %v1752 = vsel %vm665, %v1747, 0
        %1754 = vmatprep.subr.bf16.mxu0 0
        %1755 = vmatpush1.bf16.msra.mxu0 %v1752
        %1756 = vmatprep.subr.bf16.mxu0 0
        %1757 = vmatpush1.bf16.msra.mxu0 0
        %1758 = vmatprep.subr.bf16.mxu0 0
        %1759 = vmatpush1.bf16.msra.mxu0 0
        %1760 = vmatprep.subr.bf16.mxu0 0
        %1761 = vmatpush1.bf16.msra.mxu0 0
        %1762 = vmatprep.subr.bf16.mxu0 0
        %1763 = vmatpush1.bf16.msra.mxu0 0
        %1764 = vmatprep.subr.bf16.mxu0 0
        %1765 = vmatpush1.bf16.msra.mxu0 0
        %1766 = vmatprep.subr.bf16.mxu0 0
        %1767 = vmatpush1.bf16.msra.mxu0 0
        %1768 = vmatprep.subr.bf16.mxu0 0
        %1769 = vmatpush1.bf16.msra.mxu0 0
        %1770 = vmatprep.subr.bf16.mxu0 0
        %1771 = vmatpush1.bf16.msra.mxu0 0
        %1772 = vmatprep.subr.bf16.mxu0 0
        %1773 = vmatpush1.bf16.msra.mxu0 0
        %1774 = vmatprep.subr.bf16.mxu0 0
        %1775 = vmatpush1.bf16.msra.mxu0 0
        %1776 = vmatprep.subr.bf16.mxu0 0
        %1777 = vmatpush1.bf16.msra.mxu0 0
        %1778 = vmatprep.subr.bf16.mxu0 0
        %1779 = vmatpush1.bf16.msra.mxu0 0
        %1780 = vmatprep.subr.bf16.mxu0 0
        %1781 = vmatpush1.bf16.msra.mxu0 0
        %1782 = vmatprep.subr.bf16.mxu0 0
        %1783 = vmatpush1.bf16.msra.mxu0 0
        %1784 = vmatprep.subr.bf16.mxu0 0
        %1785 = vmatpush1.bf16.msra.mxu0 0
        %1786 = vmatprep.mubr.bf16.mxu0 0
        %1787 = vmatmul.mubr.bf16.gmra.mrb[0].mxu0 %v1749
        %v1788 = vpop.f32.mrb[0].mxu0
        %v1789 = vadd.f32 0.0, %v1788
        %v1790 = vpop.f32.mrb[0].mxu0
        %v1791 = vpop.f32.mrb[0].mxu0
        %v1792 = vpop.f32.mrb[0].mxu0
        %1793 = vdwg.mxu0
        %v1795 = vsel %vm600, %v1632, 0
        %v1798 = vsel %vm665, %v1634, 0
        %1800 = vmatprep.subr.bf16.mxu0 0
        %1801 = vmatpush1.bf16.msra.mxu0 %v1798
        %1802 = vmatprep.subr.bf16.mxu0 0
        %1803 = vmatpush1.bf16.msra.mxu0 0
        %1804 = vmatprep.subr.bf16.mxu0 0
        %1805 = vmatpush1.bf16.msra.mxu0 0
        %1806 = vmatprep.subr.bf16.mxu0 0
        %1807 = vmatpush1.bf16.msra.mxu0 0
        %1808 = vmatprep.subr.bf16.mxu0 0
        %1809 = vmatpush1.bf16.msra.mxu0 0
        %1810 = vmatprep.subr.bf16.mxu0 0
        %1811 = vmatpush1.bf16.msra.mxu0 0
        %1812 = vmatprep.subr.bf16.mxu0 0
        %1813 = vmatpush1.bf16.msra.mxu0 0
        %1814 = vmatprep.subr.bf16.mxu0 0
        %1815 = vmatpush1.bf16.msra.mxu0 0
        %1816 = vmatprep.subr.bf16.mxu0 0
        %1817 = vmatpush1.bf16.msra.mxu0 0
        %1818 = vmatprep.subr.bf16.mxu0 0
        %1819 = vmatpush1.bf16.msra.mxu0 0
        %1820 = vmatprep.subr.bf16.mxu0 0
        %1821 = vmatpush1.bf16.msra.mxu0 0
        %1822 = vmatprep.subr.bf16.mxu0 0
        %1823 = vmatpush1.bf16.msra.mxu0 0
        %1824 = vmatprep.subr.bf16.mxu0 0
        %1825 = vmatpush1.bf16.msra.mxu0 0
        %1826 = vmatprep.subr.bf16.mxu0 0
        %1827 = vmatpush1.bf16.msra.mxu0 0
        %1828 = vmatprep.subr.bf16.mxu0 0
        %1829 = vmatpush1.bf16.msra.mxu0 0
        %1830 = vmatprep.subr.bf16.mxu0 0
        %1831 = vmatpush1.bf16.msra.mxu0 0
        %1832 = vmatprep.mubr.bf16.mxu0 0
        %1833 = vmatmul.mubr.bf16.gmra.mrb[0].mxu0 %v1795
        %v1834 = vpop.f32.mrb[0].mxu0
        %v1835 = vadd.f32 %v1789, %v1834
        %v1836 = vpop.f32.mrb[0].mxu0
        %v1837 = vpop.f32.mrb[0].mxu0
        %v1838 = vpop.f32.mrb[0].mxu0
        %1839 = vdwg.mxu0
        %1840 = vrot.lane.b32.xlu0 %v1521, 112
        %v1841 = vpop.permute.xlu0 %1840
        %1842 = vrot.lane.b32.xlu0 %v1521, 80
        %v1843 = vpop.permute.xlu0 %1842
        %v1845 = vsel %vm600, %v1841, 0
        %v1848 = vsel %vm600, %v1843, 0
        %1850 = vmatprep.subr.bf16.mxu0 0
        %1851 = vmatpush1.bf16.xpose.msra.mxu0 %v1848
        %1852 = vmatprep.subr.bf16.mxu0 0
        %1853 = vmatpush1.bf16.xpose.msra.mxu0 0
        %1854 = vmatprep.subr.bf16.mxu0 0
        %1855 = vmatpush1.bf16.xpose.msra.mxu0 0
        %1856 = vmatprep.subr.bf16.mxu0 0
        %1857 = vmatpush1.bf16.xpose.msra.mxu0 0
        %1858 = vmatprep.subr.bf16.mxu0 0
        %1859 = vmatpush1.bf16.xpose.msra.mxu0 0
        %1860 = vmatprep.subr.bf16.mxu0 0
        %1861 = vmatpush1.bf16.xpose.msra.mxu0 0
        %1862 = vmatprep.subr.bf16.mxu0 0
        %1863 = vmatpush1.bf16.xpose.msra.mxu0 0
        %1864 = vmatprep.subr.bf16.mxu0 0
        %1865 = vmatpush1.bf16.xpose.msra.mxu0 0
        %1866 = vmatprep.subr.bf16.mxu0 0
        %1867 = vmatpush1.bf16.xpose.msra.mxu0 0
        %1868 = vmatprep.subr.bf16.mxu0 0
        %1869 = vmatpush1.bf16.xpose.msra.mxu0 0
        %1870 = vmatprep.subr.bf16.mxu0 0
        %1871 = vmatpush1.bf16.xpose.msra.mxu0 0
        %1872 = vmatprep.subr.bf16.mxu0 0
        %1873 = vmatpush1.bf16.xpose.msra.mxu0 0
        %1874 = vmatprep.subr.bf16.mxu0 0
        %1875 = vmatpush1.bf16.xpose.msra.mxu0 0
        %1876 = vmatprep.subr.bf16.mxu0 0
        %1877 = vmatpush1.bf16.xpose.msra.mxu0 0
        %1878 = vmatprep.subr.bf16.mxu0 0
        %1879 = vmatpush1.bf16.xpose.msra.mxu0 0
        %1880 = vmatprep.subr.bf16.mxu0 0
        %1881 = vmatpush1.bf16.xpose.msra.mxu0 0
        %1882 = vmatprep.mubr.bf16.mxu0 0
        %1883 = vmatmul.mubr.bf16.gmra.mrb[0].mxu0 %v1845
        %v1884 = vpop.f32.mrb[0].mxu0
        %v1885 = vadd.f32 0.0, %v1884
        %v1886 = vpop.f32.mrb[0].mxu0
        %v1887 = vpop.f32.mrb[0].mxu0
        %v1888 = vpop.f32.mrb[0].mxu0
        %1889 = vdwg.mxu0
        %v1890 = vmul.f32 %v1885, 0.35355338
        %v1891 = vsel %vm600, %v1890, -inf
        %1892 = vmax.xlane.f32.xlu0 %v1891
        %v1893 = vpop.xlane.xlu0 %1892
        %v1894 = vsub.f32 %v1890, %v1893
        %v1895 = vmul.f32 %v1894, 1.442695
        %v1896 = vpow.pop %v1895
        %v1897 = vsel %vm600, %v1896, 0.0
        %1898 = vadd.xlane.f32.xlu0 %v1897
        %v1899 = vpop.xlane.xlu0 %1898
        %v1900 = vrcp.pop %v1899
        %v1901 = vmul.f32 %v1896, %v1900
        %v1902 = vpack.c.bf16 %v1901, %v1901
        %1903 = vrot.lane.b32.xlu0 %v1521, 48
        %v1904 = vpop.permute.xlu0 %1903
        %v1906 = vsel %vm600, %v1902, 0
        %v1909 = vsel %vm665, %v1904, 0
        %1911 = vmatprep.subr.bf16.mxu0 0
        %1912 = vmatpush1.bf16.msra.mxu0 %v1909
        %1913 = vmatprep.subr.bf16.mxu0 0
        %1914 = vmatpush1.bf16.msra.mxu0 0
        %1915 = vmatprep.subr.bf16.mxu0 0
        %1916 = vmatpush1.bf16.msra.mxu0 0
        %1917 = vmatprep.subr.bf16.mxu0 0
        %1918 = vmatpush1.bf16.msra.mxu0 0
        %1919 = vmatprep.subr.bf16.mxu0 0
        %1920 = vmatpush1.bf16.msra.mxu0 0
        %1921 = vmatprep.subr.bf16.mxu0 0
        %1922 = vmatpush1.bf16.msra.mxu0 0
        %1923 = vmatprep.subr.bf16.mxu0 0
        %1924 = vmatpush1.bf16.msra.mxu0 0
        %1925 = vmatprep.subr.bf16.mxu0 0
        %1926 = vmatpush1.bf16.msra.mxu0 0
        %1927 = vmatprep.subr.bf16.mxu0 0
        %1928 = vmatpush1.bf16.msra.mxu0 0
        %1929 = vmatprep.subr.bf16.mxu0 0
        %1930 = vmatpush1.bf16.msra.mxu0 0
        %1931 = vmatprep.subr.bf16.mxu0 0
        %1932 = vmatpush1.bf16.msra.mxu0 0
        %1933 = vmatprep.subr.bf16.mxu0 0
        %1934 = vmatpush1.bf16.msra.mxu0 0
        %1935 = vmatprep.subr.bf16.mxu0 0
        %1936 = vmatpush1.bf16.msra.mxu0 0
        %1937 = vmatprep.subr.bf16.mxu0 0
        %1938 = vmatpush1.bf16.msra.mxu0 0
        %1939 = vmatprep.subr.bf16.mxu0 0
        %1940 = vmatpush1.bf16.msra.mxu0 0
        %1941 = vmatprep.subr.bf16.mxu0 0
        %1942 = vmatpush1.bf16.msra.mxu0 0
        %1943 = vmatprep.mubr.bf16.mxu0 0
        %1944 = vmatmul.mubr.bf16.gmra.mrb[0].mxu0 %v1906
        %v1945 = vpop.f32.mrb[0].mxu0
        %v1946 = vadd.f32 0.0, %v1945
        %v1947 = vpop.f32.mrb[0].mxu0
        %v1948 = vpop.f32.mrb[0].mxu0
        %v1949 = vpop.f32.mrb[0].mxu0
        %1950 = vdwg.mxu0
        %v1951 = vpack.c.bf16 %v1946, %v1946
        %v1952 = vld [vmem:[%s1633 + $0x8] sm:$0xf]
        %v1954 = vsel %vm600, %v1951, 0
        %v1957 = vsel %vm665, %v1952, 0
        %1959 = vmatprep.subr.bf16.mxu0 0
        %1960 = vmatpush1.bf16.msra.mxu0 %v1957
        %1961 = vmatprep.subr.bf16.mxu0 0
        %1962 = vmatpush1.bf16.msra.mxu0 0
        %1963 = vmatprep.subr.bf16.mxu0 0
        %1964 = vmatpush1.bf16.msra.mxu0 0
        %1965 = vmatprep.subr.bf16.mxu0 0
        %1966 = vmatpush1.bf16.msra.mxu0 0
        %1967 = vmatprep.subr.bf16.mxu0 0
        %1968 = vmatpush1.bf16.msra.mxu0 0
        %1969 = vmatprep.subr.bf16.mxu0 0
        %1970 = vmatpush1.bf16.msra.mxu0 0
        %1971 = vmatprep.subr.bf16.mxu0 0
        %1972 = vmatpush1.bf16.msra.mxu0 0
        %1973 = vmatprep.subr.bf16.mxu0 0
        %1974 = vmatpush1.bf16.msra.mxu0 0
        %1975 = vmatprep.subr.bf16.mxu0 0
        %1976 = vmatpush1.bf16.msra.mxu0 0
        %1977 = vmatprep.subr.bf16.mxu0 0
        %1978 = vmatpush1.bf16.msra.mxu0 0
        %1979 = vmatprep.subr.bf16.mxu0 0
        %1980 = vmatpush1.bf16.msra.mxu0 0
        %1981 = vmatprep.subr.bf16.mxu0 0
        %1982 = vmatpush1.bf16.msra.mxu0 0
        %1983 = vmatprep.subr.bf16.mxu0 0
        %1984 = vmatpush1.bf16.msra.mxu0 0
        %1985 = vmatprep.subr.bf16.mxu0 0
        %1986 = vmatpush1.bf16.msra.mxu0 0
        %1987 = vmatprep.subr.bf16.mxu0 0
        %1988 = vmatpush1.bf16.msra.mxu0 0
        %1989 = vmatprep.subr.bf16.mxu0 0
        %1990 = vmatpush1.bf16.msra.mxu0 0
        %1991 = vmatprep.mubr.bf16.mxu0 0
        %1992 = vmatmul.mubr.bf16.gmra.mrb[0].mxu0 %v1954
        %v1993 = vpop.f32.mrb[0].mxu0
        %v1994 = vadd.f32 0.0, %v1993
        %v1995 = vpop.f32.mrb[0].mxu0
        %v1996 = vpop.f32.mrb[0].mxu0
        %v1997 = vpop.f32.mrb[0].mxu0
        %1998 = vdwg.mxu0
        %v1999 = vadd.f32 %v1835, %v1994
        %2000 = vrot.lane.b32.xlu0 %v1521, 104
        %v2001 = vpop.permute.xlu0 %2000
        %2002 = vrot.lane.b32.xlu0 %v1521, 72
        %v2003 = vpop.permute.xlu0 %2002
        %v2005 = vsel %vm600, %v2001, 0
        %v2008 = vsel %vm600, %v2003, 0
        %2010 = vmatprep.subr.bf16.mxu0 0
        %2011 = vmatpush1.bf16.xpose.msra.mxu0 %v2008
        %2012 = vmatprep.subr.bf16.mxu0 0
        %2013 = vmatpush1.bf16.xpose.msra.mxu0 0
        %2014 = vmatprep.subr.bf16.mxu0 0
        %2015 = vmatpush1.bf16.xpose.msra.mxu0 0
        %2016 = vmatprep.subr.bf16.mxu0 0
        %2017 = vmatpush1.bf16.xpose.msra.mxu0 0
        %2018 = vmatprep.subr.bf16.mxu0 0
        %2019 = vmatpush1.bf16.xpose.msra.mxu0 0
        %2020 = vmatprep.subr.bf16.mxu0 0
        %2021 = vmatpush1.bf16.xpose.msra.mxu0 0
        %2022 = vmatprep.subr.bf16.mxu0 0
        %2023 = vmatpush1.bf16.xpose.msra.mxu0 0
        %2024 = vmatprep.subr.bf16.mxu0 0
        %2025 = vmatpush1.bf16.xpose.msra.mxu0 0
        %2026 = vmatprep.subr.bf16.mxu0 0
        %2027 = vmatpush1.bf16.xpose.msra.mxu0 0
        %2028 = vmatprep.subr.bf16.mxu0 0
        %2029 = vmatpush1.bf16.xpose.msra.mxu0 0
        %2030 = vmatprep.subr.bf16.mxu0 0
        %2031 = vmatpush1.bf16.xpose.msra.mxu0 0
        %2032 = vmatprep.subr.bf16.mxu0 0
        %2033 = vmatpush1.bf16.xpose.msra.mxu0 0
        %2034 = vmatprep.subr.bf16.mxu0 0
        %2035 = vmatpush1.bf16.xpose.msra.mxu0 0
        %2036 = vmatprep.subr.bf16.mxu0 0
        %2037 = vmatpush1.bf16.xpose.msra.mxu0 0
        %2038 = vmatprep.subr.bf16.mxu0 0
        %2039 = vmatpush1.bf16.xpose.msra.mxu0 0
        %2040 = vmatprep.subr.bf16.mxu0 0
        %2041 = vmatpush1.bf16.xpose.msra.mxu0 0
        %2042 = vmatprep.mubr.bf16.mxu0 0
        %2043 = vmatmul.mubr.bf16.gmra.mrb[0].mxu0 %v2005
        %v2044 = vpop.f32.mrb[0].mxu0
        %v2045 = vadd.f32 0.0, %v2044
        %v2046 = vpop.f32.mrb[0].mxu0
        %v2047 = vpop.f32.mrb[0].mxu0
        %v2048 = vpop.f32.mrb[0].mxu0
        %2049 = vdwg.mxu0
        %v2050 = vmul.f32 %v2045, 0.35355338
        %v2051 = vsel %vm600, %v2050, -inf
        %2052 = vmax.xlane.f32.xlu0 %v2051
        %v2053 = vpop.xlane.xlu0 %2052
        %v2054 = vsub.f32 %v2050, %v2053
        %v2055 = vmul.f32 %v2054, 1.442695
        %v2056 = vpow.pop %v2055
        %v2057 = vsel %vm600, %v2056, 0.0
        %2058 = vadd.xlane.f32.xlu0 %v2057
        %v2059 = vpop.xlane.xlu0 %2058
        %v2060 = vrcp.pop %v2059
        %v2061 = vmul.f32 %v2056, %v2060
        %v2062 = vpack.c.bf16 %v2061, %v2061
        %2063 = vrot.lane.b32.xlu0 %v1521, 40
        %v2064 = vpop.permute.xlu0 %2063
        %v2066 = vsel %vm600, %v2062, 0
        %v2069 = vsel %vm665, %v2064, 0
        %2071 = vmatprep.subr.bf16.mxu0 0
        %2072 = vmatpush1.bf16.msra.mxu0 %v2069
        %2073 = vmatprep.subr.bf16.mxu0 0
        %2074 = vmatpush1.bf16.msra.mxu0 0
        %2075 = vmatprep.subr.bf16.mxu0 0
        %2076 = vmatpush1.bf16.msra.mxu0 0
        %2077 = vmatprep.subr.bf16.mxu0 0
        %2078 = vmatpush1.bf16.msra.mxu0 0
        %2079 = vmatprep.subr.bf16.mxu0 0
        %2080 = vmatpush1.bf16.msra.mxu0 0
        %2081 = vmatprep.subr.bf16.mxu0 0
        %2082 = vmatpush1.bf16.msra.mxu0 0
        %2083 = vmatprep.subr.bf16.mxu0 0
        %2084 = vmatpush1.bf16.msra.mxu0 0
        %2085 = vmatprep.subr.bf16.mxu0 0
        %2086 = vmatpush1.bf16.msra.mxu0 0
        %2087 = vmatprep.subr.bf16.mxu0 0
        %2088 = vmatpush1.bf16.msra.mxu0 0
        %2089 = vmatprep.subr.bf16.mxu0 0
        %2090 = vmatpush1.bf16.msra.mxu0 0
        %2091 = vmatprep.subr.bf16.mxu0 0
        %2092 = vmatpush1.bf16.msra.mxu0 0
        %2093 = vmatprep.subr.bf16.mxu0 0
        %2094 = vmatpush1.bf16.msra.mxu0 0
        %2095 = vmatprep.subr.bf16.mxu0 0
        %2096 = vmatpush1.bf16.msra.mxu0 0
        %2097 = vmatprep.subr.bf16.mxu0 0
        %2098 = vmatpush1.bf16.msra.mxu0 0
        %2099 = vmatprep.subr.bf16.mxu0 0
        %2100 = vmatpush1.bf16.msra.mxu0 0
        %2101 = vmatprep.subr.bf16.mxu0 0
        %2102 = vmatpush1.bf16.msra.mxu0 0
        %2103 = vmatprep.mubr.bf16.mxu0 0
        %2104 = vmatmul.mubr.bf16.gmra.mrb[0].mxu0 %v2066
        %v2105 = vpop.f32.mrb[0].mxu0
        %v2106 = vadd.f32 0.0, %v2105
        %v2107 = vpop.f32.mrb[0].mxu0
        %v2108 = vpop.f32.mrb[0].mxu0
        %v2109 = vpop.f32.mrb[0].mxu0
        %2110 = vdwg.mxu0
        %v2111 = vpack.c.bf16 %v2106, %v2106
        %v2112 = vld [vmem:[%s1633 + $0xc] sm:$0xf]
        %v2114 = vsel %vm600, %v2111, 0
        %v2117 = vsel %vm665, %v2112, 0
        %2119 = vmatprep.subr.bf16.mxu0 0
        %2120 = vmatpush1.bf16.msra.mxu0 %v2117
        %2121 = vmatprep.subr.bf16.mxu0 0
        %2122 = vmatpush1.bf16.msra.mxu0 0
        %2123 = vmatprep.subr.bf16.mxu0 0
        %2124 = vmatpush1.bf16.msra.mxu0 0
        %2125 = vmatprep.subr.bf16.mxu0 0
        %2126 = vmatpush1.bf16.msra.mxu0 0
        %2127 = vmatprep.subr.bf16.mxu0 0
        %2128 = vmatpush1.bf16.msra.mxu0 0
        %2129 = vmatprep.subr.bf16.mxu0 0
        %2130 = vmatpush1.bf16.msra.mxu0 0
        %2131 = vmatprep.subr.bf16.mxu0 0
        %2132 = vmatpush1.bf16.msra.mxu0 0
        %2133 = vmatprep.subr.bf16.mxu0 0
        %2134 = vmatpush1.bf16.msra.mxu0 0
        %2135 = vmatprep.subr.bf16.mxu0 0
        %2136 = vmatpush1.bf16.msra.mxu0 0
        %2137 = vmatprep.subr.bf16.mxu0 0
        %2138 = vmatpush1.bf16.msra.mxu0 0
        %2139 = vmatprep.subr.bf16.mxu0 0
        %2140 = vmatpush1.bf16.msra.mxu0 0
        %2141 = vmatprep.subr.bf16.mxu0 0
        %2142 = vmatpush1.bf16.msra.mxu0 0
        %2143 = vmatprep.subr.bf16.mxu0 0
        %2144 = vmatpush1.bf16.msra.mxu0 0
        %2145 = vmatprep.subr.bf16.mxu0 0
        %2146 = vmatpush1.bf16.msra.mxu0 0
        %2147 = vmatprep.subr.bf16.mxu0 0
        %2148 = vmatpush1.bf16.msra.mxu0 0
        %2149 = vmatprep.subr.bf16.mxu0 0
        %2150 = vmatpush1.bf16.msra.mxu0 0
        %2151 = vmatprep.mubr.bf16.mxu0 0
        %2152 = vmatmul.mubr.bf16.gmra.mrb[0].mxu0 %v2114
        %v2153 = vpop.f32.mrb[0].mxu0
        %v2154 = vadd.f32 0.0, %v2153
        %v2155 = vpop.f32.mrb[0].mxu0
        %v2156 = vpop.f32.mrb[0].mxu0
        %v2157 = vpop.f32.mrb[0].mxu0
        %2158 = vdwg.mxu0
        %v2159 = vadd.f32 %v1999, %v2154
        %s2160 = scalar_lea.vmem %s5, 1
        %v2161 = vld [vmem:[%s2160] sm:$0x1]
        %v2162 = vunpack.c.l.bf16 %v2161
        %v2163 = vlaneseq
        %v2164 = vshrl.u32 %v2163, 7
        %v2165 = vsub.s32 0, %v2164
        %v2166 = vrot.slane %v2162, %v2165
        %v2167 = vadd.f32 %v2159, %v2166
        %s2168 = scalar_lea.vmem %s6, 1
        %v2169 = vld [vmem:[%s2168] sm:$0x1]
        %v2170 = vunpack.c.l.bf16 %v2169
        %v2171 = vadd.f32 %v2167, %v1452
        %v2172 = vsel %vm505, %v2171, 0.0
        %2173 = vadd.xlane.f32.xlu0 %v2172
        %v2174 = vpop.xlane.xlu0 %2173
        %v2175 = vmul.f32 %v2174, %v509
        %v2176 = vsub.f32 %v2171, %v2175
        %v2177 = vmul.f32 %v2176, %v2176
        %v2178 = vsel %vm505, %v2177, 0.0
        %2179 = vadd.xlane.f32.xlu0 %v2178
        %v2180 = vpop.xlane.xlu0 %2179
        %v2181 = vmul.f32 %v2180, %v509
        %v2182 = vadd.f32 %v2181, 1e-12
        %v2183 = vrsqrt.pop %v2182
        %v2184 = vmul.f32 %v2176, %v2183
        %v2185 = vlaneseq
        %v2186 = vshrl.u32 %v2185, 7
        %v2187 = vsub.s32 0, %v2186
        %v2188 = vrot.slane %v2170, %v2187
        %v2189 = vmul.f32 %v2184, %v2188
        %v2190 = vlaneseq
        %v2191 = vshrl.u32 %v2190, 7
        %v2192 = vsub.s32 1, %v2191
        %v2193 = vrot.slane %v2170, %v2192
        %v2194 = vadd.f32 %v2189, %v2193
        %v2195 = vpack.c.bf16 %v2194, %v2194
        %s2196 = scalar_lea.vmem %s7, 16
        %v2197 = vld [vmem:[%s2196] sm:$0xf]
        %v2198 = vld [vmem:[%s2196 + $0x4] sm:$0xf]
        %v2199 = vld [vmem:[%s2196 + $0x8] sm:$0xf]
        %v2200 = vld [vmem:[%s2196 + $0xc] sm:$0xf]
        %s2201 = scalar_lea.vmem %s8, 1
        %v2202 = vld [vmem:[%s2201] sm:$0x1]
        %v2203 = vunpack.c.l.bf16 %v2202
        %v2204 = vlaneseq
        %v2205 = vshrl.u32 %v2204, 7
        %v2206 = vsub.s32 0, %v2205
        %v2207 = vrot.slane %v2203, %v2206
        %v2212 = vunpack.c.l.b16 %v2197
        %v2213 = vunpack.c.l.b16 %v2198
        %v2214 = vunpack.c.l.b16 %v2199
        %v2215 = vunpack.c.l.b16 %v2200
        %v2216 = vpack.c.b16 %v2213, %v2212
        %v2217 = vpack.c.b16 %v2215, %v2214
        %v2221 = vsel %vm505, %v2195, 0
        %2223 = vmatprep.subr.bf16.mxu0 0
        %2224 = vmatpush1.bf16.msra.mxu0 %v2216
        %2225 = vmatprep.subr.bf16.mxu0 0
        %2226 = vmatpush1.bf16.msra.mxu0 %v2217
        %2227 = vmatprep.subr.bf16.mxu0 0
        %2228 = vmatpush1.bf16.msra.mxu0 0
        %2229 = vmatprep.subr.bf16.mxu0 0
        %2230 = vmatpush1.bf16.msra.mxu0 0
        %2231 = vmatprep.subr.bf16.mxu0 0
        %2232 = vmatpush1.bf16.msra.mxu0 0
        %2233 = vmatprep.subr.bf16.mxu0 0
        %2234 = vmatpush1.bf16.msra.mxu0 0
        %2235 = vmatprep.subr.bf16.mxu0 0
        %2236 = vmatpush1.bf16.msra.mxu0 0
        %2237 = vmatprep.subr.bf16.mxu0 0
        %2238 = vmatpush1.bf16.msra.mxu0 0
        %2239 = vmatprep.subr.bf16.mxu0 0
        %2240 = vmatpush1.bf16.msra.mxu0 0
        %2241 = vmatprep.subr.bf16.mxu0 0
        %2242 = vmatpush1.bf16.msra.mxu0 0
        %2243 = vmatprep.subr.bf16.mxu0 0
        %2244 = vmatpush1.bf16.msra.mxu0 0
        %2245 = vmatprep.subr.bf16.mxu0 0
        %2246 = vmatpush1.bf16.msra.mxu0 0
        %2247 = vmatprep.subr.bf16.mxu0 0
        %2248 = vmatpush1.bf16.msra.mxu0 0
        %2249 = vmatprep.subr.bf16.mxu0 0
        %2250 = vmatpush1.bf16.msra.mxu0 0
        %2251 = vmatprep.subr.bf16.mxu0 0
        %2252 = vmatpush1.bf16.msra.mxu0 0
        %2253 = vmatprep.subr.bf16.mxu0 0
        %2254 = vmatpush1.bf16.msra.mxu0 0
        %2255 = vmatprep.mubr.bf16.mxu0 0
        %2256 = vmatmul.mubr.bf16.gmra.mrb[0].mxu0 %v2221
        %v2257 = vpop.f32.mrb[0].mxu0
        %v2258 = vadd.f32 %v2207, %v2257
        %v2259 = vpop.f32.mrb[0].mxu0
        %v2260 = vpop.f32.mrb[0].mxu0
        %v2261 = vpop.f32.mrb[0].mxu0
        %2262 = vdwg.mxu0
        %v2263 = vmul.f32 %v2258, 0.5
        %v2264 = vmul.f32 %v2258, 0.044715
        %v2265 = vmul.f32 %v2264, %v2258
        %v2266 = vmul.f32 %v2265, %v2258
        %v2267 = vadd.f32 %v2258, %v2266
        %v2268 = vmul.f32 %v2267, 0.7978846
        %v2269 = vtanh.pop %v2268
        %v2270 = vadd.f32 %v2269, 1.0
        %v2271 = vmul.f32 %v2263, %v2270
        %v2272 = vpack.c.bf16 %v2271, %v2271
        %s2273 = scalar_lea.vmem %s9, 32
        %v2274 = vld [vmem:[%s2273] sm:$0xf]
        %v2275 = vld [vmem:[%s2273 + $0x4] sm:$0xf]
        %v2276 = vld [vmem:[%s2273 + $0x8] sm:$0xf]
        %v2277 = vld [vmem:[%s2273 + $0xc] sm:$0xf]
        %v2278 = vld [vmem:[%s2273 + $0x10] sm:$0xf]
        %v2279 = vld [vmem:[%s2273 + $0x14] sm:$0xf]
        %v2280 = vld [vmem:[%s2273 + $0x18] sm:$0xf]
        %v2281 = vld [vmem:[%s2273 + $0x1c] sm:$0xf]
        %s2282 = scalar_lea.vmem %s10, 1
        %v2283 = vld [vmem:[%s2282] sm:$0x1]
        %v2284 = vunpack.c.l.bf16 %v2283
        %v2285 = vlaneseq
        %v2286 = vshrl.u32 %v2285, 7
        %v2287 = vsub.s32 0, %v2286
        %v2288 = vrot.slane %v2284, %v2287
        %v2297 = vunpack.c.l.b16 %v2274
        %v2298 = vunpack.c.l.b16 %v2275
        %v2299 = vunpack.c.l.b16 %v2276
        %v2300 = vunpack.c.l.b16 %v2277
        %v2301 = vunpack.c.l.b16 %v2278
        %v2302 = vunpack.c.l.b16 %v2279
        %v2303 = vunpack.c.l.b16 %v2280
        %v2304 = vunpack.c.l.b16 %v2281
        %v2305 = vpack.c.b16 %v2298, %v2297
        %v2306 = vpack.c.b16 %v2300, %v2299
        %v2307 = vpack.c.b16 %v2302, %v2301
        %v2308 = vpack.c.b16 %v2304, %v2303
        %v2314 = vsel %vm1383, %v2272, 0
        %2316 = vmatprep.subr.bf16.mxu0 0
        %2317 = vmatpush1.bf16.msra.mxu0 %v2305
        %2318 = vmatprep.subr.bf16.mxu0 0
        %2319 = vmatpush1.bf16.msra.mxu0 %v2306
        %2320 = vmatprep.subr.bf16.mxu0 0
        %2321 = vmatpush1.bf16.msra.mxu0 %v2307
        %2322 = vmatprep.subr.bf16.mxu0 0
        %2323 = vmatpush1.bf16.msra.mxu0 %v2308
        %2324 = vmatprep.subr.bf16.mxu0 0
        %2325 = vmatpush1.bf16.msra.mxu0 0
        %2326 = vmatprep.subr.bf16.mxu0 0
        %2327 = vmatpush1.bf16.msra.mxu0 0
        %2328 = vmatprep.subr.bf16.mxu0 0
        %2329 = vmatpush1.bf16.msra.mxu0 0
        %2330 = vmatprep.subr.bf16.mxu0 0
        %2331 = vmatpush1.bf16.msra.mxu0 0
        %2332 = vmatprep.subr.bf16.mxu0 0
        %2333 = vmatpush1.bf16.msra.mxu0 0
        %2334 = vmatprep.subr.bf16.mxu0 0
        %2335 = vmatpush1.bf16.msra.mxu0 0
        %2336 = vmatprep.subr.bf16.mxu0 0
        %2337 = vmatpush1.bf16.msra.mxu0 0
        %2338 = vmatprep.subr.bf16.mxu0 0
        %2339 = vmatpush1.bf16.msra.mxu0 0
        %2340 = vmatprep.subr.bf16.mxu0 0
        %2341 = vmatpush1.bf16.msra.mxu0 0
        %2342 = vmatprep.subr.bf16.mxu0 0
        %2343 = vmatpush1.bf16.msra.mxu0 0
        %2344 = vmatprep.subr.bf16.mxu0 0
        %2345 = vmatpush1.bf16.msra.mxu0 0
        %2346 = vmatprep.subr.bf16.mxu0 0
        %2347 = vmatpush1.bf16.msra.mxu0 0
        %2348 = vmatprep.mubr.bf16.mxu0 0
        %2349 = vmatmul.mubr.bf16.gmra.mrb[0].mxu0 %v2314
        %v2350 = vpop.f32.mrb[0].mxu0
        %v2351 = vadd.f32 %v2288, %v2350
        %v2352 = vpop.f32.mrb[0].mxu0
        %v2353 = vpop.f32.mrb[0].mxu0
        %v2354 = vpop.f32.mrb[0].mxu0
        %2355 = vdwg.mxu0
        %s2356 = scalar_lea.vmem %s11, 1
        %v2357 = vld [vmem:[%s2356] sm:$0x1]
        %v2358 = vunpack.c.l.bf16 %v2357
        %v2359 = vadd.f32 %v2351, %v2194
        %v2360 = vsel %vm505, %v2359, 0.0
        %2361 = vadd.xlane.f32.xlu0 %v2360
        %v2362 = vpop.xlane.xlu0 %2361
        %v2363 = vmul.f32 %v2362, %v509
        %v2364 = vsub.f32 %v2359, %v2363
        %v2365 = vmul.f32 %v2364, %v2364
        %v2366 = vsel %vm505, %v2365, 0.0
        %2367 = vadd.xlane.f32.xlu0 %v2366
        %v2368 = vpop.xlane.xlu0 %2367
        %v2369 = vmul.f32 %v2368, %v509
        %v2370 = vadd.f32 %v2369, 1e-12
        %v2371 = vrsqrt.pop %v2370
        %v2372 = vmul.f32 %v2364, %v2371
        %v2373 = vlaneseq
        %v2374 = vshrl.u32 %v2373, 7
        %v2375 = vsub.s32 0, %v2374
        %v2376 = vrot.slane %v2358, %v2375
        %v2377 = vmul.f32 %v2372, %v2376
        %v2378 = vlaneseq
        %v2379 = vshrl.u32 %v2378, 7
        %v2380 = vsub.s32 1, %v2379
        %v2381 = vrot.slane %v2358, %v2380
        %v2382 = vadd.f32 %v2377, %v2381
        %2383 = vst.msk [vmem:[%s499] sm:$0xff] %vm505, %v2382
        %v2384 = vpack.c.bf16 %v2382, %v2382
        %v2385 = vld [vmem:[%s12] sm:$0xf]
        %v2386 = vld [vmem:[%s12 + $0x4] sm:$0xf]
        %v2387 = vld [vmem:[%s12 + $0x8] sm:$0xf]
        %v2388 = vld [vmem:[%s12 + $0xc] sm:$0xf]
        %v2389 = vld [vmem:[%s13] sm:$0x1]
        %v2390 = vunpack.c.l.bf16 %v2389
        %v2395 = vunpack.c.l.b16 %v2385
        %v2396 = vunpack.c.l.b16 %v2386
        %v2397 = vunpack.c.l.b16 %v2387
        %v2398 = vunpack.c.l.b16 %v2388
        %v2399 = vpack.c.b16 %v2396, %v2395
        %v2400 = vpack.c.b16 %v2398, %v2397
        %v2404 = vsel %vm505, %v2384, 0
        %2406 = vmatprep.subr.bf16.mxu0 0
        %2407 = vmatpush1.bf16.msra.mxu0 %v2399
        %2408 = vmatprep.subr.bf16.mxu0 0
        %2409 = vmatpush1.bf16.msra.mxu0 %v2400
        %2410 = vmatprep.subr.bf16.mxu0 0
        %2411 = vmatpush1.bf16.msra.mxu0 0
        %2412 = vmatprep.subr.bf16.mxu0 0
        %2413 = vmatpush1.bf16.msra.mxu0 0
        %2414 = vmatprep.subr.bf16.mxu0 0
        %2415 = vmatpush1.bf16.msra.mxu0 0
        %2416 = vmatprep.subr.bf16.mxu0 0
        %2417 = vmatpush1.bf16.msra.mxu0 0
        %2418 = vmatprep.subr.bf16.mxu0 0
        %2419 = vmatpush1.bf16.msra.mxu0 0
        %2420 = vmatprep.subr.bf16.mxu0 0
        %2421 = vmatpush1.bf16.msra.mxu0 0
        %2422 = vmatprep.subr.bf16.mxu0 0
        %2423 = vmatpush1.bf16.msra.mxu0 0
        %2424 = vmatprep.subr.bf16.mxu0 0
        %2425 = vmatpush1.bf16.msra.mxu0 0
        %2426 = vmatprep.subr.bf16.mxu0 0
        %2427 = vmatpush1.bf16.msra.mxu0 0
        %2428 = vmatprep.subr.bf16.mxu0 0
        %2429 = vmatpush1.bf16.msra.mxu0 0
        %2430 = vmatprep.subr.bf16.mxu0 0
        %2431 = vmatpush1.bf16.msra.mxu0 0
        %2432 = vmatprep.subr.bf16.mxu0 0
        %2433 = vmatpush1.bf16.msra.mxu0 0
        %2434 = vmatprep.subr.bf16.mxu0 0
        %2435 = vmatpush1.bf16.msra.mxu0 0
        %2436 = vmatprep.subr.bf16.mxu0 0
        %2437 = vmatpush1.bf16.msra.mxu0 0
        %2438 = vmatprep.mubr.bf16.mxu0 0
        %2439 = vmatmul.mubr.bf16.gmra.mrb[0].mxu0 %v2404
        %v2440 = vpop.f32.mrb[0].mxu0
        %v2441 = vadd.f32 %v2390, %v2440
        %v2442 = vpop.f32.mrb[0].mxu0
        %v2443 = vpop.f32.mrb[0].mxu0
        %v2444 = vpop.f32.mrb[0].mxu0
        %2445 = vdwg.mxu0
        %v2446 = vtanh.pop %v2441
        %vm2447 = vcmask 253952
        %2448 = vst.msk [vmem:[%s491] sm:$0x1] %vm2447, %v2446
        %p2449 = scmp.lt.s32.totalorder %s30, 1
        %s2450 = scalar_select %p2449, %s30, 1
        %s2451 = smul.addr %s2450, 8
        %s2452 = scalar_lea.vmem %s14, %s2451
        %s2453 = sand.u32 %s363, 1
        %s2454 = scalar_lea.sflag [#allocation3], %s2453
        %s2455 = sand.u32 %s363, 1
        %s2456 = scalar_lea.vmem [#allocation2], %s2455
        // Predicated region
        $region77: #{word_bert_encoder_forward.1} parent=75 // pred_check
          %p2457 = pneg %p347
        $region78: #{word_bert_encoder_forward.1} parent=75 // pred_check_branch
          %2459 = sbr.rel (%p2457) target = $region80
        $region79: #{word_bert_encoder_forward.1} parent=75 // pred_region
          _
        $region80: #{word_bert_encoder_forward.1} parent=75 // pred_fallthru
          _
        // Predicated region
        $region81: #{word_bert_encoder_forward.1} parent=75 // pred_check
          %p2460 = pneg %p373
        $region82: #{word_bert_encoder_forward.1} parent=75 // pred_check_branch
          %2462 = sbr.rel (%p2460) target = $region84
        $region83: #{word_bert_encoder_forward.1} parent=75 // pred_region
          %s2464 = ssub.s32 16, 16
          %2465 = vsyncadd %s2454, %s2464
          %s2466 = smul.addr %s30, 16
          %s2467 = scalar_lea.hbm %s15, %s2466
          %s2469 = sshll.u32 %s2456, 4
          %s2470 = int_to_ptr.vmem [resolvable:$true] %s2469
          %2472 = dma.vmem_to_hbm [thread:$0]  %s2470, 16, %s2467, %s2454
        $region84: #{word_bert_encoder_forward.1} parent=75 // pred_fallthru
          _
      $region76: #{word_bert_encoder_forward.1} parent=5 // pred_fallthru
        _
      %p2473 = scmp.le.s32.totalorder 2, %s25
      // Predicated region
      $region85: #{word_bert_encoder_forward.1} parent=5 // pred_check
        %p2474 = pneg %p2473
      $region86: #{word_bert_encoder_forward.1} parent=5 // pred_check_branch
        %2476 = sbr.rel (%p2474) target = $region88
      $region87: #{word_bert_encoder_forward.1} parent=5 // pred_region
        %s2477 = ssub.s32 %s25, 2
        // Predicated region
        $region89: #{word_bert_encoder_forward.1} parent=87 // pred_check
          %p2478 = pneg %p353
        $region90: #{word_bert_encoder_forward.1} parent=87 // pred_check_branch
          %2480 = sbr.rel (%p2478) target = $region92
        $region91: #{word_bert_encoder_forward.1} parent=87 // pred_region
          %p2481 = scmp.lt.s32.totalorder %s31, 1
          %s2482 = scalar_select %p2481, %s31, 1
          %s2483 = smul.addr %s2482, 8
          %s2484 = scalar_lea.vmem %s14, %s2483
        $region92: #{word_bert_encoder_forward.1} parent=87 // pred_fallthru
          _
        // Predicated region
        $region93: #{word_bert_encoder_forward.1} parent=87 // pred_check
          %p2485 = pneg %p379
        $region94: #{word_bert_encoder_forward.1} parent=87 // pred_check_branch
          %2487 = sbr.rel (%p2485) target = $region96
        $region95: #{word_bert_encoder_forward.1} parent=87 // pred_region
          %s2488 = sand.u32 %s364, 1
          %s2489 = scalar_lea.sflag [#allocation3], %s2488
          %s2490 = sand.u32 %s364, 1
          %s2491 = scalar_lea.vmem [#allocation2], %s2490
          %2492 = dma.done %s2489, 16
        $region96: #{word_bert_encoder_forward.1} parent=87 // pred_fallthru
          _
      $region88: #{word_bert_encoder_forward.1} parent=5 // pred_fallthru
        _
    $region6: #{word_bert_encoder_forward.1} parent=1 // loop_footer
      %s29 = sadd.s32 1, %s25
    $region7: #{word_bert_encoder_forward.1} parent=1 // loop_footer_branch
      %24 = sbr.rel target = $region3
    $region8: #{word_bert_encoder_forward.1} parent=1 // loop_exit
      _
    %2493 = vsyncpa [#allocation3], 1
    %s2494 = scalar_lea.sflag [#allocation3], 1
    %2495 = vsyncpa %s2494, 1

</llo_original>
